<compile_context>
chip_gen: v7x
topology: tpu7x:2x2x1
jax: 0.10.0
libtpu: 0.0.40
codegen_flags: <defaults>
</compile_context>

<pallas_src>
import functools

import jax
import jax.numpy as jnp
from jax.experimental import pallas as pl
from jax.experimental.pallas import tpu as pltpu

NEG_SLOPE = 0.1  # nonlinear_activation_params={'negative_slope': 0.1}


def _round_up(v, m):
    return (v + m - 1) // m * m


def _leaky(x):
    return jnp.where(x >= 0, x, x * NEG_SLOPE)


def _fused_block_kernel(x_hbm, w1_ref, b1_ref, w2_ref, b2_ref, out_ref,
                        win_ref, res_ref, acc_ref, pad_ref, sem_ref, *,
                        K, dils, C_pad, T, T_tile, T_ext, H_left,
                        padL1, padR1, padL2, padR2, pack_taps, stage_align):
    """Fused residual block for one (batch, time-tile) grid point.

    x_hbm:   (B, H_left + T_padded + H_right, C_pad) f32, raw HBM ref
    w*_ref:  (L, K*C_pad, C_pad)   per-layer weights, tap-major rows
    b*_ref:  (L, 1, C_pad) f32     biases
    out_ref: (1, T_tile, C_pad)
    win_ref: (2, T_ext, C_pad) f32 double-buffered DMA'd input windows
    res_ref: (T_ext, C_pad) f32    running residual chain
    acc_ref: (T_ext, C_pad) f32    conv output (holds y1 then y2)
    pad_ref: (pad_rows, C_pad)     zero-padded conv-input staging (compute dtype)
    """
    b = pl.program_id(0)
    t = pl.program_id(1)
    n_t = pl.num_programs(1)
    slot = t & 1

    def start_fetch(tt, sl):
        pltpu.make_async_copy(x_hbm.at[b, pl.ds(tt * T_tile, T_ext), :],
                              win_ref.at[sl], sem_ref.at[sl]).start()

    # Prime the pipeline at the first time-tile of each batch row (batch axis
    # is "parallel"/megacore, so priming must not depend on other batch rows).
    @pl.when(t == 0)
    def _():
        start_fetch(0, 0)

    # Wait for this tile's window ...
    pltpu.make_async_copy(x_hbm.at[b, pl.ds(0, T_ext), :],
                          win_ref.at[slot], sem_ref.at[slot]).wait()

    # ... and immediately start prefetching the next tile's window so its HBM
    # latency hides under this tile's compute.
    @pl.when(t + 1 < n_t)
    def _():
        start_fetch(t + 1, 1 - slot)

    # Validity mask: rows whose global time index is outside [0, T) are the
    # convs' zero padding at the sequence boundaries.  Computed once per tile
    # and applied to EVERY conv's staged input (this is the bug fix).
    rows = jax.lax.broadcasted_iota(jnp.int32, (T_ext, 1), 0)
    gpos = rows + (t * T_tile - H_left)
    maskf = jnp.logical_and(gpos >= 0, gpos < T).astype(jnp.float32)

    def conv(src_ref, w_ref, b_ref, layer, dil, p_l, p_r, dst_ref):
        """dst = bias + sum_k shift(mask * leaky(src), k*dil) @ w[layer, k]."""
        slab = _round_up(p_l, stage_align)   # aligned start of activation slab
        base = slab - p_l                    # read offset of tap 0
        if p_l > 0:                          # zero only the halo rows
            pad_ref[base:slab, :] = jnp.zeros((p_l, C_pad), pad_ref.dtype)
        if p_r > 0:
            pad_ref[slab + T_ext:slab + T_ext + p_r, :] = jnp.zeros(
                (p_r, C_pad), pad_ref.dtype)
        pad_ref[slab:slab + T_ext, :] = (
            _leaky(src_ref[...]) * maskf).astype(pad_ref.dtype)

        if pack_taps:
            # Pack all taps along the contraction dim -> one matmul with a
            # K*C_pad-deep contraction (fills the 256-deep MXU when C_pad=128).
            lhs = jnp.concatenate(
                [pad_ref[base + k * dil:base + k * dil + T_ext, :]
                 for k in range(K)], axis=1)
            y = jnp.dot(lhs, w_ref[layer],
                        preferred_element_type=jnp.float32) + b_ref[layer]
        else:
            # Single summed expression -> accumulator is written once (no
            # per-tap f32 VMEM round trips).
            y = b_ref[layer]
            for k in range(K):
                y = y + jnp.dot(
                    pad_ref[base + k * dil:base + k * dil + T_ext, :],
                    w_ref[layer, k * C_pad:(k + 1) * C_pad, :],
                    preferred_element_type=jnp.float32)
        dst_ref[...] = y

    for layer, d in enumerate(dils):
        src = win_ref.at[slot] if layer == 0 else res_ref
        conv(src, w1_ref, b1_ref, layer, d, padL1[layer], padR1[layer], acc_ref)
        conv(acc_ref, w2_ref, b2_ref, layer, 1, padL2, padR2, acc_ref)
        res_ref[...] = acc_ref[...] + src[...]

    out_ref[0] = res_ref[H_left:H_left + T_tile, :].astype(out_ref.dtype)


def hifigan_residual_block(x, params, *, mode="causal", kernel_size=3,
                           dilations=(1, 3, 5), t_tile=512,
                           compute_dtype=jnp.bfloat16):
    """x: (B, C, T) float32 (PyTorch NCW layout).  Returns (B, C, T)."""
    B, C, T = x.shape
    K = kernel_size
    L = len(dilations)
    assert K % 2 == 1, "Kernel size must be odd number."

    # --- per-conv padding amounts (match CausalConv1d / NonCausalConv1d) ----
    if mode == "causal":
        padL1 = [(K - 1) * d for d in dilations]
        padR1 = [0 for _ in dilations]
        padL2, padR2 = (K - 1), 0
    elif mode == "noncausal":
        padL1 = [(K - 1) // 2 * d for d in dilations]
        padR1 = list(padL1)
        padL2 = padR2 = (K - 1) // 2
    else:
        raise NotImplementedError(f"Mode ({mode}) is not supported!")

    # --- tiling / halo geometry --------------------------------------------
    C_pad = max(128, _round_up(C, 128))              # lane-dense channels
    T_tile = _round_up(min(t_tile, _round_up(T, 8)), 8)
    T_padded = _round_up(T, T_tile)
    n_t = T_padded // T_tile
    H_left = _round_up(sum(padL1) + L * padL2, 8)    # fused left context
    H_right = _round_up(sum(padR1) + L * padR2, 8)   # fused right context
    T_ext = T_tile + H_left + H_right

    itemsize = jnp.dtype(compute_dtype).itemsize
    stage_align = 16 if itemsize == 2 else 8
    pad_rows = 0
    for p_l, p_r in list(zip(padL1, padR1)) + [(padL2, padR2)]:
        pad_rows = max(pad_rows, _round_up(p_l, stage_align) + T_ext + p_r)
    pad_rows = _round_up(pad_rows, stage_align)

    pack_taps = (C_pad == 128)   # fill 256-deep MXU (v6e/v7x) for small C

    # --- layout & parameter prep (outside the kernel) ------------------------
    xt = jnp.transpose(x, (0, 2, 1)).astype(jnp.float32)          # (B, T, C)
    xt = jnp.pad(xt, ((0, 0),
                      (H_left, H_right + T_padded - T),
                      (0, C_pad - C)))                             # (B, Ttot, C_pad)

    def prep_w(w):  # PyTorch (C_out, C_in, K) -> (K*C_pad, C_pad), tap-major
        w = jnp.transpose(w, (2, 1, 0))
        w = jnp.pad(w, ((0, 0), (0, C_pad - C), (0, C_pad - C)))
        return w.reshape(K * C_pad, C_pad)

    W1 = jnp.stack([prep_w(p[0]) for p in params]).astype(compute_dtype)
    W2 = jnp.stack([prep_w(p[2]) for p in params]).astype(compute_dtype)
    B1 = jnp.pad(jnp.stack([p[1] for p in params]).reshape(L, 1, C),
                 ((0, 0), (0, 0), (0, C_pad - C))).astype(jnp.float32)
    B2 = jnp.pad(jnp.stack([p[3] for p in params]).reshape(L, 1, C),
                 ((0, 0), (0, 0), (0, C_pad - C))).astype(jnp.float32)

    kern = functools.partial(
        _fused_block_kernel, K=K, dils=tuple(dilations), C_pad=C_pad, T=T,
        T_tile=T_tile, T_ext=T_ext, H_left=H_left,
        padL1=tuple(padL1), padR1=tuple(padR1), padL2=padL2, padR2=padR2,
        pack_taps=pack_taps, stage_align=stage_align)

    # Right-size the VMEM limit from the actual footprint (+60% margin) instead
    # of a flat limit; v7x only has 64 MiB per TensorCore.
    def nbytes(a):
        return a.size * a.dtype.itemsize
    footprint = (2 * (nbytes(W1) + nbytes(W2) + nbytes(B1) + nbytes(B2))
                 + 2 * T_tile * C_pad * 4              # double-buffered out
                 + 4 * T_ext * C_pad * 4               # win(2) + res + acc
                 + pad_rows * C_pad * itemsize)
    vmem_limit = max(16 << 20, min(int(1.6 * footprint) + (4 << 20), 112 << 20))

    out = pl.pallas_call(
        kern,
        out_shape=jax.ShapeDtypeStruct((B, T_padded, C_pad), jnp.float32),
        grid_spec=pltpu.PrefetchScalarGridSpec(
            num_scalar_prefetch=0,
            grid=(B, n_t),
            in_specs=[
                pl.BlockSpec(memory_space=pl.ANY),                   # x (HBM)
                pl.BlockSpec((L, K * C_pad, C_pad), lambda b, t: (0, 0, 0)),
                pl.BlockSpec((L, 1, C_pad), lambda b, t: (0, 0, 0)),
                pl.BlockSpec((L, K * C_pad, C_pad), lambda b, t: (0, 0, 0)),
                pl.BlockSpec((L, 1, C_pad), lambda b, t: (0, 0, 0)),
            ],
            out_specs=pl.BlockSpec((1, T_tile, C_pad), lambda b, t: (b, t, 0)),
            scratch_shapes=[
                pltpu.VMEM((2, T_ext, C_pad), jnp.float32),    # DMA window x2
                pltpu.VMEM((T_ext, C_pad), jnp.float32),       # residual chain
                pltpu.VMEM((T_ext, C_pad), jnp.float32),       # conv accumulator
                pltpu.VMEM((pad_rows, C_pad), compute_dtype),  # staged conv input
                pltpu.SemaphoreType.DMA((2,)),
            ],
        ),
        compiler_params=pltpu.CompilerParams(
            dimension_semantics=("parallel", "arbitrary"),
            vmem_limit_bytes=vmem_limit),
    )(xt, W1, B1, W2, B2)

    out = out[:, :T, :C]
    return jnp.transpose(out, (0, 2, 1)).astype(x.dtype)      # back to (B, C, T)


# ---------------- pure-JAX reference (matched precision) --------------------
def ref_forward(x, params, *, mode, kernel_size, dilations,
                compute_dtype=jnp.float32):
    """Same numerics as the kernel: operands cast to compute_dtype, f32 accum."""
    K = kernel_size

    def conv1d(a, w, b, dil):
        if mode == "causal":
            pad = ((K - 1) * dil, 0)
        else:
            p = (K - 1) // 2 * dil
            pad = (p, p)
        y = jax.lax.conv_general_dilated(
            a.astype(compute_dtype), w.astype(compute_dtype),
            window_strides=(1,), padding=[pad], rhs_dilation=(dil,),
            dimension_numbers=("NCH", "OIH", "NCH"),
            preferred_element_type=jnp.float32)
        return y + b[None, :, None]

    out = x
    for idx, d in enumerate(dilations):
        w1, b1, w2, b2 = params[idx]
        xt = conv1d(_leaky(out), w1, b1, d)
        xt = conv1d(_leaky(xt), w2, b2, 1)
        out = xt + out
    return out


def make_params(key, channels, kernel_size, dilations):
    params = []
    scale = 1.0 / jnp.sqrt(channels * kernel_size)
    for _ in dilations:
        key, k1, k2, k3, k4 = jax.random.split(key, 5)
        w1 = jax.random.normal(k1, (channels, channels, kernel_size),
                               jnp.float32) * scale
        b1 = jax.random.normal(k2, (channels,), jnp.float32) * 0.1
        w2 = jax.random.normal(k3, (channels, channels, kernel_size),
                               jnp.float32) * scale
        b2 = jax.random.normal(k4, (channels,), jnp.float32) * 0.1
        params.append((w1, b1, w2, b2))
    return params


if __name__ == "__main__":
    kernel_size = 3
    dilations = (1, 3, 5)
    key = jax.random.PRNGKey(0)
    ok = True

    # Config A: C_pad=128 (packed-tap MXU path), multi-tile halos, partially
    #           valid last tile, both padding modes.
    # Config B: C_pad=256 (per-tap path), different tile size.
    configs = [
        dict(B=2, C=64, T=80, t_tile=32, modes=("causal", "noncausal")),
        dict(B=1, C=200, T=50, t_tile=48, modes=("causal",)),
    ]
    for cfg in configs:
        key, kx, kp = jax.random.split(key, 3)
        x = jax.random.normal(kx, (cfg["B"], cfg["C"], cfg["T"]), jnp.float32)
        params = make_params(kp, cfg["C"], kernel_size, dilations)
        for mode in cfg["modes"]:
            y = hifigan_residual_block(
                x, params, mode=mode, kernel_size=kernel_size,
                dilations=dilations, t_tile=cfg["t_tile"],
                compute_dtype=jnp.bfloat16)
            y = jax.block_until_ready(y)
            y_ref = ref_forward(x, params, mode=mode, kernel_size=kernel_size,
                                dilations=dilations,
                                compute_dtype=jnp.bfloat16)
            err = float(jnp.max(jnp.abs(y - y_ref)))
            if not jnp.allclose(y, y_ref, rtol=1e-2, atol=1e-2):
                ok = False
                print(f"mismatch mode={mode} C={cfg['C']}: max abs err {err}")

    if ok:
        print("KERNEL_OK")
</pallas_src>

<mosaic_0001>
module attributes {stable_mosaic.version = 11 : i64} {
  func.func @_fused_block_kernel(%arg0: i32, %arg1: i32, %arg2: memref<2x120x128xf32, #tpu.memory_space<any>>, %arg3: memref<3x384x128xbf16, #tpu.memory_space<vmem>>, %arg4: memref<3x1x128xf32, #tpu.memory_space<vmem>>, %arg5: memref<3x384x128xbf16, #tpu.memory_space<vmem>>, %arg6: memref<3x1x128xf32, #tpu.memory_space<vmem>>, %arg7: memref<1x32x128xf32, #tpu.memory_space<vmem>>, %arg8: memref<2x56x128xf32, #tpu.memory_space<vmem>>, %arg9: memref<56x128xf32, #tpu.memory_space<vmem>>, %arg10: memref<56x128xf32, #tpu.memory_space<vmem>>, %arg11: memref<80x128xbf16, #tpu.memory_space<vmem>>, %arg12: memref<2x!tpu.dma_semaphore, #tpu.memory_space<semaphore_mem>>) attributes {dimension_semantics = [#tpu.dimension_semantics<parallel>, #tpu.dimension_semantics<arbitrary>], iteration_bounds = array<i64: 2, 3>, scalar_prefetch = 0 : i64, scratch_operands = 5 : i64, tpu.core_type = #tpu.core_type<tc>, window_params = [{}, {pipeline_mode = #tpu.pipeline_mode<synchronous>, transform_indices = @transform_1, window_bounds = array<i64: 3, 384, 128>}, {pipeline_mode = #tpu.pipeline_mode<synchronous>, transform_indices = @transform_2, window_bounds = array<i64: 3, 1, 128>}, {pipeline_mode = #tpu.pipeline_mode<synchronous>, transform_indices = @transform_3, window_bounds = array<i64: 3, 384, 128>}, {pipeline_mode = #tpu.pipeline_mode<synchronous>, transform_indices = @transform_4, window_bounds = array<i64: 3, 1, 128>}, {transform_indices = @transform_5, window_bounds = array<i64: 1, 32, 128>}]} {
    %c1_i32 = arith.constant 1 : i32
    %0 = arith.andi %arg1, %c1_i32 : i32
    %c0_i32 = arith.constant 0 : i32
    %1 = arith.cmpi eq, %arg1, %c0_i32 : i32
    %2 = arith.extui %1 : i1 to i32
    %c0_i32_0 = arith.constant 0 : i32
    %3 = arith.cmpi ne, %2, %c0_i32_0 : i32
    scf.if %3 {
      %c0_i32_163 = arith.constant 0 : i32
      %c0_i32_164 = arith.constant 0 : i32
      %c0_i32_165 = arith.constant 0 : i32
      %c0_i32_166 = arith.constant 0 : i32
      %190 = tpu.memref_slice %arg2[%arg0, %c0_i32_165, %c0_i32_166] : memref<2x120x128xf32, #tpu.memory_space<any>> -> memref<1x56x128xf32, #tpu.memory_space<any>>
      %191 = tpu.memref_squeeze %190 : memref<1x56x128xf32, #tpu.memory_space<any>> -> memref<56x128xf32, #tpu.memory_space<any>>
      %c0_i32_167 = arith.constant 0 : i32
      %c0_i32_168 = arith.constant 0 : i32
      %192 = tpu.memref_slice %arg8[%c0_i32_163, %c0_i32_167, %c0_i32_168] : memref<2x56x128xf32, #tpu.memory_space<vmem>> -> memref<1x56x128xf32, #tpu.memory_space<vmem>>
      %193 = tpu.memref_squeeze %192 : memref<1x56x128xf32, #tpu.memory_space<vmem>> -> memref<56x128xf32, #tpu.memory_space<vmem>>
      %194 = tpu.memref_slice %arg12[%c0_i32_164] : memref<2x!tpu.dma_semaphore, #tpu.memory_space<semaphore_mem>> -> memref<1x!tpu.dma_semaphore, #tpu.memory_space<semaphore_mem>>
      %195 = tpu.memref_squeeze %194 : memref<1x!tpu.dma_semaphore, #tpu.memory_space<semaphore_mem>> -> memref<!tpu.dma_semaphore, #tpu.memory_space<semaphore_mem>>
      tpu.enqueue_dma source(%191 : memref<56x128xf32, #tpu.memory_space<any>>) target(%193 : memref<56x128xf32, #tpu.memory_space<vmem>>) target_semaphore(%195 : memref<!tpu.dma_semaphore, #tpu.memory_space<semaphore_mem>>)
    } else {
    }
    %c0_i32_1 = arith.constant 0 : i32
    %c0_i32_2 = arith.constant 0 : i32
    %4 = tpu.memref_slice %arg2[%arg0, %c0_i32_1, %c0_i32_2] : memref<2x120x128xf32, #tpu.memory_space<any>> -> memref<1x56x128xf32, #tpu.memory_space<any>>
    %5 = tpu.memref_squeeze %4 : memref<1x56x128xf32, #tpu.memory_space<any>> -> memref<56x128xf32, #tpu.memory_space<any>>
    %c0_i32_3 = arith.constant 0 : i32
    %c0_i32_4 = arith.constant 0 : i32
    %6 = tpu.memref_slice %arg8[%0, %c0_i32_3, %c0_i32_4] : memref<2x56x128xf32, #tpu.memory_space<vmem>> -> memref<1x56x128xf32, #tpu.memory_space<vmem>>
    %7 = tpu.memref_squeeze %6 : memref<1x56x128xf32, #tpu.memory_space<vmem>> -> memref<56x128xf32, #tpu.memory_space<vmem>>
    %8 = tpu.memref_slice %arg12[%0] : memref<2x!tpu.dma_semaphore, #tpu.memory_space<semaphore_mem>> -> memref<1x!tpu.dma_semaphore, #tpu.memory_space<semaphore_mem>>
    %9 = tpu.memref_squeeze %8 : memref<1x!tpu.dma_semaphore, #tpu.memory_space<semaphore_mem>> -> memref<!tpu.dma_semaphore, #tpu.memory_space<semaphore_mem>>
    tpu.wait_dma2 semaphore(%9 : memref<!tpu.dma_semaphore, #tpu.memory_space<semaphore_mem>>) src(%5 : memref<56x128xf32, #tpu.memory_space<any>>) dst(%7 : memref<56x128xf32, #tpu.memory_space<vmem>>)
    %c1_i32_5 = arith.constant 1 : i32
    %10 = arith.addi %arg1, %c1_i32_5 : i32
    %c3_i32 = arith.constant 3 : i32
    %11 = arith.cmpi slt, %10, %c3_i32 : i32
    %12 = arith.extui %11 : i1 to i32
    %c0_i32_6 = arith.constant 0 : i32
    %13 = arith.cmpi ne, %12, %c0_i32_6 : i32
    scf.if %13 {
      %c1_i32_163 = arith.constant 1 : i32
      %190 = arith.addi %arg1, %c1_i32_163 : i32
      %c1_i32_164 = arith.constant 1 : i32
      %191 = arith.subi %c1_i32_164, %0 : i32
      %c32_i32_165 = arith.constant 32 : i32
      %192 = arith.muli %190, %c32_i32_165 : i32
      %c0_i32_166 = arith.constant 0 : i32
      %193 = tpu.memref_slice %arg2[%arg0, %192, %c0_i32_166] : memref<2x120x128xf32, #tpu.memory_space<any>> -> memref<1x56x128xf32, #tpu.memory_space<any>>
      %194 = tpu.memref_squeeze %193 : memref<1x56x128xf32, #tpu.memory_space<any>> -> memref<56x128xf32, #tpu.memory_space<any>>
      %c0_i32_167 = arith.constant 0 : i32
      %c0_i32_168 = arith.constant 0 : i32
      %195 = tpu.memref_slice %arg8[%191, %c0_i32_167, %c0_i32_168] : memref<2x56x128xf32, #tpu.memory_space<vmem>> -> memref<1x56x128xf32, #tpu.memory_space<vmem>>
      %196 = tpu.memref_squeeze %195 : memref<1x56x128xf32, #tpu.memory_space<vmem>> -> memref<56x128xf32, #tpu.memory_space<vmem>>
      %197 = tpu.memref_slice %arg12[%191] : memref<2x!tpu.dma_semaphore, #tpu.memory_space<semaphore_mem>> -> memref<1x!tpu.dma_semaphore, #tpu.memory_space<semaphore_mem>>
      %198 = tpu.memref_squeeze %197 : memref<1x!tpu.dma_semaphore, #tpu.memory_space<semaphore_mem>> -> memref<!tpu.dma_semaphore, #tpu.memory_space<semaphore_mem>>
      tpu.enqueue_dma source(%194 : memref<56x128xf32, #tpu.memory_space<any>>) target(%196 : memref<56x128xf32, #tpu.memory_space<vmem>>) target_semaphore(%198 : memref<!tpu.dma_semaphore, #tpu.memory_space<semaphore_mem>>)
    } else {
    }
    %14 = tpu.iota {dimensions = array<i32: 0>} : vector<56x1xi32>
    %c32_i32 = arith.constant 32 : i32
    %15 = arith.muli %arg1, %c32_i32 : i32
    %c24_i32 = arith.constant 24 : i32
    %16 = arith.subi %15, %c24_i32 : i32
    %17 = vector.broadcast %16 : i32 to vector<56x1xi32>
    %18 = arith.addi %14, %17 : vector<56x1xi32>
    %c0_i32_7 = arith.constant 0 : i32
    %19 = vector.broadcast %c0_i32_7 : i32 to vector<56x1xi32>
    %20 = arith.cmpi sge, %18, %19 : vector<56x1xi32>
    %c80_i32 = arith.constant 80 : i32
    %21 = vector.broadcast %c80_i32 : i32 to vector<56x1xi32>
    %22 = arith.cmpi slt, %18, %21 : vector<56x1xi32>
    %23 = arith.andi %20, %22 : vector<56x1xi1>
    %24 = arith.extui %23 : vector<56x1xi1> to vector<56x1xi32>
    %25 = arith.sitofp %24 : vector<56x1xi32> to vector<56x1xf32>
    %cst = arith.constant 0.000000e+00 : bf16
    %26 = vector.broadcast %cst : bf16 to vector<2x128xbf16>
    %c14 = arith.constant 14 : index
    %c0 = arith.constant 0 : index
    %27 = vector.load %arg11[%c14, %c0] : memref<80x128xbf16, #tpu.memory_space<vmem>>, vector<2x128xbf16>
    tpu.vector_store %arg11[%c14, %c0], %26 {strides = array<i32>} : memref<80x128xbf16, #tpu.memory_space<vmem>>, vector<2x128xbf16>,
    %28 = arith.index_cast %0 : i32 to index
    %c0_8 = arith.constant 0 : index
    %c0_9 = arith.constant 0 : index
    %29 = vector.load %arg8[%28, %c0_8, %c0_9] : memref<2x56x128xf32, #tpu.memory_space<vmem>>, vector<1x56x128xf32>
    %30 = vector.shape_cast %29 : vector<1x56x128xf32> to vector<56x128xf32>
    %cst_10 = arith.constant 0.000000e+00 : f32
    %31 = vector.broadcast %cst_10 : f32 to vector<56x128xf32>
    %32 = arith.cmpf oge, %30, %31 : vector<56x128xf32>
    %cst_11 = arith.constant 1.000000e-01 : f32
    %33 = vector.broadcast %cst_11 : f32 to vector<56x128xf32>
    %34 = arith.mulf %30, %33 : vector<56x128xf32>
    %35 = arith.select %32, %30, %34 : vector<56x128xi1>, vector<56x128xf32>
    %36 = vector.broadcast %25 : vector<56x1xf32> to vector<56x128xf32>
    %37 = arith.mulf %35, %36 : vector<56x128xf32>
    %38 = arith.truncf %37 : vector<56x128xf32> to vector<56x128xbf16>
    %c16 = arith.constant 16 : index
    %c0_12 = arith.constant 0 : index
    %39 = vector.load %arg11[%c16, %c0_12] : memref<80x128xbf16, #tpu.memory_space<vmem>>, vector<56x128xbf16>
    tpu.vector_store %arg11[%c16, %c0_12], %38 {strides = array<i32>} : memref<80x128xbf16, #tpu.memory_space<vmem>>, vector<56x128xbf16>,
    %c14_13 = arith.constant 14 : index
    %c0_14 = arith.constant 0 : index
    %40 = vector.load %arg11[%c14_13, %c0_14] : memref<80x128xbf16, #tpu.memory_space<vmem>>, vector<56x128xbf16>
    %c15 = arith.constant 15 : index
    %c0_15 = arith.constant 0 : index
    %41 = vector.load %arg11[%c15, %c0_15] : memref<80x128xbf16, #tpu.memory_space<vmem>>, vector<56x128xbf16>
    %c16_16 = arith.constant 16 : index
    %c0_17 = arith.constant 0 : index
    %42 = vector.load %arg11[%c16_16, %c0_17] : memref<80x128xbf16, #tpu.memory_space<vmem>>, vector<56x128xbf16>
    %43 = tpu.concatenate %40, %41, %42 in 1 : vector<56x128xbf16>, vector<56x128xbf16>, vector<56x128xbf16> -> vector<56x384xbf16>
    %c0_18 = arith.constant 0 : index
    %c0_19 = arith.constant 0 : index
    %c0_20 = arith.constant 0 : index
    %44 = vector.load %arg3[%c0_18, %c0_19, %c0_20] : memref<3x384x128xbf16, #tpu.memory_space<vmem>>, vector<1x384x128xbf16>
    %45 = vector.shape_cast %44 : vector<1x384x128xbf16> to vector<384x128xbf16>
    %cst_21 = arith.constant dense<0.000000e+00> : vector<56x128xf32>
    %46 = tpu.matmul %43, %45, %cst_21 {dimension_numbers = #tpu.dot_dimension_numbers<[1], [0], [0], [1], [0, 0, 1, 1], [], []>} : vector<56x384xbf16>, vector<384x128xbf16>, vector<56x128xf32> -> vector<56x128xf32>
    %c0_22 = arith.constant 0 : index
    %c0_23 = arith.constant 0 : index
    %c0_24 = arith.constant 0 : index
    %47 = vector.load %arg4[%c0_22, %c0_23, %c0_24] : memref<3x1x128xf32, #tpu.memory_space<vmem>>, vector<1x1x128xf32>
    %48 = vector.shape_cast %47 : vector<1x1x128xf32> to vector<1x128xf32>
    %49 = vector.broadcast %48 : vector<1x128xf32> to vector<56x128xf32>
    %50 = arith.addf %46, %49 : vector<56x128xf32>
    %c0_25 = arith.constant 0 : index
    %c0_26 = arith.constant 0 : index
    %51 = vector.load %arg10[%c0_25, %c0_26] : memref<56x128xf32, #tpu.memory_space<vmem>>, vector<56x128xf32>
    tpu.vector_store %arg10[%c0_25, %c0_26], %50 {strides = array<i32>} : memref<56x128xf32, #tpu.memory_space<vmem>>, vector<56x128xf32>,
    %cst_27 = arith.constant 0.000000e+00 : bf16
    %52 = vector.broadcast %cst_27 : bf16 to vector<2x128xbf16>
    %c14_28 = arith.constant 14 : index
    %c0_29 = arith.constant 0 : index
    %53 = vector.load %arg11[%c14_28, %c0_29] : memref<80x128xbf16, #tpu.memory_space<vmem>>, vector<2x128xbf16>
    tpu.vector_store %arg11[%c14_28, %c0_29], %52 {strides = array<i32>} : memref<80x128xbf16, #tpu.memory_space<vmem>>, vector<2x128xbf16>,
    %c0_30 = arith.constant 0 : index
    %c0_31 = arith.constant 0 : index
    %54 = vector.load %arg10[%c0_30, %c0_31] : memref<56x128xf32, #tpu.memory_space<vmem>>, vector<56x128xf32>
    %cst_32 = arith.constant 0.000000e+00 : f32
    %55 = vector.broadcast %cst_32 : f32 to vector<56x128xf32>
    %56 = arith.cmpf oge, %54, %55 : vector<56x128xf32>
    %cst_33 = arith.constant 1.000000e-01 : f32
    %57 = vector.broadcast %cst_33 : f32 to vector<56x128xf32>
    %58 = arith.mulf %54, %57 : vector<56x128xf32>
    %59 = arith.select %56, %54, %58 : vector<56x128xi1>, vector<56x128xf32>
    %60 = vector.broadcast %25 : vector<56x1xf32> to vector<56x128xf32>
    %61 = arith.mulf %59, %60 : vector<56x128xf32>
    %62 = arith.truncf %61 : vector<56x128xf32> to vector<56x128xbf16>
    %c16_34 = arith.constant 16 : index
    %c0_35 = arith.constant 0 : index
    %63 = vector.load %arg11[%c16_34, %c0_35] : memref<80x128xbf16, #tpu.memory_space<vmem>>, vector<56x128xbf16>
    tpu.vector_store %arg11[%c16_34, %c0_35], %62 {strides = array<i32>} : memref<80x128xbf16, #tpu.memory_space<vmem>>, vector<56x128xbf16>,
    %c14_36 = arith.constant 14 : index
    %c0_37 = arith.constant 0 : index
    %64 = vector.load %arg11[%c14_36, %c0_37] : memref<80x128xbf16, #tpu.memory_space<vmem>>, vector<56x128xbf16>
    %c15_38 = arith.constant 15 : index
    %c0_39 = arith.constant 0 : index
    %65 = vector.load %arg11[%c15_38, %c0_39] : memref<80x128xbf16, #tpu.memory_space<vmem>>, vector<56x128xbf16>
    %c16_40 = arith.constant 16 : index
    %c0_41 = arith.constant 0 : index
    %66 = vector.load %arg11[%c16_40, %c0_41] : memref<80x128xbf16, #tpu.memory_space<vmem>>, vector<56x128xbf16>
    %67 = tpu.concatenate %64, %65, %66 in 1 : vector<56x128xbf16>, vector<56x128xbf16>, vector<56x128xbf16> -> vector<56x384xbf16>
    %c0_42 = arith.constant 0 : index
    %c0_43 = arith.constant 0 : index
    %c0_44 = arith.constant 0 : index
    %68 = vector.load %arg5[%c0_42, %c0_43, %c0_44] : memref<3x384x128xbf16, #tpu.memory_space<vmem>>, vector<1x384x128xbf16>
    %69 = vector.shape_cast %68 : vector<1x384x128xbf16> to vector<384x128xbf16>
    %cst_45 = arith.constant dense<0.000000e+00> : vector<56x128xf32>
    %70 = tpu.matmul %67, %69, %cst_45 {dimension_numbers = #tpu.dot_dimension_numbers<[1], [0], [0], [1], [0, 0, 1, 1], [], []>} : vector<56x384xbf16>, vector<384x128xbf16>, vector<56x128xf32> -> vector<56x128xf32>
    %c0_46 = arith.constant 0 : index
    %c0_47 = arith.constant 0 : index
    %c0_48 = arith.constant 0 : index
    %71 = vector.load %arg6[%c0_46, %c0_47, %c0_48] : memref<3x1x128xf32, #tpu.memory_space<vmem>>, vector<1x1x128xf32>
    %72 = vector.shape_cast %71 : vector<1x1x128xf32> to vector<1x128xf32>
    %73 = vector.broadcast %72 : vector<1x128xf32> to vector<56x128xf32>
    %74 = arith.addf %70, %73 : vector<56x128xf32>
    %c0_49 = arith.constant 0 : index
    %c0_50 = arith.constant 0 : index
    %75 = vector.load %arg10[%c0_49, %c0_50] : memref<56x128xf32, #tpu.memory_space<vmem>>, vector<56x128xf32>
    tpu.vector_store %arg10[%c0_49, %c0_50], %74 {strides = array<i32>} : memref<56x128xf32, #tpu.memory_space<vmem>>, vector<56x128xf32>,
    %c0_51 = arith.constant 0 : index
    %c0_52 = arith.constant 0 : index
    %76 = vector.load %arg10[%c0_51, %c0_52] : memref<56x128xf32, #tpu.memory_space<vmem>>, vector<56x128xf32>
    %77 = arith.index_cast %0 : i32 to index
    %c0_53 = arith.constant 0 : index
    %c0_54 = arith.constant 0 : index
    %78 = vector.load %arg8[%77, %c0_53, %c0_54] : memref<2x56x128xf32, #tpu.memory_space<vmem>>, vector<1x56x128xf32>
    %79 = vector.shape_cast %78 : vector<1x56x128xf32> to vector<56x128xf32>
    %80 = arith.addf %76, %79 : vector<56x128xf32>
    %c0_55 = arith.constant 0 : index
    %c0_56 = arith.constant 0 : index
    %81 = vector.load %arg9[%c0_55, %c0_56] : memref<56x128xf32, #tpu.memory_space<vmem>>, vector<56x128xf32>
    tpu.vector_store %arg9[%c0_55, %c0_56], %80 {strides = array<i32>} : memref<56x128xf32, #tpu.memory_space<vmem>>, vector<56x128xf32>,
    %cst_57 = arith.constant 0.000000e+00 : bf16
    %82 = vector.broadcast %cst_57 : bf16 to vector<6x128xbf16>
    %c10 = arith.constant 10 : index
    %c0_58 = arith.constant 0 : index
    %83 = vector.load %arg11[%c10, %c0_58] : memref<80x128xbf16, #tpu.memory_space<vmem>>, vector<6x128xbf16>
    tpu.vector_store %arg11[%c10, %c0_58], %82 {strides = array<i32>} : memref<80x128xbf16, #tpu.memory_space<vmem>>, vector<6x128xbf16>,
    %c0_59 = arith.constant 0 : index
    %c0_60 = arith.constant 0 : index
    %84 = vector.load %arg9[%c0_59, %c0_60] : memref<56x128xf32, #tpu.memory_space<vmem>>, vector<56x128xf32>
    %cst_61 = arith.constant 0.000000e+00 : f32
    %85 = vector.broadcast %cst_61 : f32 to vector<56x128xf32>
    %86 = arith.cmpf oge, %84, %85 : vector<56x128xf32>
    %cst_62 = arith.constant 1.000000e-01 : f32
    %87 = vector.broadcast %cst_62 : f32 to vector<56x128xf32>
    %88 = arith.mulf %84, %87 : vector<56x128xf32>
    %89 = arith.select %86, %84, %88 : vector<56x128xi1>, vector<56x128xf32>
    %90 = vector.broadcast %25 : vector<56x1xf32> to vector<56x128xf32>
    %91 = arith.mulf %89, %90 : vector<56x128xf32>
    %92 = arith.truncf %91 : vector<56x128xf32> to vector<56x128xbf16>
    %c16_63 = arith.constant 16 : index
    %c0_64 = arith.constant 0 : index
    %93 = vector.load %arg11[%c16_63, %c0_64] : memref<80x128xbf16, #tpu.memory_space<vmem>>, vector<56x128xbf16>
    tpu.vector_store %arg11[%c16_63, %c0_64], %92 {strides = array<i32>} : memref<80x128xbf16, #tpu.memory_space<vmem>>, vector<56x128xbf16>,
    %c10_65 = arith.constant 10 : index
    %c0_66 = arith.constant 0 : index
    %94 = vector.load %arg11[%c10_65, %c0_66] : memref<80x128xbf16, #tpu.memory_space<vmem>>, vector<56x128xbf16>
    %c13 = arith.constant 13 : index
    %c0_67 = arith.constant 0 : index
    %95 = vector.load %arg11[%c13, %c0_67] : memref<80x128xbf16, #tpu.memory_space<vmem>>, vector<56x128xbf16>
    %c16_68 = arith.constant 16 : index
    %c0_69 = arith.constant 0 : index
    %96 = vector.load %arg11[%c16_68, %c0_69] : memref<80x128xbf16, #tpu.memory_space<vmem>>, vector<56x128xbf16>
    %97 = tpu.concatenate %94, %95, %96 in 1 : vector<56x128xbf16>, vector<56x128xbf16>, vector<56x128xbf16> -> vector<56x384xbf16>
    %c1 = arith.constant 1 : index
    %c0_70 = arith.constant 0 : index
    %c0_71 = arith.constant 0 : index
    %98 = vector.load %arg3[%c1, %c0_70, %c0_71] : memref<3x384x128xbf16, #tpu.memory_space<vmem>>, vector<1x384x128xbf16>
    %99 = vector.shape_cast %98 : vector<1x384x128xbf16> to vector<384x128xbf16>
    %cst_72 = arith.constant dense<0.000000e+00> : vector<56x128xf32>
    %100 = tpu.matmul %97, %99, %cst_72 {dimension_numbers = #tpu.dot_dimension_numbers<[1], [0], [0], [1], [0, 0, 1, 1], [], []>} : vector<56x384xbf16>, vector<384x128xbf16>, vector<56x128xf32> -> vector<56x128xf32>
    %c1_73 = arith.constant 1 : index
    %c0_74 = arith.constant 0 : index
    %c0_75 = arith.constant 0 : index
    %101 = vector.load %arg4[%c1_73, %c0_74, %c0_75] : memref<3x1x128xf32, #tpu.memory_space<vmem>>, vector<1x1x128xf32>
    %102 = vector.shape_cast %101 : vector<1x1x128xf32> to vector<1x128xf32>
    %103 = vector.broadcast %102 : vector<1x128xf32> to vector<56x128xf32>
    %104 = arith.addf %100, %103 : vector<56x128xf32>
    %c0_76 = arith.constant 0 : index
    %c0_77 = arith.constant 0 : index
    %105 = vector.load %arg10[%c0_76, %c0_77] : memref<56x128xf32, #tpu.memory_space<vmem>>, vector<56x128xf32>
    tpu.vector_store %arg10[%c0_76, %c0_77], %104 {strides = array<i32>} : memref<56x128xf32, #tpu.memory_space<vmem>>, vector<56x128xf32>,
    %cst_78 = arith.constant 0.000000e+00 : bf16
    %106 = vector.broadcast %cst_78 : bf16 to vector<2x128xbf16>
    %c14_79 = arith.constant 14 : index
    %c0_80 = arith.constant 0 : index
    %107 = vector.load %arg11[%c14_79, %c0_80] : memref<80x128xbf16, #tpu.memory_space<vmem>>, vector<2x128xbf16>
    tpu.vector_store %arg11[%c14_79, %c0_80], %106 {strides = array<i32>} : memref<80x128xbf16, #tpu.memory_space<vmem>>, vector<2x128xbf16>,
    %c0_81 = arith.constant 0 : index
    %c0_82 = arith.constant 0 : index
    %108 = vector.load %arg10[%c0_81, %c0_82] : memref<56x128xf32, #tpu.memory_space<vmem>>, vector<56x128xf32>
    %cst_83 = arith.constant 0.000000e+00 : f32
    %109 = vector.broadcast %cst_83 : f32 to vector<56x128xf32>
    %110 = arith.cmpf oge, %108, %109 : vector<56x128xf32>
    %cst_84 = arith.constant 1.000000e-01 : f32
    %111 = vector.broadcast %cst_84 : f32 to vector<56x128xf32>
    %112 = arith.mulf %108, %111 : vector<56x128xf32>
    %113 = arith.select %110, %108, %112 : vector<56x128xi1>, vector<56x128xf32>
    %114 = vector.broadcast %25 : vector<56x1xf32> to vector<56x128xf32>
    %115 = arith.mulf %113, %114 : vector<56x128xf32>
    %116 = arith.truncf %115 : vector<56x128xf32> to vector<56x128xbf16>
    %c16_85 = arith.constant 16 : index
    %c0_86 = arith.constant 0 : index
    %117 = vector.load %arg11[%c16_85, %c0_86] : memref<80x128xbf16, #tpu.memory_space<vmem>>, vector<56x128xbf16>
    tpu.vector_store %arg11[%c16_85, %c0_86], %116 {strides = array<i32>} : memref<80x128xbf16, #tpu.memory_space<vmem>>, vector<56x128xbf16>,
    %c14_87 = arith.constant 14 : index
    %c0_88 = arith.constant 0 : index
    %118 = vector.load %arg11[%c14_87, %c0_88] : memref<80x128xbf16, #tpu.memory_space<vmem>>, vector<56x128xbf16>
    %c15_89 = arith.constant 15 : index
    %c0_90 = arith.constant 0 : index
    %119 = vector.load %arg11[%c15_89, %c0_90] : memref<80x128xbf16, #tpu.memory_space<vmem>>, vector<56x128xbf16>
    %c16_91 = arith.constant 16 : index
    %c0_92 = arith.constant 0 : index
    %120 = vector.load %arg11[%c16_91, %c0_92] : memref<80x128xbf16, #tpu.memory_space<vmem>>, vector<56x128xbf16>
    %121 = tpu.concatenate %118, %119, %120 in 1 : vector<56x128xbf16>, vector<56x128xbf16>, vector<56x128xbf16> -> vector<56x384xbf16>
    %c1_93 = arith.constant 1 : index
    %c0_94 = arith.constant 0 : index
    %c0_95 = arith.constant 0 : index
    %122 = vector.load %arg5[%c1_93, %c0_94, %c0_95] : memref<3x384x128xbf16, #tpu.memory_space<vmem>>, vector<1x384x128xbf16>
    %123 = vector.shape_cast %122 : vector<1x384x128xbf16> to vector<384x128xbf16>
    %cst_96 = arith.constant dense<0.000000e+00> : vector<56x128xf32>
    %124 = tpu.matmul %121, %123, %cst_96 {dimension_numbers = #tpu.dot_dimension_numbers<[1], [0], [0], [1], [0, 0, 1, 1], [], []>} : vector<56x384xbf16>, vector<384x128xbf16>, vector<56x128xf32> -> vector<56x128xf32>
    %c1_97 = arith.constant 1 : index
    %c0_98 = arith.constant 0 : index
    %c0_99 = arith.constant 0 : index
    %125 = vector.load %arg6[%c1_97, %c0_98, %c0_99] : memref<3x1x128xf32, #tpu.memory_space<vmem>>, vector<1x1x128xf32>
    %126 = vector.shape_cast %125 : vector<1x1x128xf32> to vector<1x128xf32>
    %127 = vector.broadcast %126 : vector<1x128xf32> to vector<56x128xf32>
    %128 = arith.addf %124, %127 : vector<56x128xf32>
    %c0_100 = arith.constant 0 : index
    %c0_101 = arith.constant 0 : index
    %129 = vector.load %arg10[%c0_100, %c0_101] : memref<56x128xf32, #tpu.memory_space<vmem>>, vector<56x128xf32>
    tpu.vector_store %arg10[%c0_100, %c0_101], %128 {strides = array<i32>} : memref<56x128xf32, #tpu.memory_space<vmem>>, vector<56x128xf32>,
    %c0_102 = arith.constant 0 : index
    %c0_103 = arith.constant 0 : index
    %130 = vector.load %arg10[%c0_102, %c0_103] : memref<56x128xf32, #tpu.memory_space<vmem>>, vector<56x128xf32>
    %c0_104 = arith.constant 0 : index
    %c0_105 = arith.constant 0 : index
    %131 = vector.load %arg9[%c0_104, %c0_105] : memref<56x128xf32, #tpu.memory_space<vmem>>, vector<56x128xf32>
    %132 = arith.addf %130, %131 : vector<56x128xf32>
    %c0_106 = arith.constant 0 : index
    %c0_107 = arith.constant 0 : index
    %133 = vector.load %arg9[%c0_106, %c0_107] : memref<56x128xf32, #tpu.memory_space<vmem>>, vector<56x128xf32>
    tpu.vector_store %arg9[%c0_106, %c0_107], %132 {strides = array<i32>} : memref<56x128xf32, #tpu.memory_space<vmem>>, vector<56x128xf32>,
    %cst_108 = arith.constant 0.000000e+00 : bf16
    %134 = vector.broadcast %cst_108 : bf16 to vector<10x128xbf16>
    %c6 = arith.constant 6 : index
    %c0_109 = arith.constant 0 : index
    %135 = vector.load %arg11[%c6, %c0_109] : memref<80x128xbf16, #tpu.memory_space<vmem>>, vector<10x128xbf16>
    tpu.vector_store %arg11[%c6, %c0_109], %134 {strides = array<i32>} : memref<80x128xbf16, #tpu.memory_space<vmem>>, vector<10x128xbf16>,
    %c0_110 = arith.constant 0 : index
    %c0_111 = arith.constant 0 : index
    %136 = vector.load %arg9[%c0_110, %c0_111] : memref<56x128xf32, #tpu.memory_space<vmem>>, vector<56x128xf32>
    %cst_112 = arith.constant 0.000000e+00 : f32
    %137 = vector.broadcast %cst_112 : f32 to vector<56x128xf32>
    %138 = arith.cmpf oge, %136, %137 : vector<56x128xf32>
    %cst_113 = arith.constant 1.000000e-01 : f32
    %139 = vector.broadcast %cst_113 : f32 to vector<56x128xf32>
    %140 = arith.mulf %136, %139 : vector<56x128xf32>
    %141 = arith.select %138, %136, %140 : vector<56x128xi1>, vector<56x128xf32>
    %142 = vector.broadcast %25 : vector<56x1xf32> to vector<56x128xf32>
    %143 = arith.mulf %141, %142 : vector<56x128xf32>
    %144 = arith.truncf %143 : vector<56x128xf32> to vector<56x128xbf16>
    %c16_114 = arith.constant 16 : index
    %c0_115 = arith.constant 0 : index
    %145 = vector.load %arg11[%c16_114, %c0_115] : memref<80x128xbf16, #tpu.memory_space<vmem>>, vector<56x128xbf16>
    tpu.vector_store %arg11[%c16_114, %c0_115], %144 {strides = array<i32>} : memref<80x128xbf16, #tpu.memory_space<vmem>>, vector<56x128xbf16>,
    %c6_116 = arith.constant 6 : index
    %c0_117 = arith.constant 0 : index
    %146 = vector.load %arg11[%c6_116, %c0_117] : memref<80x128xbf16, #tpu.memory_space<vmem>>, vector<56x128xbf16>
    %c11 = arith.constant 11 : index
    %c0_118 = arith.constant 0 : index
    %147 = vector.load %arg11[%c11, %c0_118] : memref<80x128xbf16, #tpu.memory_space<vmem>>, vector<56x128xbf16>
    %c16_119 = arith.constant 16 : index
    %c0_120 = arith.constant 0 : index
    %148 = vector.load %arg11[%c16_119, %c0_120] : memref<80x128xbf16, #tpu.memory_space<vmem>>, vector<56x128xbf16>
    %149 = tpu.concatenate %146, %147, %148 in 1 : vector<56x128xbf16>, vector<56x128xbf16>, vector<56x128xbf16> -> vector<56x384xbf16>
    %c2 = arith.constant 2 : index
    %c0_121 = arith.constant 0 : index
    %c0_122 = arith.constant 0 : index
    %150 = vector.load %arg3[%c2, %c0_121, %c0_122] : memref<3x384x128xbf16, #tpu.memory_space<vmem>>, vector<1x384x128xbf16>
    %151 = vector.shape_cast %150 : vector<1x384x128xbf16> to vector<384x128xbf16>
    %cst_123 = arith.constant dense<0.000000e+00> : vector<56x128xf32>
    %152 = tpu.matmul %149, %151, %cst_123 {dimension_numbers = #tpu.dot_dimension_numbers<[1], [0], [0], [1], [0, 0, 1, 1], [], []>} : vector<56x384xbf16>, vector<384x128xbf16>, vector<56x128xf32> -> vector<56x128xf32>
    %c2_124 = arith.constant 2 : index
    %c0_125 = arith.constant 0 : index
    %c0_126 = arith.constant 0 : index
    %153 = vector.load %arg4[%c2_124, %c0_125, %c0_126] : memref<3x1x128xf32, #tpu.memory_space<vmem>>, vector<1x1x128xf32>
    %154 = vector.shape_cast %153 : vector<1x1x128xf32> to vector<1x128xf32>
    %155 = vector.broadcast %154 : vector<1x128xf32> to vector<56x128xf32>
    %156 = arith.addf %152, %155 : vector<56x128xf32>
    %c0_127 = arith.constant 0 : index
    %c0_128 = arith.constant 0 : index
    %157 = vector.load %arg10[%c0_127, %c0_128] : memref<56x128xf32, #tpu.memory_space<vmem>>, vector<56x128xf32>
    tpu.vector_store %arg10[%c0_127, %c0_128], %156 {strides = array<i32>} : memref<56x128xf32, #tpu.memory_space<vmem>>, vector<56x128xf32>,
    %cst_129 = arith.constant 0.000000e+00 : bf16
    %158 = vector.broadcast %cst_129 : bf16 to vector<2x128xbf16>
    %c14_130 = arith.constant 14 : index
    %c0_131 = arith.constant 0 : index
    %159 = vector.load %arg11[%c14_130, %c0_131] : memref<80x128xbf16, #tpu.memory_space<vmem>>, vector<2x128xbf16>
    tpu.vector_store %arg11[%c14_130, %c0_131], %158 {strides = array<i32>} : memref<80x128xbf16, #tpu.memory_space<vmem>>, vector<2x128xbf16>,
    %c0_132 = arith.constant 0 : index
    %c0_133 = arith.constant 0 : index
    %160 = vector.load %arg10[%c0_132, %c0_133] : memref<56x128xf32, #tpu.memory_space<vmem>>, vector<56x128xf32>
    %cst_134 = arith.constant 0.000000e+00 : f32
    %161 = vector.broadcast %cst_134 : f32 to vector<56x128xf32>
    %162 = arith.cmpf oge, %160, %161 : vector<56x128xf32>
    %cst_135 = arith.constant 1.000000e-01 : f32
    %163 = vector.broadcast %cst_135 : f32 to vector<56x128xf32>
    %164 = arith.mulf %160, %163 : vector<56x128xf32>
    %165 = arith.select %162, %160, %164 : vector<56x128xi1>, vector<56x128xf32>
    %166 = vector.broadcast %25 : vector<56x1xf32> to vector<56x128xf32>
    %167 = arith.mulf %165, %166 : vector<56x128xf32>
    %168 = arith.truncf %167 : vector<56x128xf32> to vector<56x128xbf16>
    %c16_136 = arith.constant 16 : index
    %c0_137 = arith.constant 0 : index
    %169 = vector.load %arg11[%c16_136, %c0_137] : memref<80x128xbf16, #tpu.memory_space<vmem>>, vector<56x128xbf16>
    tpu.vector_store %arg11[%c16_136, %c0_137], %168 {strides = array<i32>} : memref<80x128xbf16, #tpu.memory_space<vmem>>, vector<56x128xbf16>,
    %c14_138 = arith.constant 14 : index
    %c0_139 = arith.constant 0 : index
    %170 = vector.load %arg11[%c14_138, %c0_139] : memref<80x128xbf16, #tpu.memory_space<vmem>>, vector<56x128xbf16>
    %c15_140 = arith.constant 15 : index
    %c0_141 = arith.constant 0 : index
    %171 = vector.load %arg11[%c15_140, %c0_141] : memref<80x128xbf16, #tpu.memory_space<vmem>>, vector<56x128xbf16>
    %c16_142 = arith.constant 16 : index
    %c0_143 = arith.constant 0 : index
    %172 = vector.load %arg11[%c16_142, %c0_143] : memref<80x128xbf16, #tpu.memory_space<vmem>>, vector<56x128xbf16>
    %173 = tpu.concatenate %170, %171, %172 in 1 : vector<56x128xbf16>, vector<56x128xbf16>, vector<56x128xbf16> -> vector<56x384xbf16>
    %c2_144 = arith.constant 2 : index
    %c0_145 = arith.constant 0 : index
    %c0_146 = arith.constant 0 : index
    %174 = vector.load %arg5[%c2_144, %c0_145, %c0_146] : memref<3x384x128xbf16, #tpu.memory_space<vmem>>, vector<1x384x128xbf16>
    %175 = vector.shape_cast %174 : vector<1x384x128xbf16> to vector<384x128xbf16>
    %cst_147 = arith.constant dense<0.000000e+00> : vector<56x128xf32>
    %176 = tpu.matmul %173, %175, %cst_147 {dimension_numbers = #tpu.dot_dimension_numbers<[1], [0], [0], [1], [0, 0, 1, 1], [], []>} : vector<56x384xbf16>, vector<384x128xbf16>, vector<56x128xf32> -> vector<56x128xf32>
    %c2_148 = arith.constant 2 : index
    %c0_149 = arith.constant 0 : index
    %c0_150 = arith.constant 0 : index
    %177 = vector.load %arg6[%c2_148, %c0_149, %c0_150] : memref<3x1x128xf32, #tpu.memory_space<vmem>>, vector<1x1x128xf32>
    %178 = vector.shape_cast %177 : vector<1x1x128xf32> to vector<1x128xf32>
    %179 = vector.broadcast %178 : vector<1x128xf32> to vector<56x128xf32>
    %180 = arith.addf %176, %179 : vector<56x128xf32>
    %c0_151 = arith.constant 0 : index
    %c0_152 = arith.constant 0 : index
    %181 = vector.load %arg10[%c0_151, %c0_152] : memref<56x128xf32, #tpu.memory_space<vmem>>, vector<56x128xf32>
    tpu.vector_store %arg10[%c0_151, %c0_152], %180 {strides = array<i32>} : memref<56x128xf32, #tpu.memory_space<vmem>>, vector<56x128xf32>,
    %c0_153 = arith.constant 0 : index
    %c0_154 = arith.constant 0 : index
    %182 = vector.load %arg10[%c0_153, %c0_154] : memref<56x128xf32, #tpu.memory_space<vmem>>, vector<56x128xf32>
    %c0_155 = arith.constant 0 : index
    %c0_156 = arith.constant 0 : index
    %183 = vector.load %arg9[%c0_155, %c0_156] : memref<56x128xf32, #tpu.memory_space<vmem>>, vector<56x128xf32>
    %184 = arith.addf %182, %183 : vector<56x128xf32>
    %c0_157 = arith.constant 0 : index
    %c0_158 = arith.constant 0 : index
    %185 = vector.load %arg9[%c0_157, %c0_158] : memref<56x128xf32, #tpu.memory_space<vmem>>, vector<56x128xf32>
    tpu.vector_store %arg9[%c0_157, %c0_158], %184 {strides = array<i32>} : memref<56x128xf32, #tpu.memory_space<vmem>>, vector<56x128xf32>,
    %c24 = arith.constant 24 : index
    %c0_159 = arith.constant 0 : index
    %186 = vector.load %arg9[%c24, %c0_159] : memref<56x128xf32, #tpu.memory_space<vmem>>, vector<32x128xf32>
    %c0_160 = arith.constant 0 : index
    %c0_161 = arith.constant 0 : index
    %c0_162 = arith.constant 0 : index
    %187 = vector.load %arg7[%c0_160, %c0_161, %c0_162] : memref<1x32x128xf32, #tpu.memory_space<vmem>>, vector<1x32x128xf32>
    %188 = vector.shape_cast %187 : vector<1x32x128xf32> to vector<32x128xf32>
    %189 = vector.shape_cast %186 : vector<32x128xf32> to vector<1x32x128xf32>
    tpu.vector_store %arg7[%c0_160, %c0_161, %c0_162], %189 {strides = array<i32>} : memref<1x32x128xf32, #tpu.memory_space<vmem>>, vector<1x32x128xf32>,
    return
  }
  func.func @transform_1(%arg0: i32, %arg1: i32) -> (i32, i32, i32) {
    %c0_i32 = arith.constant 0 : i32
    %c0_i32_0 = arith.constant 0 : i32
    %c0_i32_1 = arith.constant 0 : i32
    %c0_i32_2 = arith.constant 0 : i32
    return %c0_i32, %c0_i32_0, %c0_i32_1 : i32, i32, i32
  }
  func.func @transform_2(%arg0: i32, %arg1: i32) -> (i32, i32, i32) {
    %c0_i32 = arith.constant 0 : i32
    %c0_i32_0 = arith.constant 0 : i32
    %c0_i32_1 = arith.constant 0 : i32
    %c0_i32_2 = arith.constant 0 : i32
    return %c0_i32, %c0_i32_0, %c0_i32_1 : i32, i32, i32
  }
  func.func @transform_3(%arg0: i32, %arg1: i32) -> (i32, i32, i32) {
    %c0_i32 = arith.constant 0 : i32
    %c0_i32_0 = arith.constant 0 : i32
    %c0_i32_1 = arith.constant 0 : i32
    %c0_i32_2 = arith.constant 0 : i32
    return %c0_i32, %c0_i32_0, %c0_i32_1 : i32, i32, i32
  }
  func.func @transform_4(%arg0: i32, %arg1: i32) -> (i32, i32, i32) {
    %c0_i32 = arith.constant 0 : i32
    %c0_i32_0 = arith.constant 0 : i32
    %c0_i32_1 = arith.constant 0 : i32
    %c0_i32_2 = arith.constant 0 : i32
    return %c0_i32, %c0_i32_0, %c0_i32_1 : i32, i32, i32
  }
  func.func @transform_5(%arg0: i32, %arg1: i32) -> (i32, i32, i32) {
    %c0_i32 = arith.constant 0 : i32
    %c0_i32_0 = arith.constant 0 : i32
    return %arg0, %arg1, %c0_i32 : i32, i32, i32
  }
}

</mosaic_0001>

<llo_original>
// kernel: tpu_custom_call.1
$region0: #{tpu_custom_call.1}
  #allocation0 [shape = 'u32[]', space=smem, size = 0x4, offset = 0x4, fixed_abs, tag = 'smem constant byte address 0x4 - core index']
  #allocation1 [shape = 'u32[144,128]{1,0:T(1,128)}', space=vmem, size = 0x12000, scoped, tag = 'internal scratch']
  #allocation2 [shape = 'f32[2,56,128]{2,1,0:T(8,128)}', space=vmem, size = 0xe000, scoped, tag = 'scratch operand']
  #allocation3 [shape = 'f32[56,128]{1,0:T(8,128)}', space=vmem, size = 0x7000, scoped, tag = 'scratch operand']
  #allocation4 [shape = 'f32[56,128]{1,0:T(8,128)}', space=vmem, size = 0x7000, scoped, tag = 'scratch operand']
  #allocation5 [shape = 'bf16[80,128]{1,0:T(16,128)(2,1)}', space=vmem, size = 0x5000, scoped, tag = 'scratch operand']
  #allocation6 [shape = 's32[2]{0}', space=sflag, size = 0x8, scoped, tag = 'scratch operand']
  #allocation13 [shape = 's32[]', space=sflag, size = 0x4, offset = 0, fixed_abs, tag = 'sflag constant byte address 0x0 - dummy sync flag']
  #allocation14 [shape = 's32[]', space=sflag, size = 0x4, offset = 0, fixed_abs, tag = 'sflag constant byte address 0x0 - dummy sync flag']
  #allocation15 [shape = 'u32[]', space=smem, size = 0x4, offset = 0x44, fixed_abs, tag = 'smem constant byte address 0x44 - assertion arg 0']
  #allocation16 [shape = 'u32[]', space=smem, size = 0x4, offset = 0x48, fixed_abs, tag = 'smem constant byte address 0x48 - assertion arg 1']
  #allocation17 [shape = 's32[]', space=sflag, size = 0x4, offset = 0, fixed_abs, tag = 'sflag constant byte address 0x0 - dummy sync flag']
  #allocation18 [shape = 's32[]', space=sflag, size = 0x4, offset = 0, fixed_abs, tag = 'sflag constant byte address 0x0 - dummy sync flag']
  %s0 = inlined_call_operand.hbm [shape: f32[2,120,128], index: 0, kind: input, shape index: {}]
  %s1 = inlined_call_operand.hbm [shape: bf16[3,384,128], index: 1, kind: input, shape index: {}]
  %s2 = inlined_call_operand.vmem [shape: f32[3,1,128], index: 2, kind: input, shape index: {}]
  %s3 = inlined_call_operand.hbm [shape: bf16[3,384,128], index: 3, kind: input, shape index: {}]
  %s4 = inlined_call_operand.vmem [shape: f32[3,1,128], index: 4, kind: input, shape index: {}]
  %s5 = inlined_call_operand.hbm [shape: f32[2,96,128], index: 5, kind: output, shape index: {}]
  %s6 = sld [smem:[#allocation0]]
  $region73: #{tpu_custom_call.1} parent=0
    _
  %s8 = ssub.s32 1, %s6
  %s9 = scalar_select 0, %s8, %s6
  $region1: #{tpu_custom_call.1} parent=0
    #allocation7 [shape = 'u8[294912]{0}', space=vmem, size = 0x48000, scoped, tag = 'input window, operand 1, single buffered']
    #allocation8 [shape = 's32[2]{0}', space=sflag, size = 0x8, scoped, tag = 'scoped memory for tpu_custom_call.1']
    #allocation9 [shape = 's32[2]{0}', space=sflag, size = 0x8, scoped, tag = 'scoped memory for tpu_custom_call.1']
    #allocation10 [shape = 'u8[294912]{0}', space=vmem, size = 0x48000, scoped, tag = 'input window, operand 3, single buffered']
    #allocation11 [shape = 's32[1]{0}', space=sflag, size = 0x4, scoped, tag = 'scoped memory for tpu_custom_call.1']
    #allocation12 [shape = 'u8[32768]{0}', space=vmem, size = 0x8000, scoped, tag = 'output window, operand 0']
    %10 = vsyncpa [#allocation8], 0
    %11 = vsyncpa [#allocation11], 0
    %12 = vsyncpa [#allocation9], 0
    %s13 = scalar_lea.sflag [#allocation9], 1
    %14 = vsyncpa %s13, 0
    loop: start=0, step=1, limit=8
    $region2: #{tpu_custom_call.1} parent=1 // loop_pre_header
      _
    $region3: #{tpu_custom_call.1} parent=1 // loop_header
      %s16 = sphi 0, %s20
      %p17 = scmp.ge.s32.totalorder %s16, 8
      %s23 = sphi 0, %s35
      %s24 = sphi 0, %s31
      %s25 = sphi 0, %s23
      %s26 = sphi 0, %s24
      %s27 = sphi 0, %s25
      %s28 = sphi 0, %s26
      %s36 = sphi 0, %s36
      %s38 = sphi 0, %s36
      %s39 = sphi 0, %s38
      %s53 = sphi 0, %s39
      %s57 = sphi 0, %s57
      %s59 = sphi 0, %s57
      %s60 = sphi 0, %s59
      %s74 = sphi 0, %s60
      %s78 = sphi 0, %s78
      %s80 = sphi 0, %s78
      %s81 = sphi 0, %s80
      %s95 = sphi 0, %s81
      %s99 = sphi 0, %s99
      %s101 = sphi 0, %s99
      %s102 = sphi 0, %s101
      %s116 = sphi 0, %s102
      %s124 = sphi 0, %s126
      %s127 = sphi 0, %s124
      %s128 = sphi 0, %s127
      %s144 = sphi 0, %s128
    $region4: #{tpu_custom_call.1} parent=1 // loop_header_branch
      %19 = sbr.rel (%p17) target = $region8
    $region5: #{tpu_custom_call.1} parent=1 // loop_body
      %s21 = ssub.s32 %s16, 1
      %s22 = ssub.s32 %s16, 2
      %s29 = sadd.s32 1, %s24
      %p30 = scmp.ge.s32.totalorder %s29, 3
      %s31 = scalar_select %p30, 0, %s29
      %s32 = sadd.s32 1, %s23
      %s33 = scalar_select %p30, %s32, %s23
      %p34 = scmp.ge.s32.totalorder %s33, 2
      %s35 = scalar_select %p34, 0, %s33
      %s37 = sadd.s32 %s36, 1
      %p40 = scmp.eq.s32.totalorder %s16, 5
      %p41 = scmp.ne.s32.totalorder %s36, %s38
      %p42 = scmp.eq.s32.totalorder %s16, 0
      %p43 = por %p41, %p42
      %p44 = scmp.ne.s32.totalorder %s36, %s38
      %p45 = scmp.eq.s32.totalorder %s21, 5
      %p46 = por %p44, %p45
      %p47 = scmp.ne.s32.totalorder %s38, %s39
      %p48 = scmp.eq.s32.totalorder %s21, 0
      %p49 = por %p47, %p48
      %p50 = scmp.ne.s32.totalorder %s38, %s39
      %p51 = scmp.eq.s32.totalorder %s22, 5
      %p52 = por %p50, %p51
      %p54 = scmp.ne.s32.totalorder %s39, %s53
      %p55 = scmp.eq.s32.totalorder %s22, 0
      %p56 = por %p54, %p55
      %s58 = sadd.s32 %s57, 1
      %p61 = scmp.eq.s32.totalorder %s16, 5
      %p62 = scmp.ne.s32.totalorder %s57, %s59
      %p63 = scmp.eq.s32.totalorder %s16, 0
      %p64 = por %p62, %p63
      %p65 = scmp.ne.s32.totalorder %s57, %s59
      %p66 = scmp.eq.s32.totalorder %s21, 5
      %p67 = por %p65, %p66
      %p68 = scmp.ne.s32.totalorder %s59, %s60
      %p69 = scmp.eq.s32.totalorder %s21, 0
      %p70 = por %p68, %p69
      %p71 = scmp.ne.s32.totalorder %s59, %s60
      %p72 = scmp.eq.s32.totalorder %s22, 5
      %p73 = por %p71, %p72
      %p75 = scmp.ne.s32.totalorder %s60, %s74
      %p76 = scmp.eq.s32.totalorder %s22, 0
      %p77 = por %p75, %p76
      %s79 = sadd.s32 %s78, 1
      %p82 = scmp.eq.s32.totalorder %s16, 5
      %p83 = scmp.ne.s32.totalorder %s78, %s80
      %p84 = scmp.eq.s32.totalorder %s16, 0
      %p85 = por %p83, %p84
      %p86 = scmp.ne.s32.totalorder %s78, %s80
      %p87 = scmp.eq.s32.totalorder %s21, 5
      %p88 = por %p86, %p87
      %p89 = scmp.ne.s32.totalorder %s80, %s81
      %p90 = scmp.eq.s32.totalorder %s21, 0
      %p91 = por %p89, %p90
      %p92 = scmp.ne.s32.totalorder %s80, %s81
      %p93 = scmp.eq.s32.totalorder %s22, 5
      %p94 = por %p92, %p93
      %p96 = scmp.ne.s32.totalorder %s81, %s95
      %p97 = scmp.eq.s32.totalorder %s22, 0
      %p98 = por %p96, %p97
      %s100 = sadd.s32 %s99, 1
      %p103 = scmp.eq.s32.totalorder %s16, 5
      %p104 = scmp.ne.s32.totalorder %s99, %s101
      %p105 = scmp.eq.s32.totalorder %s16, 0
      %p106 = por %p104, %p105
      %p107 = scmp.ne.s32.totalorder %s99, %s101
      %p108 = scmp.eq.s32.totalorder %s21, 5
      %p109 = por %p107, %p108
      %p110 = scmp.ne.s32.totalorder %s101, %s102
      %p111 = scmp.eq.s32.totalorder %s21, 0
      %p112 = por %p110, %p111
      %p113 = scmp.ne.s32.totalorder %s101, %s102
      %p114 = scmp.eq.s32.totalorder %s22, 5
      %p115 = por %p113, %p114
      %p117 = scmp.ne.s32.totalorder %s102, %s116
      %p118 = scmp.eq.s32.totalorder %s22, 0
      %p119 = por %p117, %p118
      %s120 = ssub.s32 %s23, %s35
      %s121 = ssub.s32 %s24, %s31
      %s122 = sor.u32 %s120, %s121
      %p123 = scmp.eq.s32.totalorder %s122, 0
      %s125 = sadd.s32 %s124, 1
      %s126 = scalar_select %p123, %s124, %s125
      %p129 = pneg %p123
      %p130 = scmp.eq.s32.totalorder %s16, 5
      %p131 = por %p129, %p130
      %p132 = scmp.ne.s32.totalorder %s124, %s127
      %p133 = scmp.eq.s32.totalorder %s16, 0
      %p134 = por %p132, %p133
      %p135 = scmp.ne.s32.totalorder %s124, %s127
      %p136 = scmp.eq.s32.totalorder %s21, 5
      %p137 = por %p135, %p136
      %p138 = scmp.ne.s32.totalorder %s127, %s128
      %p139 = scmp.eq.s32.totalorder %s21, 0
      %p140 = por %p138, %p139
      %p141 = scmp.ne.s32.totalorder %s127, %s128
      %p142 = scmp.eq.s32.totalorder %s22, 5
      %p143 = por %p141, %p142
      %p145 = scmp.ne.s32.totalorder %s128, %s144
      %p146 = scmp.eq.s32.totalorder %s22, 0
      %p147 = por %p145, %p146
      %p148 = scmp.le.s32.totalorder 1, %s16
      %p149 = scmp.lt.s32.totalorder %s16, 7
      %p150 = pnand %p148, %p149
      %p151 = pneg %p150
      // Predicated region
      $region9: #{tpu_custom_call.1} parent=5 // pred_check
        _
      $region10: #{tpu_custom_call.1} parent=5 // pred_check_branch
        %153 = sbr.rel (%p150) target = $region12
      $region11: #{tpu_custom_call.1} parent=5 // pred_region
        %s154 = ssub.s32 %s16, 1
        // Predicated region
        $region13: #{tpu_custom_call.1} parent=11 // pred_check
          %p155 = pneg %p49
        $region14: #{tpu_custom_call.1} parent=11 // pred_check_branch
          %157 = sbr.rel (%p155) target = $region16
        $region15: #{tpu_custom_call.1} parent=11 // pred_region
          %s159 = ssub.s32 9216, 9216
          %160 = vsyncadd [#allocation8], %s159
          %s161 = sshll.u32 [#allocation7], 4
          %s162 = int_to_ptr.vmem [resolvable:$true] %s161
          %167 = dma.hbm_to_vmem [thread:$0]  %s1, 9216, %s162, [#allocation8], 64, 64, 4
        $region16: #{tpu_custom_call.1} parent=11 // pred_fallthru
          _
        // Predicated region
        $region17: #{tpu_custom_call.1} parent=11 // pred_check
          %p168 = pneg %p70
        $region18: #{tpu_custom_call.1} parent=11 // pred_check_branch
          %170 = sbr.rel (%p168) target = $region20
        $region19: #{tpu_custom_call.1} parent=11 // pred_region
          _
        $region20: #{tpu_custom_call.1} parent=11 // pred_fallthru
          _
        // Predicated region
        $region21: #{tpu_custom_call.1} parent=11 // pred_check
          %p171 = pneg %p91
        $region22: #{tpu_custom_call.1} parent=11 // pred_check_branch
          %173 = sbr.rel (%p171) target = $region24
        $region23: #{tpu_custom_call.1} parent=11 // pred_region
          %s175 = ssub.s32 9216, 9216
          %176 = vsyncadd [#allocation11], %s175
          %s177 = sshll.u32 [#allocation10], 4
          %s178 = int_to_ptr.vmem [resolvable:$true] %s177
          %183 = dma.hbm_to_vmem [thread:$0]  %s3, 9216, %s178, [#allocation11], 64, 64, 4
        $region24: #{tpu_custom_call.1} parent=11 // pred_fallthru
          _
        // Predicated region
        $region25: #{tpu_custom_call.1} parent=11 // pred_check
          %p184 = pneg %p112
        $region26: #{tpu_custom_call.1} parent=11 // pred_check_branch
          %186 = sbr.rel (%p184) target = $region28
        $region27: #{tpu_custom_call.1} parent=11 // pred_region
          _
        $region28: #{tpu_custom_call.1} parent=11 // pred_fallthru
          _
      $region12: #{tpu_custom_call.1} parent=5 // pred_fallthru
        _
      %p187 = scmp.lt.s32.totalorder %s16, 6
      // Predicated region
      $region29: #{tpu_custom_call.1} parent=5 // pred_check
        %p188 = pneg %p187
      $region30: #{tpu_custom_call.1} parent=5 // pred_check_branch
        %190 = sbr.rel (%p188) target = $region32
      $region31: #{tpu_custom_call.1} parent=5 // pred_region
        _
      $region32: #{tpu_custom_call.1} parent=5 // pred_fallthru
        _
      %p191 = scmp.le.s32.totalorder 1, %s16
      %p192 = scmp.lt.s32.totalorder %s16, 7
      %p193 = pnand %p191, %p192
      %p194 = pneg %p193
      // Predicated region
      $region33: #{tpu_custom_call.1} parent=5 // pred_check
        _
      $region34: #{tpu_custom_call.1} parent=5 // pred_check_branch
        %196 = sbr.rel (%p193) target = $region36
      $region35: #{tpu_custom_call.1} parent=5 // pred_region
        %s197 = ssub.s32 %s16, 1
        // Predicated region
        $region37: #{tpu_custom_call.1} parent=35 // pred_check
          %p198 = pneg %p49
        $region38: #{tpu_custom_call.1} parent=35 // pred_check_branch
          %200 = sbr.rel (%p198) target = $region40
        $region39: #{tpu_custom_call.1} parent=35 // pred_region
          %201 = dma.done [#allocation8], 9216
        $region40: #{tpu_custom_call.1} parent=35 // pred_fallthru
          _
        // Predicated region
        $region41: #{tpu_custom_call.1} parent=35 // pred_check
          %p202 = pneg %p91
        $region42: #{tpu_custom_call.1} parent=35 // pred_check_branch
          %204 = sbr.rel (%p202) target = $region44
        $region43: #{tpu_custom_call.1} parent=35 // pred_region
          %205 = dma.done [#allocation11], 9216
        $region44: #{tpu_custom_call.1} parent=35 // pred_fallthru
          _
        %p206 = pneg %p49
        %p207 = pneg %p46
        %p208 = pneg %p70
        %p209 = pneg %p67
        %p210 = pneg %p91
        %p211 = pneg %p88
        %p212 = pneg %p112
        %p213 = pneg %p109
        %p214 = pneg %p140
        %p215 = pneg %p137
        %s216 = sand.u32 %s127, 1
        %s217 = scalar_lea.sflag [#allocation9], %s216
        %s218 = sand.u32 %s127, 1
        %s219 = smul.addr %s218, 32
        %s220 = scalar_lea.vmem [#allocation12], %s219
        %s221 = smul.u32 4, %s26
        %s223 = sand.u32 %s26, 1
        %p224 = scmp.eq.s32.totalorder %s26, 0
        // Predicated region
        $region45: #{tpu_custom_call.1} parent=35 // pred_check
          %p225 = pneg %p224
        $region46: #{tpu_custom_call.1} parent=35 // pred_check_branch
          %227 = sbr.rel (%p225) target = $region48
        $region47: #{tpu_custom_call.1} parent=35 // pred_region
          %s228 = smul.u32 %s25, 120
          %s229 = smul.addr %s228, 16
          %s230 = scalar_lea.hbm %s0, %s229
          // Predicated region
          $region49: #{tpu_custom_call.1} parent=47 // pred_check
            _
          $region50: #{tpu_custom_call.1} parent=47 // pred_check_branch
            %232 = sbr.rel target = $region52
          $region51: #{tpu_custom_call.1} parent=47 // pred_region
            %233 = sst [smem:[#allocation15]] [#allocation14]
            %234 = sst [smem:[#allocation16]] [#allocation13]
          $region52: #{tpu_custom_call.1} parent=47 // pred_fallthru
            _
          %236 = shalt.err (0)
          %s238 = sshll.u32 [#allocation2], 4
          %s239 = int_to_ptr.vmem [resolvable:$true] %s238
          %241 = dma.hbm_to_vmem [thread:$0]  %s230, 896, %s239, [#allocation6]
        $region48: #{tpu_custom_call.1} parent=35 // pred_fallthru
          _
        %s242 = smul.u32 %s223, 56
        %s243 = scalar_lea.vmem [#allocation2], %s242
        %s244 = scalar_lea.sflag [#allocation6], %s223
        %s245 = smul.u32 56, 1
        %s246 = sshll.u32 %s245, 4
        %247 = dma.done %s244, %s246
        %s248 = sadd.s32 %s26, 1
        %p249 = scmp.lt.s32.totalorder %s248, 3
        // Predicated region
        $region53: #{tpu_custom_call.1} parent=35 // pred_check
          %p250 = pneg %p249
        $region54: #{tpu_custom_call.1} parent=35 // pred_check_branch
          %252 = sbr.rel (%p250) target = $region56
        $region55: #{tpu_custom_call.1} parent=35 // pred_region
          %s253 = ssub.s32 1, %s223
          %s254 = smul.u32 %s248, 32
          %s255 = smul.u32 %s25, 120
          %s256 = sadd.s32 %s254, %s255
          %s257 = smul.addr %s256, 16
          %s258 = scalar_lea.hbm %s0, %s257
          %s259 = smul.u32 %s253, 56
          %s260 = scalar_lea.vmem [#allocation2], %s259
          %s261 = scalar_lea.sflag [#allocation6], %s253
          // Predicated region
          $region57: #{tpu_custom_call.1} parent=55 // pred_check
            _
          $region58: #{tpu_custom_call.1} parent=55 // pred_check_branch
            %263 = sbr.rel target = $region60
          $region59: #{tpu_custom_call.1} parent=55 // pred_region
            %264 = sst [smem:[#allocation15]] [#allocation18]
            %265 = sst [smem:[#allocation16]] [#allocation17]
          $region60: #{tpu_custom_call.1} parent=55 // pred_fallthru
            _
          %267 = shalt.err (0)
          %s269 = sshll.u32 %s260, 4
          %s270 = int_to_ptr.vmem [resolvable:$true] %s269
          %272 = dma.hbm_to_vmem [thread:$0]  %s258, 896, %s270, %s261
        $region56: #{tpu_custom_call.1} parent=35 // pred_fallthru
          _
        %v273 = vlaneseq
        %v274 = vshrl.u32 %v273, 7
        %v275 = vadd.s32 %v274, 8
        %v276 = vadd.s32 %v274, 16
        %v277 = vadd.s32 %v274, 24
        %v278 = vadd.s32 %v274, 32
        %v279 = vadd.s32 %v274, 40
        %v280 = vadd.s32 %v274, 48
        %s281 = smul.u32 %s26, 32
        %s282 = ssub.s32 %s281, 24
        %v283 = vstv %s282
        %v284 = vadd.s32 %v274, %v283
        %v285 = vadd.s32 %v275, %v283
        %v286 = vadd.s32 %v276, %v283
        %v287 = vadd.s32 %v277, %v283
        %v288 = vadd.s32 %v278, %v283
        %v289 = vadd.s32 %v279, %v283
        %v290 = vadd.s32 %v280, %v283
        %vm291 = vcmp.ge.s32.totalorder %v284, 0
        %vm292 = vcmp.ge.s32.totalorder %v285, 0
        %vm293 = vcmp.ge.s32.totalorder %v286, 0
        %vm294 = vcmp.ge.s32.totalorder %v287, 0
        %vm295 = vcmp.ge.s32.totalorder %v288, 0
        %vm296 = vcmp.ge.s32.totalorder %v289, 0
        %vm297 = vcmp.ge.s32.totalorder %v290, 0
        %vm298 = vcmp.lt.s32.totalorder %v284, 80
        %vm299 = vcmp.lt.s32.totalorder %v285, 80
        %vm300 = vcmp.lt.s32.totalorder %v286, 80
        %vm301 = vcmp.lt.s32.totalorder %v287, 80
        %vm302 = vcmp.lt.s32.totalorder %v288, 80
        %vm303 = vcmp.lt.s32.totalorder %v289, 80
        %vm304 = vcmp.lt.s32.totalorder %v290, 80
        %vm305 = vmand %vm291, %vm298
        %vm306 = vmand %vm292, %vm299
        %vm307 = vmand %vm293, %vm300
        %vm308 = vmand %vm294, %vm301
        %vm309 = vmand %vm295, %vm302
        %vm310 = vmand %vm296, %vm303
        %vm311 = vmand %vm297, %vm304
        %v312 = vsel %vm305, 1, 0
        %v313 = vsel %vm306, 1, 0
        %v314 = vsel %vm307, 1, 0
        %v315 = vsel %vm308, 1, 0
        %v316 = vsel %vm309, 1, 0
        %v317 = vsel %vm310, 1, 0
        %v318 = vsel %vm311, 1, 0
        %v319 = vcvt.s32.f32 %v312
        %v320 = vcvt.s32.f32 %v313
        %v321 = vcvt.s32.f32 %v314
        %v322 = vcvt.s32.f32 %v315
        %v323 = vcvt.s32.f32 %v316
        %v324 = vcvt.s32.f32 %v317
        %v325 = vcvt.s32.f32 %v318
        %326 = vst [vmem:[#allocation5] sm:$0x80] 0
        %v327 = vld [vmem:[%s243] sm:$0xff]
        %v328 = vld [vmem:[%s243 + $0x8] sm:$0xff]
        %v329 = vld [vmem:[%s243 + $0x10] sm:$0xff]
        %v330 = vld [vmem:[%s243 + $0x18] sm:$0xff]
        %v331 = vld [vmem:[%s243 + $0x20] sm:$0xff]
        %v332 = vld [vmem:[%s243 + $0x28] sm:$0xff]
        %v333 = vld [vmem:[%s243 + $0x30] sm:$0xff]
        %vm334 = vcmp.ge.f32.partialorder %v327, 0.0
        %vm335 = vcmp.ge.f32.partialorder %v328, 0.0
        %vm336 = vcmp.ge.f32.partialorder %v329, 0.0
        %vm337 = vcmp.ge.f32.partialorder %v330, 0.0
        %vm338 = vcmp.ge.f32.partialorder %v331, 0.0
        %vm339 = vcmp.ge.f32.partialorder %v332, 0.0
        %vm340 = vcmp.ge.f32.partialorder %v333, 0.0
        %v341 = vmul.f32 %v327, 0.1
        %v342 = vmul.f32 %v328, 0.1
        %v343 = vmul.f32 %v329, 0.1
        %v344 = vmul.f32 %v330, 0.1
        %v345 = vmul.f32 %v331, 0.1
        %v346 = vmul.f32 %v332, 0.1
        %v347 = vmul.f32 %v333, 0.1
        %v348 = vsel %vm334, %v327, %v341
        %v349 = vsel %vm335, %v328, %v342
        %v350 = vsel %vm336, %v329, %v343
        %v351 = vsel %vm337, %v330, %v344
        %v352 = vsel %vm338, %v331, %v345
        %v353 = vsel %vm339, %v332, %v346
        %v354 = vsel %vm340, %v333, %v347
        %v355 = vmul.f32 %v348, %v319
        %v356 = vmul.f32 %v349, %v320
        %v357 = vmul.f32 %v350, %v321
        %v358 = vmul.f32 %v351, %v322
        %v359 = vmul.f32 %v352, %v323
        %v360 = vmul.f32 %v353, %v324
        %v361 = vmul.f32 %v354, %v325
        %v362 = vpack.c.bf16 %v356, %v355
        %v363 = vpack.c.bf16 %v358, %v357
        %v364 = vpack.c.bf16 %v360, %v359
        %v365 = vpack.c.bf16 %v361, %v361
        %366 = vst [vmem:[#allocation5 + $0x8] sm:$0xff] %v362
        %367 = vst [vmem:[#allocation5 + $0x10] sm:$0xff] %v363
        %368 = vst [vmem:[#allocation5 + $0x18] sm:$0xff] %v364
        %369 = vst [vmem:[#allocation5 + $0x20] sm:$0xf] %v365
        %v370 = vld [vmem:[#allocation5] sm:$0x80]
        %v371 = vld [vmem:[#allocation5 + $0x8] sm:$0xff]
        %v372 = vld [vmem:[#allocation5 + $0x10] sm:$0xff]
        %v373 = vld [vmem:[#allocation5 + $0x18] sm:$0xff]
        %v374 = vld [vmem:[#allocation5 + $0x20] sm:$0x7]
        %v375 = vld [vmem:[#allocation5 + $0x20] sm:$0xf]
        %vm376 = vsmask.f32 7424
        %v378 = vshrl.u32 %v370, 16
        %v381 = vshll.u32 %v371, 16
        %v383 = vrot.slane %v381, 1
        %v384 = vsel %vm376, %v378, %v383
        %v385 = vshrl.u32 %v371, 16
        %v387 = vor.u32 %v385, %v383
        %v389 = vshll.u32 %v372, 16
        %v391 = vrot.slane %v389, 1
        %v392 = vsel %vm376, %v387, %v391
        %v393 = vshrl.u32 %v372, 16
        %v395 = vor.u32 %v393, %v391
        %v397 = vshll.u32 %v373, 16
        %v399 = vrot.slane %v397, 1
        %v400 = vsel %vm376, %v395, %v399
        %v401 = vshrl.u32 %v373, 16
        %v403 = vor.u32 %v401, %v399
        %v405 = vshll.u32 %v375, 16
        %v407 = vrot.slane %v405, 1
        %v408 = vsel %vm376, %v403, %v407
        %v409 = vshrl.u32 %v375, 16
        %v411 = vor.u32 %v409, %v407
        %vm416 = vcmask 1046528
        %v417 = vrot.slane %v371, 1
        %v418 = vrot.slane %v372, 1
        %v419 = vsel %vm416, %v417, %v418
        %v420 = vrot.slane %v373, 1
        %v421 = vsel %vm416, %v418, %v420
        %v422 = vrot.slane %v375, 1
        %v423 = vsel %vm416, %v420, %v422
        %v424 = vld [vmem:[#allocation7] sm:$0xf]
        %v425 = vld [vmem:[#allocation7 + $0x4] sm:$0xf]
        %v426 = vld [vmem:[#allocation7 + $0x8] sm:$0xf]
        %v427 = vld [vmem:[#allocation7 + $0xc] sm:$0xf]
        %v428 = vld [vmem:[#allocation7 + $0x10] sm:$0xf]
        %v429 = vld [vmem:[#allocation7 + $0x14] sm:$0xf]
        %v430 = vld [vmem:[#allocation7 + $0x18] sm:$0xf]
        %v431 = vld [vmem:[#allocation7 + $0x1c] sm:$0xf]
        %v432 = vld [vmem:[#allocation7 + $0x20] sm:$0xf]
        %v433 = vld [vmem:[#allocation7 + $0x24] sm:$0xf]
        %v434 = vld [vmem:[#allocation7 + $0x28] sm:$0xf]
        %v435 = vld [vmem:[#allocation7 + $0x2c] sm:$0xf]
        %v436 = vld [vmem:[#allocation7 + $0x30] sm:$0xf]
        %v437 = vld [vmem:[#allocation7 + $0x34] sm:$0xf]
        %v438 = vld [vmem:[#allocation7 + $0x38] sm:$0xf]
        %v439 = vld [vmem:[#allocation7 + $0x3c] sm:$0xf]
        %v440 = vld [vmem:[#allocation7 + $0x40] sm:$0xf]
        %v441 = vld [vmem:[#allocation7 + $0x44] sm:$0xf]
        %v442 = vld [vmem:[#allocation7 + $0x48] sm:$0xf]
        %v443 = vld [vmem:[#allocation7 + $0x4c] sm:$0xf]
        %v444 = vld [vmem:[#allocation7 + $0x50] sm:$0xf]
        %v445 = vld [vmem:[#allocation7 + $0x54] sm:$0xf]
        %v446 = vld [vmem:[#allocation7 + $0x58] sm:$0xf]
        %v447 = vld [vmem:[#allocation7 + $0x5c] sm:$0xf]
        %v448 = vld [vmem:[#allocation7 + $0x60] sm:$0xf]
        %v449 = vld [vmem:[#allocation7 + $0x64] sm:$0xf]
        %v450 = vld [vmem:[#allocation7 + $0x68] sm:$0xf]
        %v451 = vld [vmem:[#allocation7 + $0x6c] sm:$0xf]
        %v452 = vld [vmem:[#allocation7 + $0x70] sm:$0xf]
        %v453 = vld [vmem:[#allocation7 + $0x74] sm:$0xf]
        %v454 = vld [vmem:[#allocation7 + $0x78] sm:$0xf]
        %v455 = vld [vmem:[#allocation7 + $0x7c] sm:$0xf]
        %v456 = vld [vmem:[#allocation7 + $0x80] sm:$0xf]
        %v457 = vld [vmem:[#allocation7 + $0x84] sm:$0xf]
        %v458 = vld [vmem:[#allocation7 + $0x88] sm:$0xf]
        %v459 = vld [vmem:[#allocation7 + $0x8c] sm:$0xf]
        %v460 = vld [vmem:[#allocation7 + $0x90] sm:$0xf]
        %v461 = vld [vmem:[#allocation7 + $0x94] sm:$0xf]
        %v462 = vld [vmem:[#allocation7 + $0x98] sm:$0xf]
        %v463 = vld [vmem:[#allocation7 + $0x9c] sm:$0xf]
        %v464 = vld [vmem:[#allocation7 + $0xa0] sm:$0xf]
        %v465 = vld [vmem:[#allocation7 + $0xa4] sm:$0xf]
        %v466 = vld [vmem:[#allocation7 + $0xa8] sm:$0xf]
        %v467 = vld [vmem:[#allocation7 + $0xac] sm:$0xf]
        %v468 = vld [vmem:[#allocation7 + $0xb0] sm:$0xf]
        %v469 = vld [vmem:[#allocation7 + $0xb4] sm:$0xf]
        %v470 = vld [vmem:[#allocation7 + $0xb8] sm:$0xf]
        %v471 = vld [vmem:[#allocation7 + $0xbc] sm:$0xf]
        %v472 = vld [vmem:[%s2] sm:$0x1]
        %v474 = vlaneseq
        %v475 = vshrl.u32 %v474, 7
        %v476 = vsub.s32 0, %v475
        %v477 = vrot.slane %v472, %v476
        %vm481 = vcmask 1040384
        %v482 = vrot.slane %v370, 7
        %v483 = vrot.slane %v371, 7
        %v484 = vsel %vm481, %v482, %v483
        %v485 = vrot.slane %v384, 7
        %v486 = vrot.slane %v392, 7
        %v487 = vsel %vm481, %v485, %v486
        %v488 = vrot.slane %v417, 7
        %v489 = vrot.slane %v419, 7
        %v490 = vsel %vm481, %v488, %v489
        %v491 = vrot.slane %v372, 7
        %v492 = vsel %vm481, %v483, %v491
        %v493 = vrot.slane %v400, 7
        %v494 = vsel %vm481, %v486, %v493
        %v495 = vrot.slane %v421, 7
        %v496 = vsel %vm481, %v489, %v495
        %v497 = vrot.slane %v373, 7
        %v498 = vsel %vm481, %v491, %v497
        %v499 = vrot.slane %v408, 7
        %v500 = vsel %vm481, %v493, %v499
        %v501 = vrot.slane %v423, 7
        %v502 = vsel %vm481, %v495, %v501
        %v503 = vrot.slane %v374, 7
        %v504 = vsel %vm481, %v497, %v503
        %v505 = vrot.slane %v411, 7
        %v506 = vsel %vm481, %v499, %v505
        %v507 = vrot.slane %v422, 7
        %v508 = vsel %vm481, %v501, %v507
        %v569 = vunpack.c.l.b16 %v424
        %v570 = vunpack.c.l.b16 %v425
        %v571 = vunpack.c.l.b16 %v426
        %v572 = vunpack.c.l.b16 %v427
        %v573 = vunpack.c.l.b16 %v428
        %v574 = vunpack.c.l.b16 %v429
        %v575 = vunpack.c.l.b16 %v430
        %v576 = vunpack.c.l.b16 %v431
        %v577 = vunpack.c.l.b16 %v432
        %v578 = vunpack.c.l.b16 %v433
        %v579 = vunpack.c.l.b16 %v434
        %v580 = vunpack.c.l.b16 %v435
        %v581 = vunpack.c.l.b16 %v436
        %v582 = vunpack.c.l.b16 %v437
        %v583 = vunpack.c.l.b16 %v438
        %v584 = vunpack.c.l.b16 %v439
        %v585 = vunpack.c.l.b16 %v440
        %v586 = vunpack.c.l.b16 %v441
        %v587 = vunpack.c.l.b16 %v442
        %v588 = vunpack.c.l.b16 %v443
        %v589 = vunpack.c.l.b16 %v444
        %v590 = vunpack.c.l.b16 %v445
        %v591 = vunpack.c.l.b16 %v446
        %v592 = vunpack.c.l.b16 %v447
        %v593 = vunpack.c.l.b16 %v448
        %v594 = vunpack.c.l.b16 %v449
        %v595 = vunpack.c.l.b16 %v450
        %v596 = vunpack.c.l.b16 %v451
        %v597 = vunpack.c.l.b16 %v452
        %v598 = vunpack.c.l.b16 %v453
        %v599 = vunpack.c.l.b16 %v454
        %v600 = vunpack.c.l.b16 %v455
        %v601 = vunpack.c.l.b16 %v456
        %v602 = vunpack.c.l.b16 %v457
        %v603 = vunpack.c.l.b16 %v458
        %v604 = vunpack.c.l.b16 %v459
        %v605 = vunpack.c.l.b16 %v460
        %v606 = vunpack.c.l.b16 %v461
        %v607 = vunpack.c.l.b16 %v462
        %v608 = vunpack.c.l.b16 %v463
        %v609 = vunpack.c.l.b16 %v464
        %v610 = vunpack.c.l.b16 %v465
        %v611 = vunpack.c.l.b16 %v466
        %v612 = vunpack.c.l.b16 %v467
        %v613 = vunpack.c.l.b16 %v468
        %v614 = vunpack.c.l.b16 %v469
        %v615 = vunpack.c.l.b16 %v470
        %v616 = vunpack.c.l.b16 %v471
        %v617 = vpack.c.b16 %v570, %v569
        %v618 = vpack.c.b16 %v572, %v571
        %v619 = vpack.c.b16 %v574, %v573
        %v620 = vpack.c.b16 %v576, %v575
        %v621 = vpack.c.b16 %v578, %v577
        %v622 = vpack.c.b16 %v580, %v579
        %v623 = vpack.c.b16 %v582, %v581
        %v624 = vpack.c.b16 %v584, %v583
        %v625 = vpack.c.b16 %v586, %v585
        %v626 = vpack.c.b16 %v588, %v587
        %v627 = vpack.c.b16 %v590, %v589
        %v628 = vpack.c.b16 %v592, %v591
        %v629 = vpack.c.b16 %v594, %v593
        %v630 = vpack.c.b16 %v596, %v595
        %v631 = vpack.c.b16 %v598, %v597
        %v632 = vpack.c.b16 %v600, %v599
        %v633 = vpack.c.b16 %v602, %v601
        %v634 = vpack.c.b16 %v604, %v603
        %v635 = vpack.c.b16 %v606, %v605
        %v636 = vpack.c.b16 %v608, %v607
        %v637 = vpack.c.b16 %v610, %v609
        %v638 = vpack.c.b16 %v612, %v611
        %v639 = vpack.c.b16 %v614, %v613
        %v640 = vpack.c.b16 %v616, %v615
        %665 = vmatprep.subr.bf16.mxu0 0
        %666 = vmatpush1.bf16.msra.mxu0 %v617
        %667 = vmatprep.subr.bf16.mxu0 0
        %668 = vmatpush1.bf16.msra.mxu0 %v618
        %669 = vmatprep.subr.bf16.mxu0 0
        %670 = vmatpush1.bf16.msra.mxu0 %v619
        %671 = vmatprep.subr.bf16.mxu0 0
        %672 = vmatpush1.bf16.msra.mxu0 %v620
        %673 = vmatprep.subr.bf16.mxu0 0
        %674 = vmatpush1.bf16.msra.mxu0 %v621
        %675 = vmatprep.subr.bf16.mxu0 0
        %676 = vmatpush1.bf16.msra.mxu0 %v622
        %677 = vmatprep.subr.bf16.mxu0 0
        %678 = vmatpush1.bf16.msra.mxu0 %v623
        %679 = vmatprep.subr.bf16.mxu0 0
        %680 = vmatpush1.bf16.msra.mxu0 %v624
        %681 = vmatprep.subr.bf16.mxu0 0
        %682 = vmatpush1.bf16.msra.mxu0 %v625
        %683 = vmatprep.subr.bf16.mxu0 0
        %684 = vmatpush1.bf16.msra.mxu0 %v626
        %685 = vmatprep.subr.bf16.mxu0 0
        %686 = vmatpush1.bf16.msra.mxu0 %v627
        %687 = vmatprep.subr.bf16.mxu0 0
        %688 = vmatpush1.bf16.msra.mxu0 %v628
        %689 = vmatprep.subr.bf16.mxu0 0
        %690 = vmatpush1.bf16.msra.mxu0 %v629
        %691 = vmatprep.subr.bf16.mxu0 0
        %692 = vmatpush1.bf16.msra.mxu0 %v630
        %693 = vmatprep.subr.bf16.mxu0 0
        %694 = vmatpush1.bf16.msra.mxu0 %v631
        %695 = vmatprep.subr.bf16.mxu0 0
        %696 = vmatpush1.bf16.msra.mxu0 %v632
        %697 = vmatprep.mubr.bf16.mxu0 %v487
        %698 = vmatmul.mubr.bf16.gmra.mrb[0].mxu0 %v484
        %v699 = vpop.f32.mrb[0].mxu0
        %v700 = vadd.f32 %v477, %v699
        %v701 = vpop.f32.mrb[0].mxu0
        %v702 = vpop.f32.mrb[0].mxu0
        %v703 = vadd.f32 %v477, %v702
        %v704 = vpop.f32.mrb[0].mxu0
        %705 = vmatprep.mubr.bf16.mxu0 %v494
        %706 = vmatmul.mubr.bf16.gmra.mrb[0].mxu0 %v492
        %v707 = vpop.f32.mrb[0].mxu0
        %v708 = vadd.f32 %v477, %v707
        %v709 = vpop.f32.mrb[0].mxu0
        %v710 = vpop.f32.mrb[0].mxu0
        %v711 = vadd.f32 %v477, %v710
        %v712 = vpop.f32.mrb[0].mxu0
        %713 = vmatprep.mubr.bf16.mxu0 %v500
        %714 = vmatmul.mubr.bf16.gmra.mrb[0].mxu0 %v498
        %v715 = vpop.f32.mrb[0].mxu0
        %v716 = vadd.f32 %v477, %v715
        %v717 = vpop.f32.mrb[0].mxu0
        %v718 = vpop.f32.mrb[0].mxu0
        %v719 = vadd.f32 %v477, %v718
        %v720 = vpop.f32.mrb[0].mxu0
        %721 = vmatprep.mubr.bf16.mxu0 %v506
        %722 = vmatmul.mubr.bf16.gmra.mrb[0].mxu0 %v504
        %v723 = vpop.f32.mrb[0].mxu0
        %v724 = vadd.f32 %v477, %v723
        %v725 = vpop.f32.mrb[0].mxu0
        %v726 = vpop.f32.mrb[0].mxu0
        %v727 = vpop.f32.mrb[0].mxu0
        %728 = vdwg.mxu0
        %729 = vmatprep.subr.bf16.mxu0 0
        %730 = vmatpush1.bf16.msra.mxu0 %v633
        %731 = vmatprep.subr.bf16.mxu0 0
        %732 = vmatpush1.bf16.msra.mxu0 %v634
        %733 = vmatprep.subr.bf16.mxu0 0
        %734 = vmatpush1.bf16.msra.mxu0 %v635
        %735 = vmatprep.subr.bf16.mxu0 0
        %736 = vmatpush1.bf16.msra.mxu0 %v636
        %737 = vmatprep.subr.bf16.mxu0 0
        %738 = vmatpush1.bf16.msra.mxu0 %v637
        %739 = vmatprep.subr.bf16.mxu0 0
        %740 = vmatpush1.bf16.msra.mxu0 %v638
        %741 = vmatprep.subr.bf16.mxu0 0
        %742 = vmatpush1.bf16.msra.mxu0 %v639
        %743 = vmatprep.subr.bf16.mxu0 0
        %744 = vmatpush1.bf16.msra.mxu0 %v640
        %745 = vmatprep.subr.bf16.mxu0 0
        %746 = vmatpush1.bf16.msra.mxu0 0
        %747 = vmatprep.subr.bf16.mxu0 0
        %748 = vmatpush1.bf16.msra.mxu0 0
        %749 = vmatprep.subr.bf16.mxu0 0
        %750 = vmatpush1.bf16.msra.mxu0 0
        %751 = vmatprep.subr.bf16.mxu0 0
        %752 = vmatpush1.bf16.msra.mxu0 0
        %753 = vmatprep.subr.bf16.mxu0 0
        %754 = vmatpush1.bf16.msra.mxu0 0
        %755 = vmatprep.subr.bf16.mxu0 0
        %756 = vmatpush1.bf16.msra.mxu0 0
        %757 = vmatprep.subr.bf16.mxu0 0
        %758 = vmatpush1.bf16.msra.mxu0 0
        %759 = vmatprep.subr.bf16.mxu0 0
        %760 = vmatpush1.bf16.msra.mxu0 0
        %761 = vmatprep.mubr.bf16.mxu0 0
        %762 = vmatmul.mubr.bf16.gmra.mrb[0].mxu0 %v490
        %v763 = vpop.f32.mrb[0].mxu0
        %v764 = vadd.f32 %v700, %v763
        %v765 = vpop.f32.mrb[0].mxu0
        %v766 = vpop.f32.mrb[0].mxu0
        %v767 = vadd.f32 %v703, %v766
        %v768 = vpop.f32.mrb[0].mxu0
        %769 = vmatprep.mubr.bf16.mxu0 0
        %770 = vmatmul.mubr.bf16.gmra.mrb[0].mxu0 %v496
        %v771 = vpop.f32.mrb[0].mxu0
        %v772 = vadd.f32 %v708, %v771
        %v773 = vpop.f32.mrb[0].mxu0
        %v774 = vpop.f32.mrb[0].mxu0
        %v775 = vadd.f32 %v711, %v774
        %v776 = vpop.f32.mrb[0].mxu0
        %777 = vmatprep.mubr.bf16.mxu0 0
        %778 = vmatmul.mubr.bf16.gmra.mrb[0].mxu0 %v502
        %v779 = vpop.f32.mrb[0].mxu0
        %v780 = vadd.f32 %v716, %v779
        %v781 = vpop.f32.mrb[0].mxu0
        %v782 = vpop.f32.mrb[0].mxu0
        %v783 = vadd.f32 %v719, %v782
        %v784 = vpop.f32.mrb[0].mxu0
        %785 = vmatprep.mubr.bf16.mxu0 0
        %786 = vmatmul.mubr.bf16.gmra.mrb[0].mxu0 %v508
        %v787 = vpop.f32.mrb[0].mxu0
        %v788 = vadd.f32 %v724, %v787
        %v789 = vpop.f32.mrb[0].mxu0
        %v790 = vpop.f32.mrb[0].mxu0
        %v791 = vpop.f32.mrb[0].mxu0
        %792 = vdwg.mxu0
        %793 = vst [vmem:[#allocation4] sm:$0xff] %v764
        %794 = vst [vmem:[#allocation4 + $0x8] sm:$0xff] %v767
        %795 = vst [vmem:[#allocation4 + $0x10] sm:$0xff] %v772
        %796 = vst [vmem:[#allocation4 + $0x18] sm:$0xff] %v775
        %797 = vst [vmem:[#allocation4 + $0x20] sm:$0xff] %v780
        %798 = vst [vmem:[#allocation4 + $0x28] sm:$0xff] %v783
        %799 = vst [vmem:[#allocation4 + $0x30] sm:$0xff] %v788
        %800 = vst [vmem:[#allocation5] sm:$0x80] 0
        %v801 = vld [vmem:[#allocation4] sm:$0xff]
        %v802 = vld [vmem:[#allocation4 + $0x8] sm:$0xff]
        %v803 = vld [vmem:[#allocation4 + $0x10] sm:$0xff]
        %v804 = vld [vmem:[#allocation4 + $0x18] sm:$0xff]
        %v805 = vld [vmem:[#allocation4 + $0x20] sm:$0xff]
        %v806 = vld [vmem:[#allocation4 + $0x28] sm:$0xff]
        %v807 = vld [vmem:[#allocation4 + $0x30] sm:$0xff]
        %vm808 = vcmp.ge.f32.partialorder %v801, 0.0
        %vm809 = vcmp.ge.f32.partialorder %v802, 0.0
        %vm810 = vcmp.ge.f32.partialorder %v803, 0.0
        %vm811 = vcmp.ge.f32.partialorder %v804, 0.0
        %vm812 = vcmp.ge.f32.partialorder %v805, 0.0
        %vm813 = vcmp.ge.f32.partialorder %v806, 0.0
        %vm814 = vcmp.ge.f32.partialorder %v807, 0.0
        %v815 = vmul.f32 %v801, 0.1
        %v816 = vmul.f32 %v802, 0.1
        %v817 = vmul.f32 %v803, 0.1
        %v818 = vmul.f32 %v804, 0.1
        %v819 = vmul.f32 %v805, 0.1
        %v820 = vmul.f32 %v806, 0.1
        %v821 = vmul.f32 %v807, 0.1
        %v822 = vsel %vm808, %v801, %v815
        %v823 = vsel %vm809, %v802, %v816
        %v824 = vsel %vm810, %v803, %v817
        %v825 = vsel %vm811, %v804, %v818
        %v826 = vsel %vm812, %v805, %v819
        %v827 = vsel %vm813, %v806, %v820
        %v828 = vsel %vm814, %v807, %v821
        %v829 = vmul.f32 %v822, %v319
        %v830 = vmul.f32 %v823, %v320
        %v831 = vmul.f32 %v824, %v321
        %v832 = vmul.f32 %v825, %v322
        %v833 = vmul.f32 %v826, %v323
        %v834 = vmul.f32 %v827, %v324
        %v835 = vmul.f32 %v828, %v325
        %v836 = vpack.c.bf16 %v830, %v829
        %v837 = vpack.c.bf16 %v832, %v831
        %v838 = vpack.c.bf16 %v834, %v833
        %v839 = vpack.c.bf16 %v835, %v835
        %840 = vst [vmem:[#allocation5 + $0x8] sm:$0xff] %v836
        %841 = vst [vmem:[#allocation5 + $0x10] sm:$0xff] %v837
        %842 = vst [vmem:[#allocation5 + $0x18] sm:$0xff] %v838
        %843 = vst [vmem:[#allocation5 + $0x20] sm:$0xf] %v839
        %v844 = vld [vmem:[#allocation5] sm:$0x80]
        %v845 = vld [vmem:[#allocation5 + $0x8] sm:$0xff]
        %v846 = vld [vmem:[#allocation5 + $0x10] sm:$0xff]
        %v847 = vld [vmem:[#allocation5 + $0x18] sm:$0xff]
        %v848 = vld [vmem:[#allocation5 + $0x20] sm:$0x7]
        %v849 = vld [vmem:[#allocation5 + $0x20] sm:$0xf]
        %v851 = vshrl.u32 %v844, 16
        %v854 = vshll.u32 %v845, 16
        %v856 = vrot.slane %v854, 1
        %v857 = vsel %vm376, %v851, %v856
        %v858 = vshrl.u32 %v845, 16
        %v860 = vor.u32 %v858, %v856
        %v862 = vshll.u32 %v846, 16
        %v864 = vrot.slane %v862, 1
        %v865 = vsel %vm376, %v860, %v864
        %v866 = vshrl.u32 %v846, 16
        %v868 = vor.u32 %v866, %v864
        %v870 = vshll.u32 %v847, 16
        %v872 = vrot.slane %v870, 1
        %v873 = vsel %vm376, %v868, %v872
        %v874 = vshrl.u32 %v847, 16
        %v876 = vor.u32 %v874, %v872
        %v878 = vshll.u32 %v849, 16
        %v880 = vrot.slane %v878, 1
        %v881 = vsel %vm376, %v876, %v880
        %v882 = vshrl.u32 %v849, 16
        %v884 = vor.u32 %v882, %v880
        %v889 = vrot.slane %v845, 1
        %v890 = vrot.slane %v846, 1
        %v891 = vsel %vm416, %v889, %v890
        %v892 = vrot.slane %v847, 1
        %v893 = vsel %vm416, %v890, %v892
        %v894 = vrot.slane %v849, 1
        %v895 = vsel %vm416, %v892, %v894
        %v896 = vld [vmem:[#allocation10] sm:$0xf]
        %v897 = vld [vmem:[#allocation10 + $0x4] sm:$0xf]
        %v898 = vld [vmem:[#allocation10 + $0x8] sm:$0xf]
        %v899 = vld [vmem:[#allocation10 + $0xc] sm:$0xf]
        %v900 = vld [vmem:[#allocation10 + $0x10] sm:$0xf]
        %v901 = vld [vmem:[#allocation10 + $0x14] sm:$0xf]
        %v902 = vld [vmem:[#allocation10 + $0x18] sm:$0xf]
        %v903 = vld [vmem:[#allocation10 + $0x1c] sm:$0xf]
        %v904 = vld [vmem:[#allocation10 + $0x20] sm:$0xf]
        %v905 = vld [vmem:[#allocation10 + $0x24] sm:$0xf]
        %v906 = vld [vmem:[#allocation10 + $0x28] sm:$0xf]
        %v907 = vld [vmem:[#allocation10 + $0x2c] sm:$0xf]
        %v908 = vld [vmem:[#allocation10 + $0x30] sm:$0xf]
        %v909 = vld [vmem:[#allocation10 + $0x34] sm:$0xf]
        %v910 = vld [vmem:[#allocation10 + $0x38] sm:$0xf]
        %v911 = vld [vmem:[#allocation10 + $0x3c] sm:$0xf]
        %v912 = vld [vmem:[#allocation10 + $0x40] sm:$0xf]
        %v913 = vld [vmem:[#allocation10 + $0x44] sm:$0xf]
        %v914 = vld [vmem:[#allocation10 + $0x48] sm:$0xf]
        %v915 = vld [vmem:[#allocation10 + $0x4c] sm:$0xf]
        %v916 = vld [vmem:[#allocation10 + $0x50] sm:$0xf]
        %v917 = vld [vmem:[#allocation10 + $0x54] sm:$0xf]
        %v918 = vld [vmem:[#allocation10 + $0x58] sm:$0xf]
        %v919 = vld [vmem:[#allocation10 + $0x5c] sm:$0xf]
        %v920 = vld [vmem:[#allocation10 + $0x60] sm:$0xf]
        %v921 = vld [vmem:[#allocation10 + $0x64] sm:$0xf]
        %v922 = vld [vmem:[#allocation10 + $0x68] sm:$0xf]
        %v923 = vld [vmem:[#allocation10 + $0x6c] sm:$0xf]
        %v924 = vld [vmem:[#allocation10 + $0x70] sm:$0xf]
        %v925 = vld [vmem:[#allocation10 + $0x74] sm:$0xf]
        %v926 = vld [vmem:[#allocation10 + $0x78] sm:$0xf]
        %v927 = vld [vmem:[#allocation10 + $0x7c] sm:$0xf]
        %v928 = vld [vmem:[#allocation10 + $0x80] sm:$0xf]
        %v929 = vld [vmem:[#allocation10 + $0x84] sm:$0xf]
        %v930 = vld [vmem:[#allocation10 + $0x88] sm:$0xf]
        %v931 = vld [vmem:[#allocation10 + $0x8c] sm:$0xf]
        %v932 = vld [vmem:[#allocation10 + $0x90] sm:$0xf]
        %v933 = vld [vmem:[#allocation10 + $0x94] sm:$0xf]
        %v934 = vld [vmem:[#allocation10 + $0x98] sm:$0xf]
        %v935 = vld [vmem:[#allocation10 + $0x9c] sm:$0xf]
        %v936 = vld [vmem:[#allocation10 + $0xa0] sm:$0xf]
        %v937 = vld [vmem:[#allocation10 + $0xa4] sm:$0xf]
        %v938 = vld [vmem:[#allocation10 + $0xa8] sm:$0xf]
        %v939 = vld [vmem:[#allocation10 + $0xac] sm:$0xf]
        %v940 = vld [vmem:[#allocation10 + $0xb0] sm:$0xf]
        %v941 = vld [vmem:[#allocation10 + $0xb4] sm:$0xf]
        %v942 = vld [vmem:[#allocation10 + $0xb8] sm:$0xf]
        %v943 = vld [vmem:[#allocation10 + $0xbc] sm:$0xf]
        %v944 = vld [vmem:[%s4] sm:$0x1]
        %v946 = vlaneseq
        %v947 = vshrl.u32 %v946, 7
        %v948 = vsub.s32 0, %v947
        %v949 = vrot.slane %v944, %v948
        %v953 = vrot.slane %v844, 7
        %v954 = vrot.slane %v845, 7
        %v955 = vsel %vm481, %v953, %v954
        %v956 = vrot.slane %v857, 7
        %v957 = vrot.slane %v865, 7
        %v958 = vsel %vm481, %v956, %v957
        %v959 = vrot.slane %v889, 7
        %v960 = vrot.slane %v891, 7
        %v961 = vsel %vm481, %v959, %v960
        %v962 = vrot.slane %v846, 7
        %v963 = vsel %vm481, %v954, %v962
        %v964 = vrot.slane %v873, 7
        %v965 = vsel %vm481, %v957, %v964
        %v966 = vrot.slane %v893, 7
        %v967 = vsel %vm481, %v960, %v966
        %v968 = vrot.slane %v847, 7
        %v969 = vsel %vm481, %v962, %v968
        %v970 = vrot.slane %v881, 7
        %v971 = vsel %vm481, %v964, %v970
        %v972 = vrot.slane %v895, 7
        %v973 = vsel %vm481, %v966, %v972
        %v974 = vrot.slane %v848, 7
        %v975 = vsel %vm481, %v968, %v974
        %v976 = vrot.slane %v884, 7
        %v977 = vsel %vm481, %v970, %v976
        %v978 = vrot.slane %v894, 7
        %v979 = vsel %vm481, %v972, %v978
        %v1040 = vunpack.c.l.b16 %v896
        %v1041 = vunpack.c.l.b16 %v897
        %v1042 = vunpack.c.l.b16 %v898
        %v1043 = vunpack.c.l.b16 %v899
        %v1044 = vunpack.c.l.b16 %v900
        %v1045 = vunpack.c.l.b16 %v901
        %v1046 = vunpack.c.l.b16 %v902
        %v1047 = vunpack.c.l.b16 %v903
        %v1048 = vunpack.c.l.b16 %v904
        %v1049 = vunpack.c.l.b16 %v905
        %v1050 = vunpack.c.l.b16 %v906
        %v1051 = vunpack.c.l.b16 %v907
        %v1052 = vunpack.c.l.b16 %v908
        %v1053 = vunpack.c.l.b16 %v909
        %v1054 = vunpack.c.l.b16 %v910
        %v1055 = vunpack.c.l.b16 %v911
        %v1056 = vunpack.c.l.b16 %v912
        %v1057 = vunpack.c.l.b16 %v913
        %v1058 = vunpack.c.l.b16 %v914
        %v1059 = vunpack.c.l.b16 %v915
        %v1060 = vunpack.c.l.b16 %v916
        %v1061 = vunpack.c.l.b16 %v917
        %v1062 = vunpack.c.l.b16 %v918
        %v1063 = vunpack.c.l.b16 %v919
        %v1064 = vunpack.c.l.b16 %v920
        %v1065 = vunpack.c.l.b16 %v921
        %v1066 = vunpack.c.l.b16 %v922
        %v1067 = vunpack.c.l.b16 %v923
        %v1068 = vunpack.c.l.b16 %v924
        %v1069 = vunpack.c.l.b16 %v925
        %v1070 = vunpack.c.l.b16 %v926
        %v1071 = vunpack.c.l.b16 %v927
        %v1072 = vunpack.c.l.b16 %v928
        %v1073 = vunpack.c.l.b16 %v929
        %v1074 = vunpack.c.l.b16 %v930
        %v1075 = vunpack.c.l.b16 %v931
        %v1076 = vunpack.c.l.b16 %v932
        %v1077 = vunpack.c.l.b16 %v933
        %v1078 = vunpack.c.l.b16 %v934
        %v1079 = vunpack.c.l.b16 %v935
        %v1080 = vunpack.c.l.b16 %v936
        %v1081 = vunpack.c.l.b16 %v937
        %v1082 = vunpack.c.l.b16 %v938
        %v1083 = vunpack.c.l.b16 %v939
        %v1084 = vunpack.c.l.b16 %v940
        %v1085 = vunpack.c.l.b16 %v941
        %v1086 = vunpack.c.l.b16 %v942
        %v1087 = vunpack.c.l.b16 %v943
        %v1088 = vpack.c.b16 %v1041, %v1040
        %v1089 = vpack.c.b16 %v1043, %v1042
        %v1090 = vpack.c.b16 %v1045, %v1044
        %v1091 = vpack.c.b16 %v1047, %v1046
        %v1092 = vpack.c.b16 %v1049, %v1048
        %v1093 = vpack.c.b16 %v1051, %v1050
        %v1094 = vpack.c.b16 %v1053, %v1052
        %v1095 = vpack.c.b16 %v1055, %v1054
        %v1096 = vpack.c.b16 %v1057, %v1056
        %v1097 = vpack.c.b16 %v1059, %v1058
        %v1098 = vpack.c.b16 %v1061, %v1060
        %v1099 = vpack.c.b16 %v1063, %v1062
        %v1100 = vpack.c.b16 %v1065, %v1064
        %v1101 = vpack.c.b16 %v1067, %v1066
        %v1102 = vpack.c.b16 %v1069, %v1068
        %v1103 = vpack.c.b16 %v1071, %v1070
        %v1104 = vpack.c.b16 %v1073, %v1072
        %v1105 = vpack.c.b16 %v1075, %v1074
        %v1106 = vpack.c.b16 %v1077, %v1076
        %v1107 = vpack.c.b16 %v1079, %v1078
        %v1108 = vpack.c.b16 %v1081, %v1080
        %v1109 = vpack.c.b16 %v1083, %v1082
        %v1110 = vpack.c.b16 %v1085, %v1084
        %v1111 = vpack.c.b16 %v1087, %v1086
        %1136 = vmatprep.subr.bf16.mxu0 0
        %1137 = vmatpush1.bf16.msra.mxu0 %v1088
        %1138 = vmatprep.subr.bf16.mxu0 0
        %1139 = vmatpush1.bf16.msra.mxu0 %v1089
        %1140 = vmatprep.subr.bf16.mxu0 0
        %1141 = vmatpush1.bf16.msra.mxu0 %v1090
        %1142 = vmatprep.subr.bf16.mxu0 0
        %1143 = vmatpush1.bf16.msra.mxu0 %v1091
        %1144 = vmatprep.subr.bf16.mxu0 0
        %1145 = vmatpush1.bf16.msra.mxu0 %v1092
        %1146 = vmatprep.subr.bf16.mxu0 0
        %1147 = vmatpush1.bf16.msra.mxu0 %v1093
        %1148 = vmatprep.subr.bf16.mxu0 0
        %1149 = vmatpush1.bf16.msra.mxu0 %v1094
        %1150 = vmatprep.subr.bf16.mxu0 0
        %1151 = vmatpush1.bf16.msra.mxu0 %v1095
        %1152 = vmatprep.subr.bf16.mxu0 0
        %1153 = vmatpush1.bf16.msra.mxu0 %v1096
        %1154 = vmatprep.subr.bf16.mxu0 0
        %1155 = vmatpush1.bf16.msra.mxu0 %v1097
        %1156 = vmatprep.subr.bf16.mxu0 0
        %1157 = vmatpush1.bf16.msra.mxu0 %v1098
        %1158 = vmatprep.subr.bf16.mxu0 0
        %1159 = vmatpush1.bf16.msra.mxu0 %v1099
        %1160 = vmatprep.subr.bf16.mxu0 0
        %1161 = vmatpush1.bf16.msra.mxu0 %v1100
        %1162 = vmatprep.subr.bf16.mxu0 0
        %1163 = vmatpush1.bf16.msra.mxu0 %v1101
        %1164 = vmatprep.subr.bf16.mxu0 0
        %1165 = vmatpush1.bf16.msra.mxu0 %v1102
        %1166 = vmatprep.subr.bf16.mxu0 0
        %1167 = vmatpush1.bf16.msra.mxu0 %v1103
        %1168 = vmatprep.mubr.bf16.mxu0 %v958
        %1169 = vmatmul.mubr.bf16.gmra.mrb[0].mxu0 %v955
        %v1170 = vpop.f32.mrb[0].mxu0
        %v1171 = vadd.f32 %v949, %v1170
        %v1172 = vpop.f32.mrb[0].mxu0
        %v1173 = vpop.f32.mrb[0].mxu0
        %v1174 = vadd.f32 %v949, %v1173
        %v1175 = vpop.f32.mrb[0].mxu0
        %1176 = vmatprep.mubr.bf16.mxu0 %v965
        %1177 = vmatmul.mubr.bf16.gmra.mrb[0].mxu0 %v963
        %v1178 = vpop.f32.mrb[0].mxu0
        %v1179 = vadd.f32 %v949, %v1178
        %v1180 = vpop.f32.mrb[0].mxu0
        %v1181 = vpop.f32.mrb[0].mxu0
        %v1182 = vadd.f32 %v949, %v1181
        %v1183 = vpop.f32.mrb[0].mxu0
        %1184 = vmatprep.mubr.bf16.mxu0 %v971
        %1185 = vmatmul.mubr.bf16.gmra.mrb[0].mxu0 %v969
        %v1186 = vpop.f32.mrb[0].mxu0
        %v1187 = vadd.f32 %v949, %v1186
        %v1188 = vpop.f32.mrb[0].mxu0
        %v1189 = vpop.f32.mrb[0].mxu0
        %v1190 = vadd.f32 %v949, %v1189
        %v1191 = vpop.f32.mrb[0].mxu0
        %1192 = vmatprep.mubr.bf16.mxu0 %v977
        %1193 = vmatmul.mubr.bf16.gmra.mrb[0].mxu0 %v975
        %v1194 = vpop.f32.mrb[0].mxu0
        %v1195 = vadd.f32 %v949, %v1194
        %v1196 = vpop.f32.mrb[0].mxu0
        %v1197 = vpop.f32.mrb[0].mxu0
        %v1198 = vpop.f32.mrb[0].mxu0
        %1199 = vdwg.mxu0
        %1200 = vmatprep.subr.bf16.mxu0 0
        %1201 = vmatpush1.bf16.msra.mxu0 %v1104
        %1202 = vmatprep.subr.bf16.mxu0 0
        %1203 = vmatpush1.bf16.msra.mxu0 %v1105
        %1204 = vmatprep.subr.bf16.mxu0 0
        %1205 = vmatpush1.bf16.msra.mxu0 %v1106
        %1206 = vmatprep.subr.bf16.mxu0 0
        %1207 = vmatpush1.bf16.msra.mxu0 %v1107
        %1208 = vmatprep.subr.bf16.mxu0 0
        %1209 = vmatpush1.bf16.msra.mxu0 %v1108
        %1210 = vmatprep.subr.bf16.mxu0 0
        %1211 = vmatpush1.bf16.msra.mxu0 %v1109
        %1212 = vmatprep.subr.bf16.mxu0 0
        %1213 = vmatpush1.bf16.msra.mxu0 %v1110
        %1214 = vmatprep.subr.bf16.mxu0 0
        %1215 = vmatpush1.bf16.msra.mxu0 %v1111
        %1216 = vmatprep.subr.bf16.mxu0 0
        %1217 = vmatpush1.bf16.msra.mxu0 0
        %1218 = vmatprep.subr.bf16.mxu0 0
        %1219 = vmatpush1.bf16.msra.mxu0 0
        %1220 = vmatprep.subr.bf16.mxu0 0
        %1221 = vmatpush1.bf16.msra.mxu0 0
        %1222 = vmatprep.subr.bf16.mxu0 0
        %1223 = vmatpush1.bf16.msra.mxu0 0
        %1224 = vmatprep.subr.bf16.mxu0 0
        %1225 = vmatpush1.bf16.msra.mxu0 0
        %1226 = vmatprep.subr.bf16.mxu0 0
        %1227 = vmatpush1.bf16.msra.mxu0 0
        %1228 = vmatprep.subr.bf16.mxu0 0
        %1229 = vmatpush1.bf16.msra.mxu0 0
        %1230 = vmatprep.subr.bf16.mxu0 0
        %1231 = vmatpush1.bf16.msra.mxu0 0
        %1232 = vmatprep.mubr.bf16.mxu0 0
        %1233 = vmatmul.mubr.bf16.gmra.mrb[0].mxu0 %v961
        %v1234 = vpop.f32.mrb[0].mxu0
        %v1235 = vadd.f32 %v1171, %v1234
        %v1236 = vpop.f32.mrb[0].mxu0
        %v1237 = vpop.f32.mrb[0].mxu0
        %v1238 = vadd.f32 %v1174, %v1237
        %v1239 = vpop.f32.mrb[0].mxu0
        %1240 = vmatprep.mubr.bf16.mxu0 0
        %1241 = vmatmul.mubr.bf16.gmra.mrb[0].mxu0 %v967
        %v1242 = vpop.f32.mrb[0].mxu0
        %v1243 = vadd.f32 %v1179, %v1242
        %v1244 = vpop.f32.mrb[0].mxu0
        %v1245 = vpop.f32.mrb[0].mxu0
        %v1246 = vadd.f32 %v1182, %v1245
        %v1247 = vpop.f32.mrb[0].mxu0
        %1248 = vmatprep.mubr.bf16.mxu0 0
        %1249 = vmatmul.mubr.bf16.gmra.mrb[0].mxu0 %v973
        %v1250 = vpop.f32.mrb[0].mxu0
        %v1251 = vadd.f32 %v1187, %v1250
        %v1252 = vpop.f32.mrb[0].mxu0
        %v1253 = vpop.f32.mrb[0].mxu0
        %v1254 = vadd.f32 %v1190, %v1253
        %v1255 = vpop.f32.mrb[0].mxu0
        %1256 = vmatprep.mubr.bf16.mxu0 0
        %1257 = vmatmul.mubr.bf16.gmra.mrb[0].mxu0 %v979
        %v1258 = vpop.f32.mrb[0].mxu0
        %v1259 = vadd.f32 %v1195, %v1258
        %v1260 = vpop.f32.mrb[0].mxu0
        %v1261 = vpop.f32.mrb[0].mxu0
        %v1262 = vpop.f32.mrb[0].mxu0
        %1263 = vdwg.mxu0
        %1264 = vst [vmem:[#allocation4] sm:$0xff] %v1235
        %1265 = vst [vmem:[#allocation4 + $0x8] sm:$0xff] %v1238
        %1266 = vst [vmem:[#allocation4 + $0x10] sm:$0xff] %v1243
        %1267 = vst [vmem:[#allocation4 + $0x18] sm:$0xff] %v1246
        %1268 = vst [vmem:[#allocation4 + $0x20] sm:$0xff] %v1251
        %1269 = vst [vmem:[#allocation4 + $0x28] sm:$0xff] %v1254
        %1270 = vst [vmem:[#allocation4 + $0x30] sm:$0xff] %v1259
        %v1271 = vld [vmem:[#allocation4] sm:$0xff]
        %v1272 = vld [vmem:[#allocation4 + $0x8] sm:$0xff]
        %v1273 = vld [vmem:[#allocation4 + $0x10] sm:$0xff]
        %v1274 = vld [vmem:[#allocation4 + $0x18] sm:$0xff]
        %v1275 = vld [vmem:[#allocation4 + $0x20] sm:$0xff]
        %v1276 = vld [vmem:[#allocation4 + $0x28] sm:$0xff]
        %v1277 = vld [vmem:[#allocation4 + $0x30] sm:$0xff]
        %v1278 = vld [vmem:[%s243] sm:$0xff]
        %v1279 = vld [vmem:[%s243 + $0x8] sm:$0xff]
        %v1280 = vld [vmem:[%s243 + $0x10] sm:$0xff]
        %v1281 = vld [vmem:[%s243 + $0x18] sm:$0xff]
        %v1282 = vld [vmem:[%s243 + $0x20] sm:$0xff]
        %v1283 = vld [vmem:[%s243 + $0x28] sm:$0xff]
        %v1284 = vld [vmem:[%s243 + $0x30] sm:$0xff]
        %v1285 = vadd.f32 %v1271, %v1278
        %v1286 = vadd.f32 %v1272, %v1279
        %v1287 = vadd.f32 %v1273, %v1280
        %v1288 = vadd.f32 %v1274, %v1281
        %v1289 = vadd.f32 %v1275, %v1282
        %v1290 = vadd.f32 %v1276, %v1283
        %v1291 = vadd.f32 %v1277, %v1284
        %1292 = vst [vmem:[#allocation3] sm:$0xff] %v1285
        %1293 = vst [vmem:[#allocation3 + $0x8] sm:$0xff] %v1286
        %1294 = vst [vmem:[#allocation3 + $0x10] sm:$0xff] %v1287
        %1295 = vst [vmem:[#allocation3 + $0x18] sm:$0xff] %v1288
        %1296 = vst [vmem:[#allocation3 + $0x20] sm:$0xff] %v1289
        %1297 = vst [vmem:[#allocation3 + $0x28] sm:$0xff] %v1290
        %1298 = vst [vmem:[#allocation3 + $0x30] sm:$0xff] %v1291
        %1299 = vst [vmem:[#allocation5] sm:$0xe0] 0
        %v1300 = vld [vmem:[#allocation3] sm:$0xff]
        %v1301 = vld [vmem:[#allocation3 + $0x8] sm:$0xff]
        %v1302 = vld [vmem:[#allocation3 + $0x10] sm:$0xff]
        %v1303 = vld [vmem:[#allocation3 + $0x18] sm:$0xff]
        %v1304 = vld [vmem:[#allocation3 + $0x20] sm:$0xff]
        %v1305 = vld [vmem:[#allocation3 + $0x28] sm:$0xff]
        %v1306 = vld [vmem:[#allocation3 + $0x30] sm:$0xff]
        %vm1307 = vcmp.ge.f32.partialorder %v1300, 0.0
        %vm1308 = vcmp.ge.f32.partialorder %v1301, 0.0
        %vm1309 = vcmp.ge.f32.partialorder %v1302, 0.0
        %vm1310 = vcmp.ge.f32.partialorder %v1303, 0.0
        %vm1311 = vcmp.ge.f32.partialorder %v1304, 0.0
        %vm1312 = vcmp.ge.f32.partialorder %v1305, 0.0
        %vm1313 = vcmp.ge.f32.partialorder %v1306, 0.0
        %v1314 = vmul.f32 %v1300, 0.1
        %v1315 = vmul.f32 %v1301, 0.1
        %v1316 = vmul.f32 %v1302, 0.1
        %v1317 = vmul.f32 %v1303, 0.1
        %v1318 = vmul.f32 %v1304, 0.1
        %v1319 = vmul.f32 %v1305, 0.1
        %v1320 = vmul.f32 %v1306, 0.1
        %v1321 = vsel %vm1307, %v1300, %v1314
        %v1322 = vsel %vm1308, %v1301, %v1315
        %v1323 = vsel %vm1309, %v1302, %v1316
        %v1324 = vsel %vm1310, %v1303, %v1317
        %v1325 = vsel %vm1311, %v1304, %v1318
        %v1326 = vsel %vm1312, %v1305, %v1319
        %v1327 = vsel %vm1313, %v1306, %v1320
        %v1328 = vmul.f32 %v1321, %v319
        %v1329 = vmul.f32 %v1322, %v320
        %v1330 = vmul.f32 %v1323, %v321
        %v1331 = vmul.f32 %v1324, %v322
        %v1332 = vmul.f32 %v1325, %v323
        %v1333 = vmul.f32 %v1326, %v324
        %v1334 = vmul.f32 %v1327, %v325
        %v1335 = vpack.c.bf16 %v1329, %v1328
        %v1336 = vpack.c.bf16 %v1331, %v1330
        %v1337 = vpack.c.bf16 %v1333, %v1332
        %v1338 = vpack.c.bf16 %v1334, %v1334
        %1339 = vst [vmem:[#allocation5 + $0x8] sm:$0xff] %v1335
        %1340 = vst [vmem:[#allocation5 + $0x10] sm:$0xff] %v1336
        %1341 = vst [vmem:[#allocation5 + $0x18] sm:$0xff] %v1337
        %1342 = vst [vmem:[#allocation5 + $0x20] sm:$0xf] %v1338
        %v1343 = vld [vmem:[#allocation5] sm:$0xe0]
        %v1344 = vld [vmem:[#allocation5 + $0x8] sm:$0xff]
        %v1345 = vld [vmem:[#allocation5 + $0x10] sm:$0xff]
        %v1346 = vld [vmem:[#allocation5 + $0x18] sm:$0xff]
        %v1347 = vld [vmem:[#allocation5 + $0x20] sm:$0x1]
        %v1348 = vld [vmem:[#allocation5] sm:$0xc0]
        %v1349 = vld [vmem:[#allocation5 + $0x20] sm:$0x7]
        %v1350 = vld [vmem:[#allocation5 + $0x20] sm:$0xf]
        %vm1351 = vsmask.f32 6400
        %v1353 = vshrl.u32 %v1348, 16
        %v1355 = vrot.slane %v1353, 1
        %v1356 = vshll.u32 %v1348, 16
        %v1358 = vrot.slane %v1356, 2
        %v1359 = vor.u32 %v1355, %v1358
        %v1361 = vshrl.u32 %v1344, 16
        %v1363 = vrot.slane %v1361, 1
        %v1364 = vshll.u32 %v1344, 16
        %v1366 = vrot.slane %v1364, 2
        %v1367 = vor.u32 %v1363, %v1366
        %v1368 = vsel %vm1351, %v1359, %v1367
        %v1370 = vshrl.u32 %v1345, 16
        %v1372 = vrot.slane %v1370, 1
        %v1373 = vshll.u32 %v1345, 16
        %v1375 = vrot.slane %v1373, 2
        %v1376 = vor.u32 %v1372, %v1375
        %v1377 = vsel %vm1351, %v1367, %v1376
        %v1379 = vshrl.u32 %v1346, 16
        %v1381 = vrot.slane %v1379, 1
        %v1382 = vshll.u32 %v1346, 16
        %v1384 = vrot.slane %v1382, 2
        %v1385 = vor.u32 %v1381, %v1384
        %v1386 = vsel %vm1351, %v1376, %v1385
        %v1388 = vshrl.u32 %v1349, 16
        %v1390 = vrot.slane %v1388, 1
        %v1391 = vshll.u32 %v1349, 16
        %v1393 = vrot.slane %v1391, 2
        %v1394 = vor.u32 %v1390, %v1393
        %v1395 = vsel %vm1351, %v1385, %v1394
        %vm1400 = vcmask 1044480
        %v1401 = vrot.slane %v1344, 3
        %v1402 = vrot.slane %v1345, 3
        %v1403 = vsel %vm1400, %v1401, %v1402
        %v1404 = vrot.slane %v1346, 3
        %v1405 = vsel %vm1400, %v1402, %v1404
        %v1406 = vrot.slane %v1350, 3
        %v1407 = vsel %vm1400, %v1404, %v1406
        %s1408 = scalar_lea.vmem [#allocation7], 192
        %v1409 = vld [vmem:[%s1408] sm:$0xf]
        %v1410 = vld [vmem:[%s1408 + $0x4] sm:$0xf]
        %v1411 = vld [vmem:[%s1408 + $0x8] sm:$0xf]
        %v1412 = vld [vmem:[%s1408 + $0xc] sm:$0xf]
        %v1413 = vld [vmem:[%s1408 + $0x10] sm:$0xf]
        %v1414 = vld [vmem:[%s1408 + $0x14] sm:$0xf]
        %v1415 = vld [vmem:[%s1408 + $0x18] sm:$0xf]
        %v1416 = vld [vmem:[%s1408 + $0x1c] sm:$0xf]
        %v1417 = vld [vmem:[%s1408 + $0x20] sm:$0xf]
        %v1418 = vld [vmem:[%s1408 + $0x24] sm:$0xf]
        %v1419 = vld [vmem:[%s1408 + $0x28] sm:$0xf]
        %v1420 = vld [vmem:[%s1408 + $0x2c] sm:$0xf]
        %v1421 = vld [vmem:[%s1408 + $0x30] sm:$0xf]
        %v1422 = vld [vmem:[%s1408 + $0x34] sm:$0xf]
        %v1423 = vld [vmem:[%s1408 + $0x38] sm:$0xf]
        %v1424 = vld [vmem:[%s1408 + $0x3c] sm:$0xf]
        %v1425 = vld [vmem:[%s1408 + $0x40] sm:$0xf]
        %v1426 = vld [vmem:[%s1408 + $0x44] sm:$0xf]
        %v1427 = vld [vmem:[%s1408 + $0x48] sm:$0xf]
        %v1428 = vld [vmem:[%s1408 + $0x4c] sm:$0xf]
        %v1429 = vld [vmem:[%s1408 + $0x50] sm:$0xf]
        %v1430 = vld [vmem:[%s1408 + $0x54] sm:$0xf]
        %v1431 = vld [vmem:[%s1408 + $0x58] sm:$0xf]
        %v1432 = vld [vmem:[%s1408 + $0x5c] sm:$0xf]
        %v1433 = vld [vmem:[%s1408 + $0x60] sm:$0xf]
        %v1434 = vld [vmem:[%s1408 + $0x64] sm:$0xf]
        %v1435 = vld [vmem:[%s1408 + $0x68] sm:$0xf]
        %v1436 = vld [vmem:[%s1408 + $0x6c] sm:$0xf]
        %v1437 = vld [vmem:[%s1408 + $0x70] sm:$0xf]
        %v1438 = vld [vmem:[%s1408 + $0x74] sm:$0xf]
        %v1439 = vld [vmem:[%s1408 + $0x78] sm:$0xf]
        %v1440 = vld [vmem:[%s1408 + $0x7c] sm:$0xf]
        %v1441 = vld [vmem:[%s1408 + $0x80] sm:$0xf]
        %v1442 = vld [vmem:[%s1408 + $0x84] sm:$0xf]
        %v1443 = vld [vmem:[%s1408 + $0x88] sm:$0xf]
        %v1444 = vld [vmem:[%s1408 + $0x8c] sm:$0xf]
        %v1445 = vld [vmem:[%s1408 + $0x90] sm:$0xf]
        %v1446 = vld [vmem:[%s1408 + $0x94] sm:$0xf]
        %v1447 = vld [vmem:[%s1408 + $0x98] sm:$0xf]
        %v1448 = vld [vmem:[%s1408 + $0x9c] sm:$0xf]
        %v1449 = vld [vmem:[%s1408 + $0xa0] sm:$0xf]
        %v1450 = vld [vmem:[%s1408 + $0xa4] sm:$0xf]
        %v1451 = vld [vmem:[%s1408 + $0xa8] sm:$0xf]
        %v1452 = vld [vmem:[%s1408 + $0xac] sm:$0xf]
        %v1453 = vld [vmem:[%s1408 + $0xb0] sm:$0xf]
        %v1454 = vld [vmem:[%s1408 + $0xb4] sm:$0xf]
        %v1455 = vld [vmem:[%s1408 + $0xb8] sm:$0xf]
        %v1456 = vld [vmem:[%s1408 + $0xbc] sm:$0xf]
        %s1457 = scalar_lea.vmem %s2, 1
        %v1458 = vld [vmem:[%s1457] sm:$0x1]
        %v1460 = vlaneseq
        %v1461 = vshrl.u32 %v1460, 7
        %v1462 = vsub.s32 0, %v1461
        %v1463 = vrot.slane %v1458, %v1462
        %vm1467 = vcmask 1042432
        %v1468 = vrot.slane %v1343, 5
        %v1469 = vrot.slane %v1344, 5
        %v1470 = vsel %vm1467, %v1468, %v1469
        %v1471 = vrot.slane %v1368, 5
        %v1472 = vrot.slane %v1377, 5
        %v1473 = vsel %vm1467, %v1471, %v1472
        %v1474 = vrot.slane %v1401, 5
        %v1475 = vrot.slane %v1403, 5
        %v1476 = vsel %vm1467, %v1474, %v1475
        %v1477 = vrot.slane %v1345, 5
        %v1478 = vsel %vm1467, %v1469, %v1477
        %v1479 = vrot.slane %v1386, 5
        %v1480 = vsel %vm1467, %v1472, %v1479
        %v1481 = vrot.slane %v1405, 5
        %v1482 = vsel %vm1467, %v1475, %v1481
        %v1483 = vrot.slane %v1346, 5
        %v1484 = vsel %vm1467, %v1477, %v1483
        %v1485 = vrot.slane %v1395, 5
        %v1486 = vsel %vm1467, %v1479, %v1485
        %v1487 = vrot.slane %v1407, 5
        %v1488 = vsel %vm1467, %v1481, %v1487
        %v1489 = vrot.slane %v1347, 5
        %v1490 = vsel %vm1467, %v1483, %v1489
        %v1491 = vrot.slane %v1394, 5
        %v1492 = vsel %vm1467, %v1485, %v1491
        %v1493 = vrot.slane %v1406, 5
        %v1494 = vsel %vm1467, %v1487, %v1493
        %v1555 = vunpack.c.l.b16 %v1409
        %v1556 = vunpack.c.l.b16 %v1410
        %v1557 = vunpack.c.l.b16 %v1411
        %v1558 = vunpack.c.l.b16 %v1412
        %v1559 = vunpack.c.l.b16 %v1413
        %v1560 = vunpack.c.l.b16 %v1414
        %v1561 = vunpack.c.l.b16 %v1415
        %v1562 = vunpack.c.l.b16 %v1416
        %v1563 = vunpack.c.l.b16 %v1417
        %v1564 = vunpack.c.l.b16 %v1418
        %v1565 = vunpack.c.l.b16 %v1419
        %v1566 = vunpack.c.l.b16 %v1420
        %v1567 = vunpack.c.l.b16 %v1421
        %v1568 = vunpack.c.l.b16 %v1422
        %v1569 = vunpack.c.l.b16 %v1423
        %v1570 = vunpack.c.l.b16 %v1424
        %v1571 = vunpack.c.l.b16 %v1425
        %v1572 = vunpack.c.l.b16 %v1426
        %v1573 = vunpack.c.l.b16 %v1427
        %v1574 = vunpack.c.l.b16 %v1428
        %v1575 = vunpack.c.l.b16 %v1429
        %v1576 = vunpack.c.l.b16 %v1430
        %v1577 = vunpack.c.l.b16 %v1431
        %v1578 = vunpack.c.l.b16 %v1432
        %v1579 = vunpack.c.l.b16 %v1433
        %v1580 = vunpack.c.l.b16 %v1434
        %v1581 = vunpack.c.l.b16 %v1435
        %v1582 = vunpack.c.l.b16 %v1436
        %v1583 = vunpack.c.l.b16 %v1437
        %v1584 = vunpack.c.l.b16 %v1438
        %v1585 = vunpack.c.l.b16 %v1439
        %v1586 = vunpack.c.l.b16 %v1440
        %v1587 = vunpack.c.l.b16 %v1441
        %v1588 = vunpack.c.l.b16 %v1442
        %v1589 = vunpack.c.l.b16 %v1443
        %v1590 = vunpack.c.l.b16 %v1444
        %v1591 = vunpack.c.l.b16 %v1445
        %v1592 = vunpack.c.l.b16 %v1446
        %v1593 = vunpack.c.l.b16 %v1447
        %v1594 = vunpack.c.l.b16 %v1448
        %v1595 = vunpack.c.l.b16 %v1449
        %v1596 = vunpack.c.l.b16 %v1450
        %v1597 = vunpack.c.l.b16 %v1451
        %v1598 = vunpack.c.l.b16 %v1452
        %v1599 = vunpack.c.l.b16 %v1453
        %v1600 = vunpack.c.l.b16 %v1454
        %v1601 = vunpack.c.l.b16 %v1455
        %v1602 = vunpack.c.l.b16 %v1456
        %v1603 = vpack.c.b16 %v1556, %v1555
        %v1604 = vpack.c.b16 %v1558, %v1557
        %v1605 = vpack.c.b16 %v1560, %v1559
        %v1606 = vpack.c.b16 %v1562, %v1561
        %v1607 = vpack.c.b16 %v1564, %v1563
        %v1608 = vpack.c.b16 %v1566, %v1565
        %v1609 = vpack.c.b16 %v1568, %v1567
        %v1610 = vpack.c.b16 %v1570, %v1569
        %v1611 = vpack.c.b16 %v1572, %v1571
        %v1612 = vpack.c.b16 %v1574, %v1573
        %v1613 = vpack.c.b16 %v1576, %v1575
        %v1614 = vpack.c.b16 %v1578, %v1577
        %v1615 = vpack.c.b16 %v1580, %v1579
        %v1616 = vpack.c.b16 %v1582, %v1581
        %v1617 = vpack.c.b16 %v1584, %v1583
        %v1618 = vpack.c.b16 %v1586, %v1585
        %v1619 = vpack.c.b16 %v1588, %v1587
        %v1620 = vpack.c.b16 %v1590, %v1589
        %v1621 = vpack.c.b16 %v1592, %v1591
        %v1622 = vpack.c.b16 %v1594, %v1593
        %v1623 = vpack.c.b16 %v1596, %v1595
        %v1624 = vpack.c.b16 %v1598, %v1597
        %v1625 = vpack.c.b16 %v1600, %v1599
        %v1626 = vpack.c.b16 %v1602, %v1601
        %1651 = vmatprep.subr.bf16.mxu0 0
        %1652 = vmatpush1.bf16.msra.mxu0 %v1603
        %1653 = vmatprep.subr.bf16.mxu0 0
        %1654 = vmatpush1.bf16.msra.mxu0 %v1604
        %1655 = vmatprep.subr.bf16.mxu0 0
        %1656 = vmatpush1.bf16.msra.mxu0 %v1605
        %1657 = vmatprep.subr.bf16.mxu0 0
        %1658 = vmatpush1.bf16.msra.mxu0 %v1606
        %1659 = vmatprep.subr.bf16.mxu0 0
        %1660 = vmatpush1.bf16.msra.mxu0 %v1607
        %1661 = vmatprep.subr.bf16.mxu0 0
        %1662 = vmatpush1.bf16.msra.mxu0 %v1608
        %1663 = vmatprep.subr.bf16.mxu0 0
        %1664 = vmatpush1.bf16.msra.mxu0 %v1609
        %1665 = vmatprep.subr.bf16.mxu0 0
        %1666 = vmatpush1.bf16.msra.mxu0 %v1610
        %1667 = vmatprep.subr.bf16.mxu0 0
        %1668 = vmatpush1.bf16.msra.mxu0 %v1611
        %1669 = vmatprep.subr.bf16.mxu0 0
        %1670 = vmatpush1.bf16.msra.mxu0 %v1612
        %1671 = vmatprep.subr.bf16.mxu0 0
        %1672 = vmatpush1.bf16.msra.mxu0 %v1613
        %1673 = vmatprep.subr.bf16.mxu0 0
        %1674 = vmatpush1.bf16.msra.mxu0 %v1614
        %1675 = vmatprep.subr.bf16.mxu0 0
        %1676 = vmatpush1.bf16.msra.mxu0 %v1615
        %1677 = vmatprep.subr.bf16.mxu0 0
        %1678 = vmatpush1.bf16.msra.mxu0 %v1616
        %1679 = vmatprep.subr.bf16.mxu0 0
        %1680 = vmatpush1.bf16.msra.mxu0 %v1617
        %1681 = vmatprep.subr.bf16.mxu0 0
        %1682 = vmatpush1.bf16.msra.mxu0 %v1618
        %1683 = vmatprep.mubr.bf16.mxu0 %v1473
        %1684 = vmatmul.mubr.bf16.gmra.mrb[0].mxu0 %v1470
        %v1685 = vpop.f32.mrb[0].mxu0
        %v1686 = vadd.f32 %v1463, %v1685
        %v1687 = vpop.f32.mrb[0].mxu0
        %v1688 = vpop.f32.mrb[0].mxu0
        %v1689 = vadd.f32 %v1463, %v1688
        %v1690 = vpop.f32.mrb[0].mxu0
        %1691 = vmatprep.mubr.bf16.mxu0 %v1480
        %1692 = vmatmul.mubr.bf16.gmra.mrb[0].mxu0 %v1478
        %v1693 = vpop.f32.mrb[0].mxu0
        %v1694 = vadd.f32 %v1463, %v1693
        %v1695 = vpop.f32.mrb[0].mxu0
        %v1696 = vpop.f32.mrb[0].mxu0
        %v1697 = vadd.f32 %v1463, %v1696
        %v1698 = vpop.f32.mrb[0].mxu0
        %1699 = vmatprep.mubr.bf16.mxu0 %v1486
        %1700 = vmatmul.mubr.bf16.gmra.mrb[0].mxu0 %v1484
        %v1701 = vpop.f32.mrb[0].mxu0
        %v1702 = vadd.f32 %v1463, %v1701
        %v1703 = vpop.f32.mrb[0].mxu0
        %v1704 = vpop.f32.mrb[0].mxu0
        %v1705 = vadd.f32 %v1463, %v1704
        %v1706 = vpop.f32.mrb[0].mxu0
        %1707 = vmatprep.mubr.bf16.mxu0 %v1492
        %1708 = vmatmul.mubr.bf16.gmra.mrb[0].mxu0 %v1490
        %v1709 = vpop.f32.mrb[0].mxu0
        %v1710 = vadd.f32 %v1463, %v1709
        %v1711 = vpop.f32.mrb[0].mxu0
        %v1712 = vpop.f32.mrb[0].mxu0
        %v1713 = vpop.f32.mrb[0].mxu0
        %1714 = vdwg.mxu0
        %1715 = vmatprep.subr.bf16.mxu0 0
        %1716 = vmatpush1.bf16.msra.mxu0 %v1619
        %1717 = vmatprep.subr.bf16.mxu0 0
        %1718 = vmatpush1.bf16.msra.mxu0 %v1620
        %1719 = vmatprep.subr.bf16.mxu0 0
        %1720 = vmatpush1.bf16.msra.mxu0 %v1621
        %1721 = vmatprep.subr.bf16.mxu0 0
        %1722 = vmatpush1.bf16.msra.mxu0 %v1622
        %1723 = vmatprep.subr.bf16.mxu0 0
        %1724 = vmatpush1.bf16.msra.mxu0 %v1623
        %1725 = vmatprep.subr.bf16.mxu0 0
        %1726 = vmatpush1.bf16.msra.mxu0 %v1624
        %1727 = vmatprep.subr.bf16.mxu0 0
        %1728 = vmatpush1.bf16.msra.mxu0 %v1625
        %1729 = vmatprep.subr.bf16.mxu0 0
        %1730 = vmatpush1.bf16.msra.mxu0 %v1626
        %1731 = vmatprep.subr.bf16.mxu0 0
        %1732 = vmatpush1.bf16.msra.mxu0 0
        %1733 = vmatprep.subr.bf16.mxu0 0
        %1734 = vmatpush1.bf16.msra.mxu0 0
        %1735 = vmatprep.subr.bf16.mxu0 0
        %1736 = vmatpush1.bf16.msra.mxu0 0
        %1737 = vmatprep.subr.bf16.mxu0 0
        %1738 = vmatpush1.bf16.msra.mxu0 0
        %1739 = vmatprep.subr.bf16.mxu0 0
        %1740 = vmatpush1.bf16.msra.mxu0 0
        %1741 = vmatprep.subr.bf16.mxu0 0
        %1742 = vmatpush1.bf16.msra.mxu0 0
        %1743 = vmatprep.subr.bf16.mxu0 0
        %1744 = vmatpush1.bf16.msra.mxu0 0
        %1745 = vmatprep.subr.bf16.mxu0 0
        %1746 = vmatpush1.bf16.msra.mxu0 0
        %1747 = vmatprep.mubr.bf16.mxu0 0
        %1748 = vmatmul.mubr.bf16.gmra.mrb[0].mxu0 %v1476
        %v1749 = vpop.f32.mrb[0].mxu0
        %v1750 = vadd.f32 %v1686, %v1749
        %v1751 = vpop.f32.mrb[0].mxu0
        %v1752 = vpop.f32.mrb[0].mxu0
        %v1753 = vadd.f32 %v1689, %v1752
        %v1754 = vpop.f32.mrb[0].mxu0
        %1755 = vmatprep.mubr.bf16.mxu0 0
        %1756 = vmatmul.mubr.bf16.gmra.mrb[0].mxu0 %v1482
        %v1757 = vpop.f32.mrb[0].mxu0
        %v1758 = vadd.f32 %v1694, %v1757
        %v1759 = vpop.f32.mrb[0].mxu0
        %v1760 = vpop.f32.mrb[0].mxu0
        %v1761 = vadd.f32 %v1697, %v1760
        %v1762 = vpop.f32.mrb[0].mxu0
        %1763 = vmatprep.mubr.bf16.mxu0 0
        %1764 = vmatmul.mubr.bf16.gmra.mrb[0].mxu0 %v1488
        %v1765 = vpop.f32.mrb[0].mxu0
        %v1766 = vadd.f32 %v1702, %v1765
        %v1767 = vpop.f32.mrb[0].mxu0
        %v1768 = vpop.f32.mrb[0].mxu0
        %v1769 = vadd.f32 %v1705, %v1768
        %v1770 = vpop.f32.mrb[0].mxu0
        %1771 = vmatprep.mubr.bf16.mxu0 0
        %1772 = vmatmul.mubr.bf16.gmra.mrb[0].mxu0 %v1494
        %v1773 = vpop.f32.mrb[0].mxu0
        %v1774 = vadd.f32 %v1710, %v1773
        %v1775 = vpop.f32.mrb[0].mxu0
        %v1776 = vpop.f32.mrb[0].mxu0
        %v1777 = vpop.f32.mrb[0].mxu0
        %1778 = vdwg.mxu0
        %1779 = vst [vmem:[#allocation4] sm:$0xff] %v1750
        %1780 = vst [vmem:[#allocation4 + $0x8] sm:$0xff] %v1753
        %1781 = vst [vmem:[#allocation4 + $0x10] sm:$0xff] %v1758
        %1782 = vst [vmem:[#allocation4 + $0x18] sm:$0xff] %v1761
        %1783 = vst [vmem:[#allocation4 + $0x20] sm:$0xff] %v1766
        %1784 = vst [vmem:[#allocation4 + $0x28] sm:$0xff] %v1769
        %1785 = vst [vmem:[#allocation4 + $0x30] sm:$0xff] %v1774
        %1786 = vst [vmem:[#allocation5] sm:$0x80] 0
        %v1787 = vld [vmem:[#allocation4] sm:$0xff]
        %v1788 = vld [vmem:[#allocation4 + $0x8] sm:$0xff]
        %v1789 = vld [vmem:[#allocation4 + $0x10] sm:$0xff]
        %v1790 = vld [vmem:[#allocation4 + $0x18] sm:$0xff]
        %v1791 = vld [vmem:[#allocation4 + $0x20] sm:$0xff]
        %v1792 = vld [vmem:[#allocation4 + $0x28] sm:$0xff]
        %v1793 = vld [vmem:[#allocation4 + $0x30] sm:$0xff]
        %vm1794 = vcmp.ge.f32.partialorder %v1787, 0.0
        %vm1795 = vcmp.ge.f32.partialorder %v1788, 0.0
        %vm1796 = vcmp.ge.f32.partialorder %v1789, 0.0
        %vm1797 = vcmp.ge.f32.partialorder %v1790, 0.0
        %vm1798 = vcmp.ge.f32.partialorder %v1791, 0.0
        %vm1799 = vcmp.ge.f32.partialorder %v1792, 0.0
        %vm1800 = vcmp.ge.f32.partialorder %v1793, 0.0
        %v1801 = vmul.f32 %v1787, 0.1
        %v1802 = vmul.f32 %v1788, 0.1
        %v1803 = vmul.f32 %v1789, 0.1
        %v1804 = vmul.f32 %v1790, 0.1
        %v1805 = vmul.f32 %v1791, 0.1
        %v1806 = vmul.f32 %v1792, 0.1
        %v1807 = vmul.f32 %v1793, 0.1
        %v1808 = vsel %vm1794, %v1787, %v1801
        %v1809 = vsel %vm1795, %v1788, %v1802
        %v1810 = vsel %vm1796, %v1789, %v1803
        %v1811 = vsel %vm1797, %v1790, %v1804
        %v1812 = vsel %vm1798, %v1791, %v1805
        %v1813 = vsel %vm1799, %v1792, %v1806
        %v1814 = vsel %vm1800, %v1793, %v1807
        %v1815 = vmul.f32 %v1808, %v319
        %v1816 = vmul.f32 %v1809, %v320
        %v1817 = vmul.f32 %v1810, %v321
        %v1818 = vmul.f32 %v1811, %v322
        %v1819 = vmul.f32 %v1812, %v323
        %v1820 = vmul.f32 %v1813, %v324
        %v1821 = vmul.f32 %v1814, %v325
        %v1822 = vpack.c.bf16 %v1816, %v1815
        %v1823 = vpack.c.bf16 %v1818, %v1817
        %v1824 = vpack.c.bf16 %v1820, %v1819
        %v1825 = vpack.c.bf16 %v1821, %v1821
        %1826 = vst [vmem:[#allocation5 + $0x8] sm:$0xff] %v1822
        %1827 = vst [vmem:[#allocation5 + $0x10] sm:$0xff] %v1823
        %1828 = vst [vmem:[#allocation5 + $0x18] sm:$0xff] %v1824
        %1829 = vst [vmem:[#allocation5 + $0x20] sm:$0xf] %v1825
        %v1830 = vld [vmem:[#allocation5] sm:$0x80]
        %v1831 = vld [vmem:[#allocation5 + $0x8] sm:$0xff]
        %v1832 = vld [vmem:[#allocation5 + $0x10] sm:$0xff]
        %v1833 = vld [vmem:[#allocation5 + $0x18] sm:$0xff]
        %v1834 = vld [vmem:[#allocation5 + $0x20] sm:$0x7]
        %v1835 = vld [vmem:[#allocation5 + $0x20] sm:$0xf]
        %v1837 = vshrl.u32 %v1830, 16
        %v1840 = vshll.u32 %v1831, 16
        %v1842 = vrot.slane %v1840, 1
        %v1843 = vsel %vm376, %v1837, %v1842
        %v1844 = vshrl.u32 %v1831, 16
        %v1846 = vor.u32 %v1844, %v1842
        %v1848 = vshll.u32 %v1832, 16
        %v1850 = vrot.slane %v1848, 1
        %v1851 = vsel %vm376, %v1846, %v1850
        %v1852 = vshrl.u32 %v1832, 16
        %v1854 = vor.u32 %v1852, %v1850
        %v1856 = vshll.u32 %v1833, 16
        %v1858 = vrot.slane %v1856, 1
        %v1859 = vsel %vm376, %v1854, %v1858
        %v1860 = vshrl.u32 %v1833, 16
        %v1862 = vor.u32 %v1860, %v1858
        %v1864 = vshll.u32 %v1835, 16
        %v1866 = vrot.slane %v1864, 1
        %v1867 = vsel %vm376, %v1862, %v1866
        %v1868 = vshrl.u32 %v1835, 16
        %v1870 = vor.u32 %v1868, %v1866
        %v1875 = vrot.slane %v1831, 1
        %v1876 = vrot.slane %v1832, 1
        %v1877 = vsel %vm416, %v1875, %v1876
        %v1878 = vrot.slane %v1833, 1
        %v1879 = vsel %vm416, %v1876, %v1878
        %v1880 = vrot.slane %v1835, 1
        %v1881 = vsel %vm416, %v1878, %v1880
        %s1882 = scalar_lea.vmem [#allocation10], 192
        %v1883 = vld [vmem:[%s1882] sm:$0xf]
        %v1884 = vld [vmem:[%s1882 + $0x4] sm:$0xf]
        %v1885 = vld [vmem:[%s1882 + $0x8] sm:$0xf]
        %v1886 = vld [vmem:[%s1882 + $0xc] sm:$0xf]
        %v1887 = vld [vmem:[%s1882 + $0x10] sm:$0xf]
        %v1888 = vld [vmem:[%s1882 + $0x14] sm:$0xf]
        %v1889 = vld [vmem:[%s1882 + $0x18] sm:$0xf]
        %v1890 = vld [vmem:[%s1882 + $0x1c] sm:$0xf]
        %v1891 = vld [vmem:[%s1882 + $0x20] sm:$0xf]
        %v1892 = vld [vmem:[%s1882 + $0x24] sm:$0xf]
        %v1893 = vld [vmem:[%s1882 + $0x28] sm:$0xf]
        %v1894 = vld [vmem:[%s1882 + $0x2c] sm:$0xf]
        %v1895 = vld [vmem:[%s1882 + $0x30] sm:$0xf]
        %v1896 = vld [vmem:[%s1882 + $0x34] sm:$0xf]
        %v1897 = vld [vmem:[%s1882 + $0x38] sm:$0xf]
        %v1898 = vld [vmem:[%s1882 + $0x3c] sm:$0xf]
        %v1899 = vld [vmem:[%s1882 + $0x40] sm:$0xf]
        %v1900 = vld [vmem:[%s1882 + $0x44] sm:$0xf]
        %v1901 = vld [vmem:[%s1882 + $0x48] sm:$0xf]
        %v1902 = vld [vmem:[%s1882 + $0x4c] sm:$0xf]
        %v1903 = vld [vmem:[%s1882 + $0x50] sm:$0xf]
        %v1904 = vld [vmem:[%s1882 + $0x54] sm:$0xf]
        %v1905 = vld [vmem:[%s1882 + $0x58] sm:$0xf]
        %v1906 = vld [vmem:[%s1882 + $0x5c] sm:$0xf]
        %v1907 = vld [vmem:[%s1882 + $0x60] sm:$0xf]
        %v1908 = vld [vmem:[%s1882 + $0x64] sm:$0xf]
        %v1909 = vld [vmem:[%s1882 + $0x68] sm:$0xf]
        %v1910 = vld [vmem:[%s1882 + $0x6c] sm:$0xf]
        %v1911 = vld [vmem:[%s1882 + $0x70] sm:$0xf]
        %v1912 = vld [vmem:[%s1882 + $0x74] sm:$0xf]
        %v1913 = vld [vmem:[%s1882 + $0x78] sm:$0xf]
        %v1914 = vld [vmem:[%s1882 + $0x7c] sm:$0xf]
        %v1915 = vld [vmem:[%s1882 + $0x80] sm:$0xf]
        %v1916 = vld [vmem:[%s1882 + $0x84] sm:$0xf]
        %v1917 = vld [vmem:[%s1882 + $0x88] sm:$0xf]
        %v1918 = vld [vmem:[%s1882 + $0x8c] sm:$0xf]
        %v1919 = vld [vmem:[%s1882 + $0x90] sm:$0xf]
        %v1920 = vld [vmem:[%s1882 + $0x94] sm:$0xf]
        %v1921 = vld [vmem:[%s1882 + $0x98] sm:$0xf]
        %v1922 = vld [vmem:[%s1882 + $0x9c] sm:$0xf]
        %v1923 = vld [vmem:[%s1882 + $0xa0] sm:$0xf]
        %v1924 = vld [vmem:[%s1882 + $0xa4] sm:$0xf]
        %v1925 = vld [vmem:[%s1882 + $0xa8] sm:$0xf]
        %v1926 = vld [vmem:[%s1882 + $0xac] sm:$0xf]
        %v1927 = vld [vmem:[%s1882 + $0xb0] sm:$0xf]
        %v1928 = vld [vmem:[%s1882 + $0xb4] sm:$0xf]
        %v1929 = vld [vmem:[%s1882 + $0xb8] sm:$0xf]
        %v1930 = vld [vmem:[%s1882 + $0xbc] sm:$0xf]
        %s1931 = scalar_lea.vmem %s4, 1
        %v1932 = vld [vmem:[%s1931] sm:$0x1]
        %v1934 = vlaneseq
        %v1935 = vshrl.u32 %v1934, 7
        %v1936 = vsub.s32 0, %v1935
        %v1937 = vrot.slane %v1932, %v1936
        %v1941 = vrot.slane %v1830, 7
        %v1942 = vrot.slane %v1831, 7
        %v1943 = vsel %vm481, %v1941, %v1942
        %v1944 = vrot.slane %v1843, 7
        %v1945 = vrot.slane %v1851, 7
        %v1946 = vsel %vm481, %v1944, %v1945
        %v1947 = vrot.slane %v1875, 7
        %v1948 = vrot.slane %v1877, 7
        %v1949 = vsel %vm481, %v1947, %v1948
        %v1950 = vrot.slane %v1832, 7
        %v1951 = vsel %vm481, %v1942, %v1950
        %v1952 = vrot.slane %v1859, 7
        %v1953 = vsel %vm481, %v1945, %v1952
        %v1954 = vrot.slane %v1879, 7
        %v1955 = vsel %vm481, %v1948, %v1954
        %v1956 = vrot.slane %v1833, 7
        %v1957 = vsel %vm481, %v1950, %v1956
        %v1958 = vrot.slane %v1867, 7
        %v1959 = vsel %vm481, %v1952, %v1958
        %v1960 = vrot.slane %v1881, 7
        %v1961 = vsel %vm481, %v1954, %v1960
        %v1962 = vrot.slane %v1834, 7
        %v1963 = vsel %vm481, %v1956, %v1962
        %v1964 = vrot.slane %v1870, 7
        %v1965 = vsel %vm481, %v1958, %v1964
        %v1966 = vrot.slane %v1880, 7
        %v1967 = vsel %vm481, %v1960, %v1966
        %v2028 = vunpack.c.l.b16 %v1883
        %v2029 = vunpack.c.l.b16 %v1884
        %v2030 = vunpack.c.l.b16 %v1885
        %v2031 = vunpack.c.l.b16 %v1886
        %v2032 = vunpack.c.l.b16 %v1887
        %v2033 = vunpack.c.l.b16 %v1888
        %v2034 = vunpack.c.l.b16 %v1889
        %v2035 = vunpack.c.l.b16 %v1890
        %v2036 = vunpack.c.l.b16 %v1891
        %v2037 = vunpack.c.l.b16 %v1892
        %v2038 = vunpack.c.l.b16 %v1893
        %v2039 = vunpack.c.l.b16 %v1894
        %v2040 = vunpack.c.l.b16 %v1895
        %v2041 = vunpack.c.l.b16 %v1896
        %v2042 = vunpack.c.l.b16 %v1897
        %v2043 = vunpack.c.l.b16 %v1898
        %v2044 = vunpack.c.l.b16 %v1899
        %v2045 = vunpack.c.l.b16 %v1900
        %v2046 = vunpack.c.l.b16 %v1901
        %v2047 = vunpack.c.l.b16 %v1902
        %v2048 = vunpack.c.l.b16 %v1903
        %v2049 = vunpack.c.l.b16 %v1904
        %v2050 = vunpack.c.l.b16 %v1905
        %v2051 = vunpack.c.l.b16 %v1906
        %v2052 = vunpack.c.l.b16 %v1907
        %v2053 = vunpack.c.l.b16 %v1908
        %v2054 = vunpack.c.l.b16 %v1909
        %v2055 = vunpack.c.l.b16 %v1910
        %v2056 = vunpack.c.l.b16 %v1911
        %v2057 = vunpack.c.l.b16 %v1912
        %v2058 = vunpack.c.l.b16 %v1913
        %v2059 = vunpack.c.l.b16 %v1914
        %v2060 = vunpack.c.l.b16 %v1915
        %v2061 = vunpack.c.l.b16 %v1916
        %v2062 = vunpack.c.l.b16 %v1917
        %v2063 = vunpack.c.l.b16 %v1918
        %v2064 = vunpack.c.l.b16 %v1919
        %v2065 = vunpack.c.l.b16 %v1920
        %v2066 = vunpack.c.l.b16 %v1921
        %v2067 = vunpack.c.l.b16 %v1922
        %v2068 = vunpack.c.l.b16 %v1923
        %v2069 = vunpack.c.l.b16 %v1924
        %v2070 = vunpack.c.l.b16 %v1925
        %v2071 = vunpack.c.l.b16 %v1926
        %v2072 = vunpack.c.l.b16 %v1927
        %v2073 = vunpack.c.l.b16 %v1928
        %v2074 = vunpack.c.l.b16 %v1929
        %v2075 = vunpack.c.l.b16 %v1930
        %v2076 = vpack.c.b16 %v2029, %v2028
        %v2077 = vpack.c.b16 %v2031, %v2030
        %v2078 = vpack.c.b16 %v2033, %v2032
        %v2079 = vpack.c.b16 %v2035, %v2034
        %v2080 = vpack.c.b16 %v2037, %v2036
        %v2081 = vpack.c.b16 %v2039, %v2038
        %v2082 = vpack.c.b16 %v2041, %v2040
        %v2083 = vpack.c.b16 %v2043, %v2042
        %v2084 = vpack.c.b16 %v2045, %v2044
        %v2085 = vpack.c.b16 %v2047, %v2046
        %v2086 = vpack.c.b16 %v2049, %v2048
        %v2087 = vpack.c.b16 %v2051, %v2050
        %v2088 = vpack.c.b16 %v2053, %v2052
        %v2089 = vpack.c.b16 %v2055, %v2054
        %v2090 = vpack.c.b16 %v2057, %v2056
        %v2091 = vpack.c.b16 %v2059, %v2058
        %v2092 = vpack.c.b16 %v2061, %v2060
        %v2093 = vpack.c.b16 %v2063, %v2062
        %v2094 = vpack.c.b16 %v2065, %v2064
        %v2095 = vpack.c.b16 %v2067, %v2066
        %v2096 = vpack.c.b16 %v2069, %v2068
        %v2097 = vpack.c.b16 %v2071, %v2070
        %v2098 = vpack.c.b16 %v2073, %v2072
        %v2099 = vpack.c.b16 %v2075, %v2074
        %2124 = vmatprep.subr.bf16.mxu0 0
        %2125 = vmatpush1.bf16.msra.mxu0 %v2076
        %2126 = vmatprep.subr.bf16.mxu0 0
        %2127 = vmatpush1.bf16.msra.mxu0 %v2077
        %2128 = vmatprep.subr.bf16.mxu0 0
        %2129 = vmatpush1.bf16.msra.mxu0 %v2078
        %2130 = vmatprep.subr.bf16.mxu0 0
        %2131 = vmatpush1.bf16.msra.mxu0 %v2079
        %2132 = vmatprep.subr.bf16.mxu0 0
        %2133 = vmatpush1.bf16.msra.mxu0 %v2080
        %2134 = vmatprep.subr.bf16.mxu0 0
        %2135 = vmatpush1.bf16.msra.mxu0 %v2081
        %2136 = vmatprep.subr.bf16.mxu0 0
        %2137 = vmatpush1.bf16.msra.mxu0 %v2082
        %2138 = vmatprep.subr.bf16.mxu0 0
        %2139 = vmatpush1.bf16.msra.mxu0 %v2083
        %2140 = vmatprep.subr.bf16.mxu0 0
        %2141 = vmatpush1.bf16.msra.mxu0 %v2084
        %2142 = vmatprep.subr.bf16.mxu0 0
        %2143 = vmatpush1.bf16.msra.mxu0 %v2085
        %2144 = vmatprep.subr.bf16.mxu0 0
        %2145 = vmatpush1.bf16.msra.mxu0 %v2086
        %2146 = vmatprep.subr.bf16.mxu0 0
        %2147 = vmatpush1.bf16.msra.mxu0 %v2087
        %2148 = vmatprep.subr.bf16.mxu0 0
        %2149 = vmatpush1.bf16.msra.mxu0 %v2088
        %2150 = vmatprep.subr.bf16.mxu0 0
        %2151 = vmatpush1.bf16.msra.mxu0 %v2089
        %2152 = vmatprep.subr.bf16.mxu0 0
        %2153 = vmatpush1.bf16.msra.mxu0 %v2090
        %2154 = vmatprep.subr.bf16.mxu0 0
        %2155 = vmatpush1.bf16.msra.mxu0 %v2091
        %2156 = vmatprep.mubr.bf16.mxu0 %v1946
        %2157 = vmatmul.mubr.bf16.gmra.mrb[0].mxu0 %v1943
        %v2158 = vpop.f32.mrb[0].mxu0
        %v2159 = vadd.f32 %v1937, %v2158
        %v2160 = vpop.f32.mrb[0].mxu0
        %v2161 = vpop.f32.mrb[0].mxu0
        %v2162 = vadd.f32 %v1937, %v2161
        %v2163 = vpop.f32.mrb[0].mxu0
        %2164 = vmatprep.mubr.bf16.mxu0 %v1953
        %2165 = vmatmul.mubr.bf16.gmra.mrb[0].mxu0 %v1951
        %v2166 = vpop.f32.mrb[0].mxu0
        %v2167 = vadd.f32 %v1937, %v2166
        %v2168 = vpop.f32.mrb[0].mxu0
        %v2169 = vpop.f32.mrb[0].mxu0
        %v2170 = vadd.f32 %v1937, %v2169
        %v2171 = vpop.f32.mrb[0].mxu0
        %2172 = vmatprep.mubr.bf16.mxu0 %v1959
        %2173 = vmatmul.mubr.bf16.gmra.mrb[0].mxu0 %v1957
        %v2174 = vpop.f32.mrb[0].mxu0
        %v2175 = vadd.f32 %v1937, %v2174
        %v2176 = vpop.f32.mrb[0].mxu0
        %v2177 = vpop.f32.mrb[0].mxu0
        %v2178 = vadd.f32 %v1937, %v2177
        %v2179 = vpop.f32.mrb[0].mxu0
        %2180 = vmatprep.mubr.bf16.mxu0 %v1965
        %2181 = vmatmul.mubr.bf16.gmra.mrb[0].mxu0 %v1963
        %v2182 = vpop.f32.mrb[0].mxu0
        %v2183 = vadd.f32 %v1937, %v2182
        %v2184 = vpop.f32.mrb[0].mxu0
        %v2185 = vpop.f32.mrb[0].mxu0
        %v2186 = vpop.f32.mrb[0].mxu0
        %2187 = vdwg.mxu0
        %2188 = vmatprep.subr.bf16.mxu0 0
        %2189 = vmatpush1.bf16.msra.mxu0 %v2092
        %2190 = vmatprep.subr.bf16.mxu0 0
        %2191 = vmatpush1.bf16.msra.mxu0 %v2093
        %2192 = vmatprep.subr.bf16.mxu0 0
        %2193 = vmatpush1.bf16.msra.mxu0 %v2094
        %2194 = vmatprep.subr.bf16.mxu0 0
        %2195 = vmatpush1.bf16.msra.mxu0 %v2095
        %2196 = vmatprep.subr.bf16.mxu0 0
        %2197 = vmatpush1.bf16.msra.mxu0 %v2096
        %2198 = vmatprep.subr.bf16.mxu0 0
        %2199 = vmatpush1.bf16.msra.mxu0 %v2097
        %2200 = vmatprep.subr.bf16.mxu0 0
        %2201 = vmatpush1.bf16.msra.mxu0 %v2098
        %2202 = vmatprep.subr.bf16.mxu0 0
        %2203 = vmatpush1.bf16.msra.mxu0 %v2099
        %2204 = vmatprep.subr.bf16.mxu0 0
        %2205 = vmatpush1.bf16.msra.mxu0 0
        %2206 = vmatprep.subr.bf16.mxu0 0
        %2207 = vmatpush1.bf16.msra.mxu0 0
        %2208 = vmatprep.subr.bf16.mxu0 0
        %2209 = vmatpush1.bf16.msra.mxu0 0
        %2210 = vmatprep.subr.bf16.mxu0 0
        %2211 = vmatpush1.bf16.msra.mxu0 0
        %2212 = vmatprep.subr.bf16.mxu0 0
        %2213 = vmatpush1.bf16.msra.mxu0 0
        %2214 = vmatprep.subr.bf16.mxu0 0
        %2215 = vmatpush1.bf16.msra.mxu0 0
        %2216 = vmatprep.subr.bf16.mxu0 0
        %2217 = vmatpush1.bf16.msra.mxu0 0
        %2218 = vmatprep.subr.bf16.mxu0 0
        %2219 = vmatpush1.bf16.msra.mxu0 0
        %2220 = vmatprep.mubr.bf16.mxu0 0
        %2221 = vmatmul.mubr.bf16.gmra.mrb[0].mxu0 %v1949
        %v2222 = vpop.f32.mrb[0].mxu0
        %v2223 = vadd.f32 %v2159, %v2222
        %v2224 = vpop.f32.mrb[0].mxu0
        %v2225 = vpop.f32.mrb[0].mxu0
        %v2226 = vadd.f32 %v2162, %v2225
        %v2227 = vpop.f32.mrb[0].mxu0
        %2228 = vmatprep.mubr.bf16.mxu0 0
        %2229 = vmatmul.mubr.bf16.gmra.mrb[0].mxu0 %v1955
        %v2230 = vpop.f32.mrb[0].mxu0
        %v2231 = vadd.f32 %v2167, %v2230
        %v2232 = vpop.f32.mrb[0].mxu0
        %v2233 = vpop.f32.mrb[0].mxu0
        %v2234 = vadd.f32 %v2170, %v2233
        %v2235 = vpop.f32.mrb[0].mxu0
        %2236 = vmatprep.mubr.bf16.mxu0 0
        %2237 = vmatmul.mubr.bf16.gmra.mrb[0].mxu0 %v1961
        %v2238 = vpop.f32.mrb[0].mxu0
        %v2239 = vadd.f32 %v2175, %v2238
        %v2240 = vpop.f32.mrb[0].mxu0
        %v2241 = vpop.f32.mrb[0].mxu0
        %v2242 = vadd.f32 %v2178, %v2241
        %v2243 = vpop.f32.mrb[0].mxu0
        %2244 = vmatprep.mubr.bf16.mxu0 0
        %2245 = vmatmul.mubr.bf16.gmra.mrb[0].mxu0 %v1967
        %v2246 = vpop.f32.mrb[0].mxu0
        %v2247 = vadd.f32 %v2183, %v2246
        %v2248 = vpop.f32.mrb[0].mxu0
        %v2249 = vpop.f32.mrb[0].mxu0
        %v2250 = vpop.f32.mrb[0].mxu0
        %2251 = vdwg.mxu0
        %2252 = vst [vmem:[#allocation4] sm:$0xff] %v2223
        %2253 = vst [vmem:[#allocation4 + $0x8] sm:$0xff] %v2226
        %2254 = vst [vmem:[#allocation4 + $0x10] sm:$0xff] %v2231
        %2255 = vst [vmem:[#allocation4 + $0x18] sm:$0xff] %v2234
        %2256 = vst [vmem:[#allocation4 + $0x20] sm:$0xff] %v2239
        %2257 = vst [vmem:[#allocation4 + $0x28] sm:$0xff] %v2242
        %2258 = vst [vmem:[#allocation4 + $0x30] sm:$0xff] %v2247
        %v2259 = vld [vmem:[#allocation4] sm:$0xff]
        %v2260 = vld [vmem:[#allocation4 + $0x8] sm:$0xff]
        %v2261 = vld [vmem:[#allocation4 + $0x10] sm:$0xff]
        %v2262 = vld [vmem:[#allocation4 + $0x18] sm:$0xff]
        %v2263 = vld [vmem:[#allocation4 + $0x20] sm:$0xff]
        %v2264 = vld [vmem:[#allocation4 + $0x28] sm:$0xff]
        %v2265 = vld [vmem:[#allocation4 + $0x30] sm:$0xff]
        %v2266 = vld [vmem:[#allocation3] sm:$0xff]
        %v2267 = vld [vmem:[#allocation3 + $0x8] sm:$0xff]
        %v2268 = vld [vmem:[#allocation3 + $0x10] sm:$0xff]
        %v2269 = vld [vmem:[#allocation3 + $0x18] sm:$0xff]
        %v2270 = vld [vmem:[#allocation3 + $0x20] sm:$0xff]
        %v2271 = vld [vmem:[#allocation3 + $0x28] sm:$0xff]
        %v2272 = vld [vmem:[#allocation3 + $0x30] sm:$0xff]
        %v2273 = vadd.f32 %v2259, %v2266
        %v2274 = vadd.f32 %v2260, %v2267
        %v2275 = vadd.f32 %v2261, %v2268
        %v2276 = vadd.f32 %v2262, %v2269
        %v2277 = vadd.f32 %v2263, %v2270
        %v2278 = vadd.f32 %v2264, %v2271
        %v2279 = vadd.f32 %v2265, %v2272
        %2280 = vst [vmem:[#allocation3] sm:$0xff] %v2273
        %2281 = vst [vmem:[#allocation3 + $0x8] sm:$0xff] %v2274
        %2282 = vst [vmem:[#allocation3 + $0x10] sm:$0xff] %v2275
        %2283 = vst [vmem:[#allocation3 + $0x18] sm:$0xff] %v2276
        %2284 = vst [vmem:[#allocation3 + $0x20] sm:$0xff] %v2277
        %2285 = vst [vmem:[#allocation3 + $0x28] sm:$0xff] %v2278
        %2286 = vst [vmem:[#allocation3 + $0x30] sm:$0xff] %v2279
        %2287 = vst [vmem:[#allocation5] sm:$0xf8] 0
        %v2288 = vld [vmem:[#allocation3] sm:$0xff]
        %v2289 = vld [vmem:[#allocation3 + $0x8] sm:$0xff]
        %v2290 = vld [vmem:[#allocation3 + $0x10] sm:$0xff]
        %v2291 = vld [vmem:[#allocation3 + $0x18] sm:$0xff]
        %v2292 = vld [vmem:[#allocation3 + $0x20] sm:$0xff]
        %v2293 = vld [vmem:[#allocation3 + $0x28] sm:$0xff]
        %v2294 = vld [vmem:[#allocation3 + $0x30] sm:$0xff]
        %vm2295 = vcmp.ge.f32.partialorder %v2288, 0.0
        %vm2296 = vcmp.ge.f32.partialorder %v2289, 0.0
        %vm2297 = vcmp.ge.f32.partialorder %v2290, 0.0
        %vm2298 = vcmp.ge.f32.partialorder %v2291, 0.0
        %vm2299 = vcmp.ge.f32.partialorder %v2292, 0.0
        %vm2300 = vcmp.ge.f32.partialorder %v2293, 0.0
        %vm2301 = vcmp.ge.f32.partialorder %v2294, 0.0
        %v2302 = vmul.f32 %v2288, 0.1
        %v2303 = vmul.f32 %v2289, 0.1
        %v2304 = vmul.f32 %v2290, 0.1
        %v2305 = vmul.f32 %v2291, 0.1
        %v2306 = vmul.f32 %v2292, 0.1
        %v2307 = vmul.f32 %v2293, 0.1
        %v2308 = vmul.f32 %v2294, 0.1
        %v2309 = vsel %vm2295, %v2288, %v2302
        %v2310 = vsel %vm2296, %v2289, %v2303
        %v2311 = vsel %vm2297, %v2290, %v2304
        %v2312 = vsel %vm2298, %v2291, %v2305
        %v2313 = vsel %vm2299, %v2292, %v2306
        %v2314 = vsel %vm2300, %v2293, %v2307
        %v2315 = vsel %vm2301, %v2294, %v2308
        %v2316 = vmul.f32 %v2309, %v319
        %v2317 = vmul.f32 %v2310, %v320
        %v2318 = vmul.f32 %v2311, %v321
        %v2319 = vmul.f32 %v2312, %v322
        %v2320 = vmul.f32 %v2313, %v323
        %v2321 = vmul.f32 %v2314, %v324
        %v2322 = vmul.f32 %v2315, %v325
        %v2323 = vpack.c.bf16 %v2317, %v2316
        %v2324 = vpack.c.bf16 %v2319, %v2318
        %v2325 = vpack.c.bf16 %v2321, %v2320
        %v2326 = vpack.c.bf16 %v2322, %v2322
        %2327 = vst [vmem:[#allocation5 + $0x8] sm:$0xff] %v2323
        %2328 = vst [vmem:[#allocation5 + $0x10] sm:$0xff] %v2324
        %2329 = vst [vmem:[#allocation5 + $0x18] sm:$0xff] %v2325
        %2330 = vst [vmem:[#allocation5 + $0x20] sm:$0xf] %v2326
        %v2331 = vld [vmem:[#allocation5] sm:$0xf8]
        %v2332 = vld [vmem:[#allocation5 + $0x8] sm:$0xff]
        %v2333 = vld [vmem:[#allocation5 + $0x10] sm:$0xff]
        %v2334 = vld [vmem:[#allocation5 + $0x18] sm:$0x7f]
        %v2335 = vld [vmem:[#allocation5] sm:$0xe0]
        %v2336 = vld [vmem:[#allocation5 + $0x8] sm:$0xff]
        %v2337 = vld [vmem:[#allocation5 + $0x10] sm:$0xff]
        %v2338 = vld [vmem:[#allocation5 + $0x18] sm:$0xff]
        %v2339 = vld [vmem:[#allocation5 + $0x20] sm:$0x3]
        %v2340 = vld [vmem:[#allocation5 + $0x20] sm:$0xf]
        %vm2341 = vsmask.f32 5376
        %v2343 = vshrl.u32 %v2335, 16
        %v2345 = vrot.slane %v2343, 2
        %v2346 = vshll.u32 %v2335, 16
        %v2348 = vrot.slane %v2346, 3
        %v2349 = vor.u32 %v2345, %v2348
        %v2351 = vshrl.u32 %v2336, 16
        %v2353 = vrot.slane %v2351, 2
        %v2354 = vshll.u32 %v2336, 16
        %v2356 = vrot.slane %v2354, 3
        %v2357 = vor.u32 %v2353, %v2356
        %v2358 = vsel %vm2341, %v2349, %v2357
        %v2360 = vshrl.u32 %v2337, 16
        %v2362 = vrot.slane %v2360, 2
        %v2363 = vshll.u32 %v2337, 16
        %v2365 = vrot.slane %v2363, 3
        %v2366 = vor.u32 %v2362, %v2365
        %v2367 = vsel %vm2341, %v2357, %v2366
        %v2369 = vshrl.u32 %v2338, 16
        %v2371 = vrot.slane %v2369, 2
        %v2372 = vshll.u32 %v2338, 16
        %v2374 = vrot.slane %v2372, 3
        %v2375 = vor.u32 %v2371, %v2374
        %v2376 = vsel %vm2341, %v2366, %v2375
        %v2378 = vshrl.u32 %v2339, 16
        %v2380 = vrot.slane %v2378, 2
        %v2381 = vshll.u32 %v2339, 16
        %v2383 = vrot.slane %v2381, 3
        %v2384 = vor.u32 %v2380, %v2383
        %v2385 = vsel %vm2341, %v2375, %v2384
        %v2390 = vrot.slane %v2336, 5
        %v2391 = vrot.slane %v2337, 5
        %v2392 = vsel %vm1467, %v2390, %v2391
        %v2393 = vrot.slane %v2338, 5
        %v2394 = vsel %vm1467, %v2391, %v2393
        %v2395 = vrot.slane %v2340, 5
        %v2396 = vsel %vm1467, %v2393, %v2395
        %s2397 = scalar_lea.vmem [#allocation7], 384
        %v2398 = vld [vmem:[%s2397] sm:$0xf]
        %v2399 = vld [vmem:[%s2397 + $0x4] sm:$0xf]
        %v2400 = vld [vmem:[%s2397 + $0x8] sm:$0xf]
        %v2401 = vld [vmem:[%s2397 + $0xc] sm:$0xf]
        %v2402 = vld [vmem:[%s2397 + $0x10] sm:$0xf]
        %v2403 = vld [vmem:[%s2397 + $0x14] sm:$0xf]
        %v2404 = vld [vmem:[%s2397 + $0x18] sm:$0xf]
        %v2405 = vld [vmem:[%s2397 + $0x1c] sm:$0xf]
        %v2406 = vld [vmem:[%s2397 + $0x20] sm:$0xf]
        %v2407 = vld [vmem:[%s2397 + $0x24] sm:$0xf]
        %v2408 = vld [vmem:[%s2397 + $0x28] sm:$0xf]
        %v2409 = vld [vmem:[%s2397 + $0x2c] sm:$0xf]
        %v2410 = vld [vmem:[%s2397 + $0x30] sm:$0xf]
        %v2411 = vld [vmem:[%s2397 + $0x34] sm:$0xf]
        %v2412 = vld [vmem:[%s2397 + $0x38] sm:$0xf]
        %v2413 = vld [vmem:[%s2397 + $0x3c] sm:$0xf]
        %v2414 = vld [vmem:[%s2397 + $0x40] sm:$0xf]
        %v2415 = vld [vmem:[%s2397 + $0x44] sm:$0xf]
        %v2416 = vld [vmem:[%s2397 + $0x48] sm:$0xf]
        %v2417 = vld [vmem:[%s2397 + $0x4c] sm:$0xf]
        %v2418 = vld [vmem:[%s2397 + $0x50] sm:$0xf]
        %v2419 = vld [vmem:[%s2397 + $0x54] sm:$0xf]
        %v2420 = vld [vmem:[%s2397 + $0x58] sm:$0xf]
        %v2421 = vld [vmem:[%s2397 + $0x5c] sm:$0xf]
        %v2422 = vld [vmem:[%s2397 + $0x60] sm:$0xf]
        %v2423 = vld [vmem:[%s2397 + $0x64] sm:$0xf]
        %v2424 = vld [vmem:[%s2397 + $0x68] sm:$0xf]
        %v2425 = vld [vmem:[%s2397 + $0x6c] sm:$0xf]
        %v2426 = vld [vmem:[%s2397 + $0x70] sm:$0xf]
        %v2427 = vld [vmem:[%s2397 + $0x74] sm:$0xf]
        %v2428 = vld [vmem:[%s2397 + $0x78] sm:$0xf]
        %v2429 = vld [vmem:[%s2397 + $0x7c] sm:$0xf]
        %v2430 = vld [vmem:[%s2397 + $0x80] sm:$0xf]
        %v2431 = vld [vmem:[%s2397 + $0x84] sm:$0xf]
        %v2432 = vld [vmem:[%s2397 + $0x88] sm:$0xf]
        %v2433 = vld [vmem:[%s2397 + $0x8c] sm:$0xf]
        %v2434 = vld [vmem:[%s2397 + $0x90] sm:$0xf]
        %v2435 = vld [vmem:[%s2397 + $0x94] sm:$0xf]
        %v2436 = vld [vmem:[%s2397 + $0x98] sm:$0xf]
        %v2437 = vld [vmem:[%s2397 + $0x9c] sm:$0xf]
        %v2438 = vld [vmem:[%s2397 + $0xa0] sm:$0xf]
        %v2439 = vld [vmem:[%s2397 + $0xa4] sm:$0xf]
        %v2440 = vld [vmem:[%s2397 + $0xa8] sm:$0xf]
        %v2441 = vld [vmem:[%s2397 + $0xac] sm:$0xf]
        %v2442 = vld [vmem:[%s2397 + $0xb0] sm:$0xf]
        %v2443 = vld [vmem:[%s2397 + $0xb4] sm:$0xf]
        %v2444 = vld [vmem:[%s2397 + $0xb8] sm:$0xf]
        %v2445 = vld [vmem:[%s2397 + $0xbc] sm:$0xf]
        %s2446 = scalar_lea.vmem %s2, 2
        %v2447 = vld [vmem:[%s2446] sm:$0x1]
        %v2449 = vlaneseq
        %v2450 = vshrl.u32 %v2449, 7
        %v2451 = vsub.s32 0, %v2450
        %v2452 = vrot.slane %v2447, %v2451
        %v2458 = vrot.slane %v2331, 3
        %v2459 = vrot.slane %v2332, 3
        %v2460 = vsel %vm1400, %v2458, %v2459
        %v2461 = vrot.slane %v2358, 3
        %v2462 = vrot.slane %v2367, 3
        %v2463 = vsel %vm1400, %v2461, %v2462
        %v2464 = vrot.slane %v2390, 3
        %v2465 = vrot.slane %v2392, 3
        %v2466 = vsel %vm1400, %v2464, %v2465
        %v2467 = vrot.slane %v2333, 3
        %v2468 = vsel %vm1400, %v2459, %v2467
        %v2469 = vrot.slane %v2376, 3
        %v2470 = vsel %vm1400, %v2462, %v2469
        %v2471 = vrot.slane %v2394, 3
        %v2472 = vsel %vm1400, %v2465, %v2471
        %v2473 = vrot.slane %v2334, 3
        %v2474 = vsel %vm1400, %v2467, %v2473
        %v2475 = vrot.slane %v2385, 3
        %v2476 = vsel %vm1400, %v2469, %v2475
        %v2477 = vrot.slane %v2396, 3
        %v2478 = vsel %vm1400, %v2471, %v2477
        %v2539 = vunpack.c.l.b16 %v2398
        %v2540 = vunpack.c.l.b16 %v2399
        %v2541 = vunpack.c.l.b16 %v2400
        %v2542 = vunpack.c.l.b16 %v2401
        %v2543 = vunpack.c.l.b16 %v2402
        %v2544 = vunpack.c.l.b16 %v2403
        %v2545 = vunpack.c.l.b16 %v2404
        %v2546 = vunpack.c.l.b16 %v2405
        %v2547 = vunpack.c.l.b16 %v2406
        %v2548 = vunpack.c.l.b16 %v2407
        %v2549 = vunpack.c.l.b16 %v2408
        %v2550 = vunpack.c.l.b16 %v2409
        %v2551 = vunpack.c.l.b16 %v2410
        %v2552 = vunpack.c.l.b16 %v2411
        %v2553 = vunpack.c.l.b16 %v2412
        %v2554 = vunpack.c.l.b16 %v2413
        %v2555 = vunpack.c.l.b16 %v2414
        %v2556 = vunpack.c.l.b16 %v2415
        %v2557 = vunpack.c.l.b16 %v2416
        %v2558 = vunpack.c.l.b16 %v2417
        %v2559 = vunpack.c.l.b16 %v2418
        %v2560 = vunpack.c.l.b16 %v2419
        %v2561 = vunpack.c.l.b16 %v2420
        %v2562 = vunpack.c.l.b16 %v2421
        %v2563 = vunpack.c.l.b16 %v2422
        %v2564 = vunpack.c.l.b16 %v2423
        %v2565 = vunpack.c.l.b16 %v2424
        %v2566 = vunpack.c.l.b16 %v2425
        %v2567 = vunpack.c.l.b16 %v2426
        %v2568 = vunpack.c.l.b16 %v2427
        %v2569 = vunpack.c.l.b16 %v2428
        %v2570 = vunpack.c.l.b16 %v2429
        %v2571 = vunpack.c.l.b16 %v2430
        %v2572 = vunpack.c.l.b16 %v2431
        %v2573 = vunpack.c.l.b16 %v2432
        %v2574 = vunpack.c.l.b16 %v2433
        %v2575 = vunpack.c.l.b16 %v2434
        %v2576 = vunpack.c.l.b16 %v2435
        %v2577 = vunpack.c.l.b16 %v2436
        %v2578 = vunpack.c.l.b16 %v2437
        %v2579 = vunpack.c.l.b16 %v2438
        %v2580 = vunpack.c.l.b16 %v2439
        %v2581 = vunpack.c.l.b16 %v2440
        %v2582 = vunpack.c.l.b16 %v2441
        %v2583 = vunpack.c.l.b16 %v2442
        %v2584 = vunpack.c.l.b16 %v2443
        %v2585 = vunpack.c.l.b16 %v2444
        %v2586 = vunpack.c.l.b16 %v2445
        %v2587 = vpack.c.b16 %v2540, %v2539
        %v2588 = vpack.c.b16 %v2542, %v2541
        %v2589 = vpack.c.b16 %v2544, %v2543
        %v2590 = vpack.c.b16 %v2546, %v2545
        %v2591 = vpack.c.b16 %v2548, %v2547
        %v2592 = vpack.c.b16 %v2550, %v2549
        %v2593 = vpack.c.b16 %v2552, %v2551
        %v2594 = vpack.c.b16 %v2554, %v2553
        %v2595 = vpack.c.b16 %v2556, %v2555
        %v2596 = vpack.c.b16 %v2558, %v2557
        %v2597 = vpack.c.b16 %v2560, %v2559
        %v2598 = vpack.c.b16 %v2562, %v2561
        %v2599 = vpack.c.b16 %v2564, %v2563
        %v2600 = vpack.c.b16 %v2566, %v2565
        %v2601 = vpack.c.b16 %v2568, %v2567
        %v2602 = vpack.c.b16 %v2570, %v2569
        %v2603 = vpack.c.b16 %v2572, %v2571
        %v2604 = vpack.c.b16 %v2574, %v2573
        %v2605 = vpack.c.b16 %v2576, %v2575
        %v2606 = vpack.c.b16 %v2578, %v2577
        %v2607 = vpack.c.b16 %v2580, %v2579
        %v2608 = vpack.c.b16 %v2582, %v2581
        %v2609 = vpack.c.b16 %v2584, %v2583
        %v2610 = vpack.c.b16 %v2586, %v2585
        %2635 = vmatprep.subr.bf16.mxu0 0
        %2636 = vmatpush1.bf16.msra.mxu0 %v2587
        %2637 = vmatprep.subr.bf16.mxu0 0
        %2638 = vmatpush1.bf16.msra.mxu0 %v2588
        %2639 = vmatprep.subr.bf16.mxu0 0
        %2640 = vmatpush1.bf16.msra.mxu0 %v2589
        %2641 = vmatprep.subr.bf16.mxu0 0
        %2642 = vmatpush1.bf16.msra.mxu0 %v2590
        %2643 = vmatprep.subr.bf16.mxu0 0
        %2644 = vmatpush1.bf16.msra.mxu0 %v2591
        %2645 = vmatprep.subr.bf16.mxu0 0
        %2646 = vmatpush1.bf16.msra.mxu0 %v2592
        %2647 = vmatprep.subr.bf16.mxu0 0
        %2648 = vmatpush1.bf16.msra.mxu0 %v2593
        %2649 = vmatprep.subr.bf16.mxu0 0
        %2650 = vmatpush1.bf16.msra.mxu0 %v2594
        %2651 = vmatprep.subr.bf16.mxu0 0
        %2652 = vmatpush1.bf16.msra.mxu0 %v2595
        %2653 = vmatprep.subr.bf16.mxu0 0
        %2654 = vmatpush1.bf16.msra.mxu0 %v2596
        %2655 = vmatprep.subr.bf16.mxu0 0
        %2656 = vmatpush1.bf16.msra.mxu0 %v2597
        %2657 = vmatprep.subr.bf16.mxu0 0
        %2658 = vmatpush1.bf16.msra.mxu0 %v2598
        %2659 = vmatprep.subr.bf16.mxu0 0
        %2660 = vmatpush1.bf16.msra.mxu0 %v2599
        %2661 = vmatprep.subr.bf16.mxu0 0
        %2662 = vmatpush1.bf16.msra.mxu0 %v2600
        %2663 = vmatprep.subr.bf16.mxu0 0
        %2664 = vmatpush1.bf16.msra.mxu0 %v2601
        %2665 = vmatprep.subr.bf16.mxu0 0
        %2666 = vmatpush1.bf16.msra.mxu0 %v2602
        %2667 = vmatprep.mubr.bf16.mxu0 %v2463
        %2668 = vmatmul.mubr.bf16.gmra.mrb[0].mxu0 %v2460
        %v2669 = vpop.f32.mrb[0].mxu0
        %v2670 = vadd.f32 %v2452, %v2669
        %v2671 = vpop.f32.mrb[0].mxu0
        %v2672 = vpop.f32.mrb[0].mxu0
        %v2673 = vadd.f32 %v2452, %v2672
        %v2674 = vpop.f32.mrb[0].mxu0
        %2675 = vmatprep.mubr.bf16.mxu0 %v2470
        %2676 = vmatmul.mubr.bf16.gmra.mrb[0].mxu0 %v2468
        %v2677 = vpop.f32.mrb[0].mxu0
        %v2678 = vadd.f32 %v2452, %v2677
        %v2679 = vpop.f32.mrb[0].mxu0
        %v2680 = vpop.f32.mrb[0].mxu0
        %v2681 = vadd.f32 %v2452, %v2680
        %v2682 = vpop.f32.mrb[0].mxu0
        %2683 = vmatprep.mubr.bf16.mxu0 %v2476
        %2684 = vmatmul.mubr.bf16.gmra.mrb[0].mxu0 %v2474
        %v2685 = vpop.f32.mrb[0].mxu0
        %v2686 = vadd.f32 %v2452, %v2685
        %v2687 = vpop.f32.mrb[0].mxu0
        %v2688 = vpop.f32.mrb[0].mxu0
        %v2689 = vadd.f32 %v2452, %v2688
        %v2690 = vpop.f32.mrb[0].mxu0
        %2691 = vmatprep.mubr.bf16.mxu0 %v2475
        %2692 = vmatmul.mubr.bf16.gmra.mrb[0].mxu0 %v2473
        %v2693 = vpop.f32.mrb[0].mxu0
        %v2694 = vadd.f32 %v2452, %v2693
        %v2695 = vpop.f32.mrb[0].mxu0
        %v2696 = vpop.f32.mrb[0].mxu0
        %v2697 = vpop.f32.mrb[0].mxu0
        %2698 = vdwg.mxu0
        %2699 = vmatprep.subr.bf16.mxu0 0
        %2700 = vmatpush1.bf16.msra.mxu0 %v2603
        %2701 = vmatprep.subr.bf16.mxu0 0
        %2702 = vmatpush1.bf16.msra.mxu0 %v2604
        %2703 = vmatprep.subr.bf16.mxu0 0
        %2704 = vmatpush1.bf16.msra.mxu0 %v2605
        %2705 = vmatprep.subr.bf16.mxu0 0
        %2706 = vmatpush1.bf16.msra.mxu0 %v2606
        %2707 = vmatprep.subr.bf16.mxu0 0
        %2708 = vmatpush1.bf16.msra.mxu0 %v2607
        %2709 = vmatprep.subr.bf16.mxu0 0
        %2710 = vmatpush1.bf16.msra.mxu0 %v2608
        %2711 = vmatprep.subr.bf16.mxu0 0
        %2712 = vmatpush1.bf16.msra.mxu0 %v2609
        %2713 = vmatprep.subr.bf16.mxu0 0
        %2714 = vmatpush1.bf16.msra.mxu0 %v2610
        %2715 = vmatprep.subr.bf16.mxu0 0
        %2716 = vmatpush1.bf16.msra.mxu0 0
        %2717 = vmatprep.subr.bf16.mxu0 0
        %2718 = vmatpush1.bf16.msra.mxu0 0
        %2719 = vmatprep.subr.bf16.mxu0 0
        %2720 = vmatpush1.bf16.msra.mxu0 0
        %2721 = vmatprep.subr.bf16.mxu0 0
        %2722 = vmatpush1.bf16.msra.mxu0 0
        %2723 = vmatprep.subr.bf16.mxu0 0
        %2724 = vmatpush1.bf16.msra.mxu0 0
        %2725 = vmatprep.subr.bf16.mxu0 0
        %2726 = vmatpush1.bf16.msra.mxu0 0
        %2727 = vmatprep.subr.bf16.mxu0 0
        %2728 = vmatpush1.bf16.msra.mxu0 0
        %2729 = vmatprep.subr.bf16.mxu0 0
        %2730 = vmatpush1.bf16.msra.mxu0 0
        %2731 = vmatprep.mubr.bf16.mxu0 0
        %2732 = vmatmul.mubr.bf16.gmra.mrb[0].mxu0 %v2466
        %v2733 = vpop.f32.mrb[0].mxu0
        %v2734 = vadd.f32 %v2670, %v2733
        %v2735 = vpop.f32.mrb[0].mxu0
        %v2736 = vpop.f32.mrb[0].mxu0
        %v2737 = vadd.f32 %v2673, %v2736
        %v2738 = vpop.f32.mrb[0].mxu0
        %2739 = vmatprep.mubr.bf16.mxu0 0
        %2740 = vmatmul.mubr.bf16.gmra.mrb[0].mxu0 %v2472
        %v2741 = vpop.f32.mrb[0].mxu0
        %v2742 = vadd.f32 %v2678, %v2741
        %v2743 = vpop.f32.mrb[0].mxu0
        %v2744 = vpop.f32.mrb[0].mxu0
        %v2745 = vadd.f32 %v2681, %v2744
        %v2746 = vpop.f32.mrb[0].mxu0
        %2747 = vmatprep.mubr.bf16.mxu0 0
        %2748 = vmatmul.mubr.bf16.gmra.mrb[0].mxu0 %v2478
        %v2749 = vpop.f32.mrb[0].mxu0
        %v2750 = vadd.f32 %v2686, %v2749
        %v2751 = vpop.f32.mrb[0].mxu0
        %v2752 = vpop.f32.mrb[0].mxu0
        %v2753 = vadd.f32 %v2689, %v2752
        %v2754 = vpop.f32.mrb[0].mxu0
        %2755 = vmatprep.mubr.bf16.mxu0 0
        %2756 = vmatmul.mubr.bf16.gmra.mrb[0].mxu0 %v2477
        %v2757 = vpop.f32.mrb[0].mxu0
        %v2758 = vadd.f32 %v2694, %v2757
        %v2759 = vpop.f32.mrb[0].mxu0
        %v2760 = vpop.f32.mrb[0].mxu0
        %v2761 = vpop.f32.mrb[0].mxu0
        %2762 = vdwg.mxu0
        %2763 = vst [vmem:[#allocation4] sm:$0xff] %v2734
        %2764 = vst [vmem:[#allocation4 + $0x8] sm:$0xff] %v2737
        %2765 = vst [vmem:[#allocation4 + $0x10] sm:$0xff] %v2742
        %2766 = vst [vmem:[#allocation4 + $0x18] sm:$0xff] %v2745
        %2767 = vst [vmem:[#allocation4 + $0x20] sm:$0xff] %v2750
        %2768 = vst [vmem:[#allocation4 + $0x28] sm:$0xff] %v2753
        %2769 = vst [vmem:[#allocation4 + $0x30] sm:$0xff] %v2758
        %2770 = vst [vmem:[#allocation5] sm:$0x80] 0
        %v2771 = vld [vmem:[#allocation4] sm:$0xff]
        %v2772 = vld [vmem:[#allocation4 + $0x8] sm:$0xff]
        %v2773 = vld [vmem:[#allocation4 + $0x10] sm:$0xff]
        %v2774 = vld [vmem:[#allocation4 + $0x18] sm:$0xff]
        %v2775 = vld [vmem:[#allocation4 + $0x20] sm:$0xff]
        %v2776 = vld [vmem:[#allocation4 + $0x28] sm:$0xff]
        %v2777 = vld [vmem:[#allocation4 + $0x30] sm:$0xff]
        %vm2778 = vcmp.ge.f32.partialorder %v2771, 0.0
        %vm2779 = vcmp.ge.f32.partialorder %v2772, 0.0
        %vm2780 = vcmp.ge.f32.partialorder %v2773, 0.0
        %vm2781 = vcmp.ge.f32.partialorder %v2774, 0.0
        %vm2782 = vcmp.ge.f32.partialorder %v2775, 0.0
        %vm2783 = vcmp.ge.f32.partialorder %v2776, 0.0
        %vm2784 = vcmp.ge.f32.partialorder %v2777, 0.0
        %v2785 = vmul.f32 %v2771, 0.1
        %v2786 = vmul.f32 %v2772, 0.1
        %v2787 = vmul.f32 %v2773, 0.1
        %v2788 = vmul.f32 %v2774, 0.1
        %v2789 = vmul.f32 %v2775, 0.1
        %v2790 = vmul.f32 %v2776, 0.1
        %v2791 = vmul.f32 %v2777, 0.1
        %v2792 = vsel %vm2778, %v2771, %v2785
        %v2793 = vsel %vm2779, %v2772, %v2786
        %v2794 = vsel %vm2780, %v2773, %v2787
        %v2795 = vsel %vm2781, %v2774, %v2788
        %v2796 = vsel %vm2782, %v2775, %v2789
        %v2797 = vsel %vm2783, %v2776, %v2790
        %v2798 = vsel %vm2784, %v2777, %v2791
        %v2799 = vmul.f32 %v2792, %v319
        %v2800 = vmul.f32 %v2793, %v320
        %v2801 = vmul.f32 %v2794, %v321
        %v2802 = vmul.f32 %v2795, %v322
        %v2803 = vmul.f32 %v2796, %v323
        %v2804 = vmul.f32 %v2797, %v324
        %v2805 = vmul.f32 %v2798, %v325
        %v2806 = vpack.c.bf16 %v2800, %v2799
        %v2807 = vpack.c.bf16 %v2802, %v2801
        %v2808 = vpack.c.bf16 %v2804, %v2803
        %v2809 = vpack.c.bf16 %v2805, %v2805
        %2810 = vst [vmem:[#allocation5 + $0x8] sm:$0xff] %v2806
        %2811 = vst [vmem:[#allocation5 + $0x10] sm:$0xff] %v2807
        %2812 = vst [vmem:[#allocation5 + $0x18] sm:$0xff] %v2808
        %2813 = vst [vmem:[#allocation5 + $0x20] sm:$0xf] %v2809
        %v2814 = vld [vmem:[#allocation5] sm:$0x80]
        %v2815 = vld [vmem:[#allocation5 + $0x8] sm:$0xff]
        %v2816 = vld [vmem:[#allocation5 + $0x10] sm:$0xff]
        %v2817 = vld [vmem:[#allocation5 + $0x18] sm:$0xff]
        %v2818 = vld [vmem:[#allocation5 + $0x20] sm:$0x7]
        %v2819 = vld [vmem:[#allocation5 + $0x20] sm:$0xf]
        %v2821 = vshrl.u32 %v2814, 16
        %v2824 = vshll.u32 %v2815, 16
        %v2826 = vrot.slane %v2824, 1
        %v2827 = vsel %vm376, %v2821, %v2826
        %v2828 = vshrl.u32 %v2815, 16
        %v2830 = vor.u32 %v2828, %v2826
        %v2832 = vshll.u32 %v2816, 16
        %v2834 = vrot.slane %v2832, 1
        %v2835 = vsel %vm376, %v2830, %v2834
        %v2836 = vshrl.u32 %v2816, 16
        %v2838 = vor.u32 %v2836, %v2834
        %v2840 = vshll.u32 %v2817, 16
        %v2842 = vrot.slane %v2840, 1
        %v2843 = vsel %vm376, %v2838, %v2842
        %v2844 = vshrl.u32 %v2817, 16
        %v2846 = vor.u32 %v2844, %v2842
        %v2848 = vshll.u32 %v2819, 16
        %v2850 = vrot.slane %v2848, 1
        %v2851 = vsel %vm376, %v2846, %v2850
        %v2852 = vshrl.u32 %v2819, 16
        %v2854 = vor.u32 %v2852, %v2850
        %v2859 = vrot.slane %v2815, 1
        %v2860 = vrot.slane %v2816, 1
        %v2861 = vsel %vm416, %v2859, %v2860
        %v2862 = vrot.slane %v2817, 1
        %v2863 = vsel %vm416, %v2860, %v2862
        %v2864 = vrot.slane %v2819, 1
        %v2865 = vsel %vm416, %v2862, %v2864
        %s2866 = scalar_lea.vmem [#allocation10], 384
        %v2867 = vld [vmem:[%s2866] sm:$0xf]
        %v2868 = vld [vmem:[%s2866 + $0x4] sm:$0xf]
        %v2869 = vld [vmem:[%s2866 + $0x8] sm:$0xf]
        %v2870 = vld [vmem:[%s2866 + $0xc] sm:$0xf]
        %v2871 = vld [vmem:[%s2866 + $0x10] sm:$0xf]
        %v2872 = vld [vmem:[%s2866 + $0x14] sm:$0xf]
        %v2873 = vld [vmem:[%s2866 + $0x18] sm:$0xf]
        %v2874 = vld [vmem:[%s2866 + $0x1c] sm:$0xf]
        %v2875 = vld [vmem:[%s2866 + $0x20] sm:$0xf]
        %v2876 = vld [vmem:[%s2866 + $0x24] sm:$0xf]
        %v2877 = vld [vmem:[%s2866 + $0x28] sm:$0xf]
        %v2878 = vld [vmem:[%s2866 + $0x2c] sm:$0xf]
        %v2879 = vld [vmem:[%s2866 + $0x30] sm:$0xf]
        %v2880 = vld [vmem:[%s2866 + $0x34] sm:$0xf]
        %v2881 = vld [vmem:[%s2866 + $0x38] sm:$0xf]
        %v2882 = vld [vmem:[%s2866 + $0x3c] sm:$0xf]
        %v2883 = vld [vmem:[%s2866 + $0x40] sm:$0xf]
        %v2884 = vld [vmem:[%s2866 + $0x44] sm:$0xf]
        %v2885 = vld [vmem:[%s2866 + $0x48] sm:$0xf]
        %v2886 = vld [vmem:[%s2866 + $0x4c] sm:$0xf]
        %v2887 = vld [vmem:[%s2866 + $0x50] sm:$0xf]
        %v2888 = vld [vmem:[%s2866 + $0x54] sm:$0xf]
        %v2889 = vld [vmem:[%s2866 + $0x58] sm:$0xf]
        %v2890 = vld [vmem:[%s2866 + $0x5c] sm:$0xf]
        %v2891 = vld [vmem:[%s2866 + $0x60] sm:$0xf]
        %v2892 = vld [vmem:[%s2866 + $0x64] sm:$0xf]
        %v2893 = vld [vmem:[%s2866 + $0x68] sm:$0xf]
        %v2894 = vld [vmem:[%s2866 + $0x6c] sm:$0xf]
        %v2895 = vld [vmem:[%s2866 + $0x70] sm:$0xf]
        %v2896 = vld [vmem:[%s2866 + $0x74] sm:$0xf]
        %v2897 = vld [vmem:[%s2866 + $0x78] sm:$0xf]
        %v2898 = vld [vmem:[%s2866 + $0x7c] sm:$0xf]
        %v2899 = vld [vmem:[%s2866 + $0x80] sm:$0xf]
        %v2900 = vld [vmem:[%s2866 + $0x84] sm:$0xf]
        %v2901 = vld [vmem:[%s2866 + $0x88] sm:$0xf]
        %v2902 = vld [vmem:[%s2866 + $0x8c] sm:$0xf]
        %v2903 = vld [vmem:[%s2866 + $0x90] sm:$0xf]
        %v2904 = vld [vmem:[%s2866 + $0x94] sm:$0xf]
        %v2905 = vld [vmem:[%s2866 + $0x98] sm:$0xf]
        %v2906 = vld [vmem:[%s2866 + $0x9c] sm:$0xf]
        %v2907 = vld [vmem:[%s2866 + $0xa0] sm:$0xf]
        %v2908 = vld [vmem:[%s2866 + $0xa4] sm:$0xf]
        %v2909 = vld [vmem:[%s2866 + $0xa8] sm:$0xf]
        %v2910 = vld [vmem:[%s2866 + $0xac] sm:$0xf]
        %v2911 = vld [vmem:[%s2866 + $0xb0] sm:$0xf]
        %v2912 = vld [vmem:[%s2866 + $0xb4] sm:$0xf]
        %v2913 = vld [vmem:[%s2866 + $0xb8] sm:$0xf]
        %v2914 = vld [vmem:[%s2866 + $0xbc] sm:$0xf]
        %s2915 = scalar_lea.vmem %s4, 2
        %v2916 = vld [vmem:[%s2915] sm:$0x1]
        %v2918 = vlaneseq
        %v2919 = vshrl.u32 %v2918, 7
        %v2920 = vsub.s32 0, %v2919
        %v2921 = vrot.slane %v2916, %v2920
        %v2925 = vrot.slane %v2814, 7
        %v2926 = vrot.slane %v2815, 7
        %v2927 = vsel %vm481, %v2925, %v2926
        %v2928 = vrot.slane %v2827, 7
        %v2929 = vrot.slane %v2835, 7
        %v2930 = vsel %vm481, %v2928, %v2929
        %v2931 = vrot.slane %v2859, 7
        %v2932 = vrot.slane %v2861, 7
        %v2933 = vsel %vm481, %v2931, %v2932
        %v2934 = vrot.slane %v2816, 7
        %v2935 = vsel %vm481, %v2926, %v2934
        %v2936 = vrot.slane %v2843, 7
        %v2937 = vsel %vm481, %v2929, %v2936
        %v2938 = vrot.slane %v2863, 7
        %v2939 = vsel %vm481, %v2932, %v2938
        %v2940 = vrot.slane %v2817, 7
        %v2941 = vsel %vm481, %v2934, %v2940
        %v2942 = vrot.slane %v2851, 7
        %v2943 = vsel %vm481, %v2936, %v2942
        %v2944 = vrot.slane %v2865, 7
        %v2945 = vsel %vm481, %v2938, %v2944
        %v2946 = vrot.slane %v2818, 7
        %v2947 = vsel %vm481, %v2940, %v2946
        %v2948 = vrot.slane %v2854, 7
        %v2949 = vsel %vm481, %v2942, %v2948
        %v2950 = vrot.slane %v2864, 7
        %v2951 = vsel %vm481, %v2944, %v2950
        %v3012 = vunpack.c.l.b16 %v2867
        %v3013 = vunpack.c.l.b16 %v2868
        %v3014 = vunpack.c.l.b16 %v2869
        %v3015 = vunpack.c.l.b16 %v2870
        %v3016 = vunpack.c.l.b16 %v2871
        %v3017 = vunpack.c.l.b16 %v2872
        %v3018 = vunpack.c.l.b16 %v2873
        %v3019 = vunpack.c.l.b16 %v2874
        %v3020 = vunpack.c.l.b16 %v2875
        %v3021 = vunpack.c.l.b16 %v2876
        %v3022 = vunpack.c.l.b16 %v2877
        %v3023 = vunpack.c.l.b16 %v2878
        %v3024 = vunpack.c.l.b16 %v2879
        %v3025 = vunpack.c.l.b16 %v2880
        %v3026 = vunpack.c.l.b16 %v2881
        %v3027 = vunpack.c.l.b16 %v2882
        %v3028 = vunpack.c.l.b16 %v2883
        %v3029 = vunpack.c.l.b16 %v2884
        %v3030 = vunpack.c.l.b16 %v2885
        %v3031 = vunpack.c.l.b16 %v2886
        %v3032 = vunpack.c.l.b16 %v2887
        %v3033 = vunpack.c.l.b16 %v2888
        %v3034 = vunpack.c.l.b16 %v2889
        %v3035 = vunpack.c.l.b16 %v2890
        %v3036 = vunpack.c.l.b16 %v2891
        %v3037 = vunpack.c.l.b16 %v2892
        %v3038 = vunpack.c.l.b16 %v2893
        %v3039 = vunpack.c.l.b16 %v2894
        %v3040 = vunpack.c.l.b16 %v2895
        %v3041 = vunpack.c.l.b16 %v2896
        %v3042 = vunpack.c.l.b16 %v2897
        %v3043 = vunpack.c.l.b16 %v2898
        %v3044 = vunpack.c.l.b16 %v2899
        %v3045 = vunpack.c.l.b16 %v2900
        %v3046 = vunpack.c.l.b16 %v2901
        %v3047 = vunpack.c.l.b16 %v2902
        %v3048 = vunpack.c.l.b16 %v2903
        %v3049 = vunpack.c.l.b16 %v2904
        %v3050 = vunpack.c.l.b16 %v2905
        %v3051 = vunpack.c.l.b16 %v2906
        %v3052 = vunpack.c.l.b16 %v2907
        %v3053 = vunpack.c.l.b16 %v2908
        %v3054 = vunpack.c.l.b16 %v2909
        %v3055 = vunpack.c.l.b16 %v2910
        %v3056 = vunpack.c.l.b16 %v2911
        %v3057 = vunpack.c.l.b16 %v2912
        %v3058 = vunpack.c.l.b16 %v2913
        %v3059 = vunpack.c.l.b16 %v2914
        %v3060 = vpack.c.b16 %v3013, %v3012
        %v3061 = vpack.c.b16 %v3015, %v3014
        %v3062 = vpack.c.b16 %v3017, %v3016
        %v3063 = vpack.c.b16 %v3019, %v3018
        %v3064 = vpack.c.b16 %v3021, %v3020
        %v3065 = vpack.c.b16 %v3023, %v3022
        %v3066 = vpack.c.b16 %v3025, %v3024
        %v3067 = vpack.c.b16 %v3027, %v3026
        %v3068 = vpack.c.b16 %v3029, %v3028
        %v3069 = vpack.c.b16 %v3031, %v3030
        %v3070 = vpack.c.b16 %v3033, %v3032
        %v3071 = vpack.c.b16 %v3035, %v3034
        %v3072 = vpack.c.b16 %v3037, %v3036
        %v3073 = vpack.c.b16 %v3039, %v3038
        %v3074 = vpack.c.b16 %v3041, %v3040
        %v3075 = vpack.c.b16 %v3043, %v3042
        %v3076 = vpack.c.b16 %v3045, %v3044
        %v3077 = vpack.c.b16 %v3047, %v3046
        %v3078 = vpack.c.b16 %v3049, %v3048
        %v3079 = vpack.c.b16 %v3051, %v3050
        %v3080 = vpack.c.b16 %v3053, %v3052
        %v3081 = vpack.c.b16 %v3055, %v3054
        %v3082 = vpack.c.b16 %v3057, %v3056
        %v3083 = vpack.c.b16 %v3059, %v3058
        %3108 = vmatprep.subr.bf16.mxu0 0
        %3109 = vmatpush1.bf16.msra.mxu0 %v3060
        %3110 = vmatprep.subr.bf16.mxu0 0
        %3111 = vmatpush1.bf16.msra.mxu0 %v3061
        %3112 = vmatprep.subr.bf16.mxu0 0
        %3113 = vmatpush1.bf16.msra.mxu0 %v3062
        %3114 = vmatprep.subr.bf16.mxu0 0
        %3115 = vmatpush1.bf16.msra.mxu0 %v3063
        %3116 = vmatprep.subr.bf16.mxu0 0
        %3117 = vmatpush1.bf16.msra.mxu0 %v3064
        %3118 = vmatprep.subr.bf16.mxu0 0
        %3119 = vmatpush1.bf16.msra.mxu0 %v3065
        %3120 = vmatprep.subr.bf16.mxu0 0
        %3121 = vmatpush1.bf16.msra.mxu0 %v3066
        %3122 = vmatprep.subr.bf16.mxu0 0
        %3123 = vmatpush1.bf16.msra.mxu0 %v3067
        %3124 = vmatprep.subr.bf16.mxu0 0
        %3125 = vmatpush1.bf16.msra.mxu0 %v3068
        %3126 = vmatprep.subr.bf16.mxu0 0
        %3127 = vmatpush1.bf16.msra.mxu0 %v3069
        %3128 = vmatprep.subr.bf16.mxu0 0
        %3129 = vmatpush1.bf16.msra.mxu0 %v3070
        %3130 = vmatprep.subr.bf16.mxu0 0
        %3131 = vmatpush1.bf16.msra.mxu0 %v3071
        %3132 = vmatprep.subr.bf16.mxu0 0
        %3133 = vmatpush1.bf16.msra.mxu0 %v3072
        %3134 = vmatprep.subr.bf16.mxu0 0
        %3135 = vmatpush1.bf16.msra.mxu0 %v3073
        %3136 = vmatprep.subr.bf16.mxu0 0
        %3137 = vmatpush1.bf16.msra.mxu0 %v3074
        %3138 = vmatprep.subr.bf16.mxu0 0
        %3139 = vmatpush1.bf16.msra.mxu0 %v3075
        %3140 = vmatprep.mubr.bf16.mxu0 %v2930
        %3141 = vmatmul.mubr.bf16.gmra.mrb[0].mxu0 %v2927
        %v3142 = vpop.f32.mrb[0].mxu0
        %v3143 = vadd.f32 %v2921, %v3142
        %v3144 = vpop.f32.mrb[0].mxu0
        %v3145 = vpop.f32.mrb[0].mxu0
        %v3146 = vadd.f32 %v2921, %v3145
        %v3147 = vpop.f32.mrb[0].mxu0
        %3148 = vmatprep.mubr.bf16.mxu0 %v2937
        %3149 = vmatmul.mubr.bf16.gmra.mrb[0].mxu0 %v2935
        %v3150 = vpop.f32.mrb[0].mxu0
        %v3151 = vadd.f32 %v2921, %v3150
        %v3152 = vpop.f32.mrb[0].mxu0
        %v3153 = vpop.f32.mrb[0].mxu0
        %v3154 = vadd.f32 %v2921, %v3153
        %v3155 = vpop.f32.mrb[0].mxu0
        %3156 = vmatprep.mubr.bf16.mxu0 %v2943
        %3157 = vmatmul.mubr.bf16.gmra.mrb[0].mxu0 %v2941
        %v3158 = vpop.f32.mrb[0].mxu0
        %v3159 = vadd.f32 %v2921, %v3158
        %v3160 = vpop.f32.mrb[0].mxu0
        %v3161 = vpop.f32.mrb[0].mxu0
        %v3162 = vadd.f32 %v2921, %v3161
        %v3163 = vpop.f32.mrb[0].mxu0
        %3164 = vmatprep.mubr.bf16.mxu0 %v2949
        %3165 = vmatmul.mubr.bf16.gmra.mrb[0].mxu0 %v2947
        %v3166 = vpop.f32.mrb[0].mxu0
        %v3167 = vadd.f32 %v2921, %v3166
        %v3168 = vpop.f32.mrb[0].mxu0
        %v3169 = vpop.f32.mrb[0].mxu0
        %v3170 = vpop.f32.mrb[0].mxu0
        %3171 = vdwg.mxu0
        %3172 = vmatprep.subr.bf16.mxu0 0
        %3173 = vmatpush1.bf16.msra.mxu0 %v3076
        %3174 = vmatprep.subr.bf16.mxu0 0
        %3175 = vmatpush1.bf16.msra.mxu0 %v3077
        %3176 = vmatprep.subr.bf16.mxu0 0
        %3177 = vmatpush1.bf16.msra.mxu0 %v3078
        %3178 = vmatprep.subr.bf16.mxu0 0
        %3179 = vmatpush1.bf16.msra.mxu0 %v3079
        %3180 = vmatprep.subr.bf16.mxu0 0
        %3181 = vmatpush1.bf16.msra.mxu0 %v3080
        %3182 = vmatprep.subr.bf16.mxu0 0
        %3183 = vmatpush1.bf16.msra.mxu0 %v3081
        %3184 = vmatprep.subr.bf16.mxu0 0
        %3185 = vmatpush1.bf16.msra.mxu0 %v3082
        %3186 = vmatprep.subr.bf16.mxu0 0
        %3187 = vmatpush1.bf16.msra.mxu0 %v3083
        %3188 = vmatprep.subr.bf16.mxu0 0
        %3189 = vmatpush1.bf16.msra.mxu0 0
        %3190 = vmatprep.subr.bf16.mxu0 0
        %3191 = vmatpush1.bf16.msra.mxu0 0
        %3192 = vmatprep.subr.bf16.mxu0 0
        %3193 = vmatpush1.bf16.msra.mxu0 0
        %3194 = vmatprep.subr.bf16.mxu0 0
        %3195 = vmatpush1.bf16.msra.mxu0 0
        %3196 = vmatprep.subr.bf16.mxu0 0
        %3197 = vmatpush1.bf16.msra.mxu0 0
        %3198 = vmatprep.subr.bf16.mxu0 0
        %3199 = vmatpush1.bf16.msra.mxu0 0
        %3200 = vmatprep.subr.bf16.mxu0 0
        %3201 = vmatpush1.bf16.msra.mxu0 0
        %3202 = vmatprep.subr.bf16.mxu0 0
        %3203 = vmatpush1.bf16.msra.mxu0 0
        %3204 = vmatprep.mubr.bf16.mxu0 0
        %3205 = vmatmul.mubr.bf16.gmra.mrb[0].mxu0 %v2933
        %v3206 = vpop.f32.mrb[0].mxu0
        %v3207 = vadd.f32 %v3143, %v3206
        %v3208 = vpop.f32.mrb[0].mxu0
        %v3209 = vpop.f32.mrb[0].mxu0
        %v3210 = vadd.f32 %v3146, %v3209
        %v3211 = vpop.f32.mrb[0].mxu0
        %3212 = vmatprep.mubr.bf16.mxu0 0
        %3213 = vmatmul.mubr.bf16.gmra.mrb[0].mxu0 %v2939
        %v3214 = vpop.f32.mrb[0].mxu0
        %v3215 = vadd.f32 %v3151, %v3214
        %v3216 = vpop.f32.mrb[0].mxu0
        %v3217 = vpop.f32.mrb[0].mxu0
        %v3218 = vadd.f32 %v3154, %v3217
        %v3219 = vpop.f32.mrb[0].mxu0
        %3220 = vmatprep.mubr.bf16.mxu0 0
        %3221 = vmatmul.mubr.bf16.gmra.mrb[0].mxu0 %v2945
        %v3222 = vpop.f32.mrb[0].mxu0
        %v3223 = vadd.f32 %v3159, %v3222
        %v3224 = vpop.f32.mrb[0].mxu0
        %v3225 = vpop.f32.mrb[0].mxu0
        %v3226 = vadd.f32 %v3162, %v3225
        %v3227 = vpop.f32.mrb[0].mxu0
        %3228 = vmatprep.mubr.bf16.mxu0 0
        %3229 = vmatmul.mubr.bf16.gmra.mrb[0].mxu0 %v2951
        %v3230 = vpop.f32.mrb[0].mxu0
        %v3231 = vadd.f32 %v3167, %v3230
        %v3232 = vpop.f32.mrb[0].mxu0
        %v3233 = vpop.f32.mrb[0].mxu0
        %v3234 = vpop.f32.mrb[0].mxu0
        %3235 = vdwg.mxu0
        %3236 = vst [vmem:[#allocation4] sm:$0xff] %v3207
        %3237 = vst [vmem:[#allocation4 + $0x8] sm:$0xff] %v3210
        %3238 = vst [vmem:[#allocation4 + $0x10] sm:$0xff] %v3215
        %3239 = vst [vmem:[#allocation4 + $0x18] sm:$0xff] %v3218
        %3240 = vst [vmem:[#allocation4 + $0x20] sm:$0xff] %v3223
        %3241 = vst [vmem:[#allocation4 + $0x28] sm:$0xff] %v3226
        %3242 = vst [vmem:[#allocation4 + $0x30] sm:$0xff] %v3231
        %v3243 = vld [vmem:[#allocation4] sm:$0xff]
        %v3244 = vld [vmem:[#allocation4 + $0x8] sm:$0xff]
        %v3245 = vld [vmem:[#allocation4 + $0x10] sm:$0xff]
        %v3246 = vld [vmem:[#allocation4 + $0x18] sm:$0xff]
        %v3247 = vld [vmem:[#allocation4 + $0x20] sm:$0xff]
        %v3248 = vld [vmem:[#allocation4 + $0x28] sm:$0xff]
        %v3249 = vld [vmem:[#allocation4 + $0x30] sm:$0xff]
        %v3250 = vld [vmem:[#allocation3] sm:$0xff]
        %v3251 = vld [vmem:[#allocation3 + $0x8] sm:$0xff]
        %v3252 = vld [vmem:[#allocation3 + $0x10] sm:$0xff]
        %v3253 = vld [vmem:[#allocation3 + $0x18] sm:$0xff]
        %v3254 = vld [vmem:[#allocation3 + $0x20] sm:$0xff]
        %v3255 = vld [vmem:[#allocation3 + $0x28] sm:$0xff]
        %v3256 = vld [vmem:[#allocation3 + $0x30] sm:$0xff]
        %v3257 = vadd.f32 %v3243, %v3250
        %v3258 = vadd.f32 %v3244, %v3251
        %v3259 = vadd.f32 %v3245, %v3252
        %v3260 = vadd.f32 %v3246, %v3253
        %v3261 = vadd.f32 %v3247, %v3254
        %v3262 = vadd.f32 %v3248, %v3255
        %v3263 = vadd.f32 %v3249, %v3256
        %3264 = vst [vmem:[#allocation3] sm:$0xff] %v3257
        %3265 = vst [vmem:[#allocation3 + $0x8] sm:$0xff] %v3258
        %3266 = vst [vmem:[#allocation3 + $0x10] sm:$0xff] %v3259
        %3267 = vst [vmem:[#allocation3 + $0x18] sm:$0xff] %v3260
        %3268 = vst [vmem:[#allocation3 + $0x20] sm:$0xff] %v3261
        %3269 = vst [vmem:[#allocation3 + $0x28] sm:$0xff] %v3262
        %3270 = vst [vmem:[#allocation3 + $0x30] sm:$0xff] %v3263
        %v3271 = vld [vmem:[#allocation3 + $0x18] sm:$0xff]
        %v3272 = vld [vmem:[#allocation3 + $0x20] sm:$0xff]
        %v3273 = vld [vmem:[#allocation3 + $0x28] sm:$0xff]
        %v3274 = vld [vmem:[#allocation3 + $0x30] sm:$0xff]
        %3275 = vst [vmem:[%s220] sm:$0xff] %v3271
        %3276 = vst [vmem:[%s220 + $0x8] sm:$0xff] %v3272
        %3277 = vst [vmem:[%s220 + $0x10] sm:$0xff] %v3273
        %3278 = vst [vmem:[%s220 + $0x18] sm:$0xff] %v3274
        %s3279 = sand.u32 %s127, 1
        %s3280 = scalar_lea.sflag [#allocation9], %s3279
        %s3281 = sand.u32 %s127, 1
        %s3282 = smul.addr %s3281, 32
        %s3283 = scalar_lea.vmem [#allocation12], %s3282
        // Predicated region
        $region61: #{tpu_custom_call.1} parent=35 // pred_check
          %p3284 = pneg %p137
        $region62: #{tpu_custom_call.1} parent=35 // pred_check_branch
          %3286 = sbr.rel (%p3284) target = $region64
        $region63: #{tpu_custom_call.1} parent=35 // pred_region
          %s3287 = smul.u32 4, %s26
          %s3289 = ssub.s32 512, 512
          %3290 = vsyncadd %s3280, %s3289
          %s3291 = smul.addr %s25, 12
          %s3292 = sadd.s32 %s3287, %s3291
          %s3293 = smul.addr %s3292, 128
          %s3294 = scalar_lea.hbm %s5, %s3293
          %s3295 = sshll.u32 %s3283, 4
          %s3296 = int_to_ptr.vmem [resolvable:$true] %s3295
          %3301 = dma.vmem_to_hbm [thread:$0]  %s3296, 512, %s3294, %s3280, 128, 128, 8
        $region64: #{tpu_custom_call.1} parent=35 // pred_fallthru
          _
      $region36: #{tpu_custom_call.1} parent=5 // pred_fallthru
        _
      %p3302 = scmp.le.s32.totalorder 2, %s16
      // Predicated region
      $region65: #{tpu_custom_call.1} parent=5 // pred_check
        %p3303 = pneg %p3302
      $region66: #{tpu_custom_call.1} parent=5 // pred_check_branch
        %3305 = sbr.rel (%p3303) target = $region68
      $region67: #{tpu_custom_call.1} parent=5 // pred_region
        %s3306 = ssub.s32 %s16, 2
        // Predicated region
        $region69: #{tpu_custom_call.1} parent=67 // pred_check
          %p3307 = pneg %p143
        $region70: #{tpu_custom_call.1} parent=67 // pred_check_branch
          %3309 = sbr.rel (%p3307) target = $region72
        $region71: #{tpu_custom_call.1} parent=67 // pred_region
          %s3310 = sand.u32 %s128, 1
          %s3311 = scalar_lea.sflag [#allocation9], %s3310
          %s3312 = sand.u32 %s128, 1
          %s3313 = smul.addr %s3312, 32
          %s3314 = scalar_lea.vmem [#allocation12], %s3313
          %3315 = dma.done %s3311, 512
        $region72: #{tpu_custom_call.1} parent=67 // pred_fallthru
          _
      $region68: #{tpu_custom_call.1} parent=5 // pred_fallthru
        _
    $region6: #{tpu_custom_call.1} parent=1 // loop_footer
      %s20 = sadd.s32 1, %s16
    $region7: #{tpu_custom_call.1} parent=1 // loop_footer_branch
      %15 = sbr.rel target = $region3
    $region8: #{tpu_custom_call.1} parent=1 // loop_exit
      _
    %3316 = vsyncpa [#allocation8], 1
    %s3317 = scalar_lea.sflag [#allocation8], 1
    %3318 = vsyncpa %s3317, 1
    %3319 = vsyncpa [#allocation11], 1
    %3320 = vsyncpa [#allocation9], 1
    %s3321 = scalar_lea.sflag [#allocation9], 1
    %3322 = vsyncpa %s3321, 1
  %3323 = vsyncmov [#allocation6]
  %s3324 = vpop.sfrf %3323
  %p3325 = scmp.eq.s32.totalorder %s3324, 0
  %p3326 = pneg %p3325
  %3328 = shalt.err (%p3326)
  %s3329 = scalar_lea.sflag [#allocation6], 1
  %3330 = vsyncmov %s3329
  %s3331 = vpop.sfrf %3330
  %p3332 = scmp.eq.s32.totalorder %s3331, 0
  %p3333 = pneg %p3332
  %3335 = shalt.err (%p3333)

</llo_original>
